<compile_context>
chip_gen: v7x
topology: tpu7x:2x2x1
jax: 0.10.0
libtpu: 0.0.40
codegen_flags: <defaults>
</compile_context>

<pallas_src>
import functools

import jax
import jax.numpy as jnp
from jax.experimental import pallas as pl
from jax.experimental.pallas import tpu as pltpu


_LANE = 128
# Above the 16/32 MiB scoped-VMEM defaults, below v7x's 64 MiB physical VMEM.
_VMEM_LIMIT = 48 * 1024 * 1024


def _round_up(x, m):
    return (x + m - 1) // m * m


def _pick_tile(n, target):
    # Largest divisor of n that is <= target (n itself for small test shapes).
    # TODO(synk): non-divisible sequence lengths would need a masked tail tile.
    t = min(n, target)
    while n % t:
        t -= 1
    return t


# --------------------------- in-kernel helpers ---------------------------

def _layernorm_padded(x, g, c_real):
    # x: (rows, C_pad) f32 with zeros in the padded channel columns; g is zero
    # there too, so summing over the padded lane axis and dividing by the real
    # channel count reproduces torch's mean / biased variance over `dim`
    # (eps=1e-5 since x is float32), and padded output columns stay 0.
    inv_c = jnp.float32(1.0 / c_real)
    mean = jnp.sum(x, axis=-1, keepdims=True) * inv_c
    msq = jnp.sum(x * x, axis=-1, keepdims=True) * inv_c
    var = msq - mean * mean
    return (x - mean) * jax.lax.rsqrt(var + jnp.float32(1e-5)) * g


def _gelu_exact(x):
    # matches torch.nn.GELU() default (erf form)
    return 0.5 * x * (1.0 + jax.lax.erf(x * jnp.float32(0.7071067811865476)))


# ------------------------------ kernels ----------------------------------

def _qkv_kernel(x_ref, g_ref, wqkv_ref, q_ref, k_ref, v_ref, *,
                heads, d_pad, c_real):
    """Pre-norm + QKV projection for one (batch, q-tile) block.

    One wide MXU matmul, then static lane slices into head-major outputs."""
    x = x_ref[0]                                            # (q_tile, C_pad) f32
    xn = _layernorm_padded(x, g_ref[...], c_real)
    qkv = jnp.dot(xn.astype(jnp.bfloat16), wqkv_ref[...],
                  preferred_element_type=jnp.float32)       # (q_tile, 3*H*Dh)
    qkv = qkv.astype(jnp.bfloat16)
    # Weights were laid out on the host as [q_h0..q_hH-1, k_h0.., v_h0..] along
    # the output columns, so each head's slice is a static lane range.
    for s, ref in enumerate((q_ref, k_ref, v_ref)):
        for h in range(heads):
            off = (s * heads + h) * d_pad
            ref[0, h, :, :] = qkv[:, off:off + d_pad]       # q scale folded in


def _attn_ff_kernel(x_ref, q_ref, k_ref, v_ref,
                    wout_ref, bout_ref, g_ff_ref, w1_ref, b1_ref, w2_ref, b2_ref,
                    o_ref, m_scr, l_scr, acc_scr, *, heads, c_real):
    """Flash attention over KV tiles + out-proj + residual + FF + residual."""
    kv = pl.program_id(2)

    @pl.when(kv == 0)
    def _():
        m_scr[...] = jnp.full_like(m_scr, -jnp.inf)
        l_scr[...] = jnp.zeros_like(l_scr)
        acc_scr[...] = jnp.zeros_like(acc_scr)

    q = q_ref[0]                                            # (H, q_tile, Dh) bf16
    k = k_ref[0]                                            # (H, kv_tile, Dh) bf16
    v = v_ref[0]                                            # (H, kv_tile, Dh) bf16

    sim = jnp.einsum("hqd,hkd->hqk", q, k,
                     preferred_element_type=jnp.float32)    # (H, q_tile, kv_tile)
    m_prev = m_scr[...]
    m_new = jnp.maximum(m_prev, jnp.max(sim, axis=-1, keepdims=True))
    alpha = jnp.exp(m_prev - m_new)
    p = jnp.exp(sim - m_new)
    l_scr[...] = alpha * l_scr[...] + jnp.sum(p, axis=-1, keepdims=True)
    pv = jnp.einsum("hqk,hkd->hqd", p.astype(jnp.bfloat16), v,
                    preferred_element_type=jnp.float32)     # (H, q_tile, Dh)
    acc_scr[...] = alpha * acc_scr[...] + pv
    m_scr[...] = m_new

    @pl.when(kv == pl.num_programs(2) - 1)
    def _():
        # --- finalize attention, output projection, residual ---
        inv_l = pl.reciprocal(l_scr[...], approx=True)      # EUP, nearly free
        o_heads = (acc_scr[...] * inv_l).astype(jnp.bfloat16)   # (H, q_tile, Dh)
        # Concatenate heads along lanes -> one full-contraction out-projection.
        o_flat = jnp.concatenate([o_heads[h] for h in range(heads)], axis=-1)
        attn_out = jnp.dot(o_flat, wout_ref[...],
                           preferred_element_type=jnp.float32) + bout_ref[...]
        x_res = x_ref[0] + attn_out                             # Residual(Attention)

        # --- FeedForward (pre-norm) + residual ---
        xn2 = _layernorm_padded(x_res, g_ff_ref[...], c_real)
        h1 = jnp.dot(xn2.astype(jnp.bfloat16), w1_ref[...],
                     preferred_element_type=jnp.float32) + b1_ref[...]
        h1 = _gelu_exact(h1)
        y = jnp.dot(h1.astype(jnp.bfloat16), w2_ref[...],
                    preferred_element_type=jnp.float32) + b2_ref[...]
        o_ref[0] = x_res + y                                    # Residual(FeedForward)


# ------------------------------ wrappers ----------------------------------

def _const_spec(shape, single_buffer):
    """Full-array BlockSpec with a constant block index (weights / biases)."""
    zero = (0,) * len(shape)
    if single_buffer:
        # Constant-index blocks never change: single-buffer them so the
        # pipeline does not double their VMEM footprint.
        return pl.BlockSpec(shape, lambda *_: zero, pipeline_mode=pl.Buffered(1))
    return pl.BlockSpec(shape, lambda *_: zero)


def _qkv_call(xp, p, heads, c_real, q_tile, single_buffer):
    b, n, c_pad = xp.shape
    d_pad = p["wqkv"].shape[-1] // (3 * heads)
    kernel = functools.partial(_qkv_kernel, heads=heads, d_pad=d_pad, c_real=c_real)
    qkv_shape = jax.ShapeDtypeStruct((b, heads, n, d_pad), jnp.bfloat16)
    out_spec = pl.BlockSpec((1, heads, q_tile, d_pad), lambda bi, qi: (bi, 0, qi, 0))
    return pl.pallas_call(
        kernel,
        out_shape=(qkv_shape, qkv_shape, qkv_shape),
        grid=(b, n // q_tile),
        in_specs=[
            pl.BlockSpec((1, q_tile, c_pad), lambda bi, qi: (bi, qi, 0)),
            _const_spec(p["g_att"].shape, single_buffer),
            _const_spec(p["wqkv"].shape, single_buffer),
        ],
        out_specs=(out_spec, out_spec, out_spec),
        compiler_params=pltpu.CompilerParams(
            dimension_semantics=("parallel", "parallel"),
            vmem_limit_bytes=_VMEM_LIMIT),
    )(xp, p["g_att"], p["wqkv"])


def _attn_ff_call(xp, q, k, v, p, heads, c_real, q_tile, kv_tile, single_buffer):
    b, n, c_pad = xp.shape
    d_pad = q.shape[-1]
    kernel = functools.partial(_attn_ff_kernel, heads=heads, c_real=c_real)
    return pl.pallas_call(
        kernel,
        out_shape=jax.ShapeDtypeStruct((b, n, c_pad), jnp.float32),
        grid=(b, n // q_tile, n // kv_tile),
        in_specs=[
            pl.BlockSpec((1, q_tile, c_pad), lambda bi, qi, ki: (bi, qi, 0)),          # x (residual)
            pl.BlockSpec((1, heads, q_tile, d_pad), lambda bi, qi, ki: (bi, 0, qi, 0)),
            pl.BlockSpec((1, heads, kv_tile, d_pad), lambda bi, qi, ki: (bi, 0, ki, 0)),
            pl.BlockSpec((1, heads, kv_tile, d_pad), lambda bi, qi, ki: (bi, 0, ki, 0)),
            _const_spec(p["wout"].shape, single_buffer),
            _const_spec(p["bout"].shape, single_buffer),
            _const_spec(p["g_ff"].shape, single_buffer),
            _const_spec(p["w1"].shape, single_buffer),
            _const_spec(p["b1"].shape, single_buffer),
            _const_spec(p["w2"].shape, single_buffer),
            _const_spec(p["b2"].shape, single_buffer),
        ],
        out_specs=pl.BlockSpec((1, q_tile, c_pad), lambda bi, qi, ki: (bi, qi, 0)),
        scratch_shapes=[
            pltpu.VMEM((heads, q_tile, 1), jnp.float32),       # running max
            pltpu.VMEM((heads, q_tile, 1), jnp.float32),       # running sum
            pltpu.VMEM((heads, q_tile, d_pad), jnp.float32),   # running accumulator
        ],
        compiler_params=pltpu.CompilerParams(
            dimension_semantics=("parallel", "parallel", "arbitrary"),
            vmem_limit_bytes=_VMEM_LIMIT),
    )(xp, q, k, v, p["wout"], p["bout"], p["g_ff"],
      p["w1"], p["b1"], p["w2"], p["b2"])


@functools.partial(jax.jit, static_argnums=(2, 3))
def _forward_impl(x_bcn, prepped, heads, single_buffer_weights):
    b, c_real, n = x_bcn.shape
    c_pad = prepped[0]["g_att"].shape[1]
    # channel-last + zero-pad channels to a lane-dense multiple of 128
    xt = jnp.transpose(x_bcn, (0, 2, 1))                       # (B, N, C)
    xp = jnp.zeros((b, n, c_pad), jnp.float32).at[:, :, :c_real].set(xt)
    q_tile = _pick_tile(n, 128)
    kv_tile = _pick_tile(n, 256)
    for p in prepped:                                          # depth layers
        q, k, v = _qkv_call(xp, p, heads, c_real, q_tile, single_buffer_weights)
        xp = _attn_ff_call(xp, q, k, v, p, heads, c_real, q_tile, kv_tile,
                           single_buffer_weights)
    return jnp.transpose(xp[:, :, :c_real], (0, 2, 1))         # back to (B, C, N)


def transformer_forward(x_bcn, prepped, heads):
    """x_bcn: (B, C, N) like the PyTorch module. Returns (B, C, N)."""
    try:
        return jax.block_until_ready(
            _forward_impl(x_bcn, prepped, heads, True))
    except Exception:
        # Portability guard: if this jax build rejects pl.Buffered(1) on the
        # constant-index weight blocks, fall back to default double-buffering
        # (identical numerics, just a larger weight VMEM footprint).
        return jax.block_until_ready(
            _forward_impl(x_bcn, prepped, heads, False))


# ----------------------- parameter init / host prep -----------------------

def init_params(key, dim, depth):
    """Parameters in plain math layout (matching the PyTorch module)."""
    inner = 4 * dim
    params = []
    for _ in range(depth):
        key, *ks = jax.random.split(key, 10)
        params.append({
            "g_att": jnp.ones((1, dim), jnp.float32)
                     + 0.1 * jax.random.normal(ks[0], (1, dim), jnp.float32),
            "g_ff":  jnp.ones((1, dim), jnp.float32)
                     + 0.1 * jax.random.normal(ks[1], (1, dim), jnp.float32),
            # 1x1 conv weights stored pre-transposed as (in, out)
            "wqkv_t": 0.1 * jax.random.normal(ks[2], (dim, 3 * dim), jnp.float32),
            "wout_t": 0.1 * jax.random.normal(ks[3], (dim, dim), jnp.float32),
            "bout":   0.1 * jax.random.normal(ks[4], (1, dim), jnp.float32),
            "w1_t":   0.1 * jax.random.normal(ks[5], (dim, inner), jnp.float32),
            "b1":     0.1 * jax.random.normal(ks[6], (1, inner), jnp.float32),
            "w2_t":   0.1 * jax.random.normal(ks[7], (inner, dim), jnp.float32),
            "b2":     0.1 * jax.random.normal(ks[8], (1, dim), jnp.float32),
        })
    return params


def prepare_params(params, dim, heads):
    """One-time host-side weight prep: pad channels to a multiple of 128, fold
    the 1/sqrt(dim_head) scale into the Q projection, lay QKV columns /
    out-proj rows out head-major (so kernels only take static lane slices),
    and pre-cast the matmul weights to bf16 (biases / gains stay f32)."""
    d_real = dim // heads
    c_pad = _round_up(dim, _LANE)
    d_pad = c_pad // heads if c_pad % heads == 0 else d_real
    inner = 4 * dim
    inner_pad = _round_up(inner, _LANE)
    scale = jnp.float32(d_real ** -0.5)

    def pad2(a, rows, cols):
        out = jnp.zeros((rows, cols), jnp.float32)
        return out.at[:a.shape[0], :a.shape[1]].set(a)

    prepped = []
    for p in params:
        # QKV columns ordered [q_h0..q_hH-1, k_h0.., v_h0..], each padded to Dh.
        wqkv = jnp.zeros((c_pad, 3 * heads * d_pad), jnp.float32)
        for s in range(3):
            for h in range(heads):
                blk = p["wqkv_t"][:, s * dim + h * d_real: s * dim + (h + 1) * d_real]
                if s == 0:
                    blk = blk * scale
                col = (s * heads + h) * d_pad
                wqkv = wqkv.at[:dim, col:col + d_real].set(blk)
        # Out-proj rows head-major with per-head padding to Dh (matches the
        # in-kernel lane concatenation of head outputs).
        wout = jnp.zeros((heads * d_pad, c_pad), jnp.float32)
        for h in range(heads):
            wout = wout.at[h * d_pad:h * d_pad + d_real, :dim].set(
                p["wout_t"][h * d_real:(h + 1) * d_real, :])
        prepped.append({
            "g_att": pad2(p["g_att"], 1, c_pad),
            "wqkv": wqkv.astype(jnp.bfloat16),
            "wout": wout.astype(jnp.bfloat16),
            "bout": pad2(p["bout"], 1, c_pad),
            "g_ff": pad2(p["g_ff"], 1, c_pad),
            "w1": pad2(p["w1_t"], c_pad, inner_pad).astype(jnp.bfloat16),
            "b1": pad2(p["b1"], 1, inner_pad),
            "w2": pad2(p["w2_t"], inner_pad, c_pad).astype(jnp.bfloat16),
            "b2": pad2(p["b2"], 1, c_pad),
        })
    return prepped


# --------------------------- pure-JAX reference ---------------------------

def reference_forward(x_bcn, params, heads):
    b, c, n = x_bcn.shape
    d = c // heads
    scale = d ** -0.5
    xt = jnp.transpose(x_bcn, (0, 2, 1))                       # (B, N, C)

    def ln(x, g):
        mean = jnp.mean(x, axis=-1, keepdims=True)
        var = jnp.mean((x - mean) ** 2, axis=-1, keepdims=True)
        return (x - mean) * jax.lax.rsqrt(var + 1e-5) * g

    for p in params:
        xn = ln(xt, p["g_att"])
        qkv = xn @ p["wqkv_t"]
        q, k, v = qkv[..., :c], qkv[..., c:2 * c], qkv[..., 2 * c:]
        q = q.reshape(b, n, heads, d) * scale
        k = k.reshape(b, n, heads, d)
        v = v.reshape(b, n, heads, d)
        sim = jnp.einsum('bihd,bjhd->bhij', q, k)
        attn = jax.nn.softmax(sim, axis=-1)
        out = jnp.einsum('bhij,bjhd->bihd', attn, v).reshape(b, n, c)
        xt = xt + (out @ p["wout_t"] + p["bout"])
        xn2 = ln(xt, p["g_ff"])
        h1 = xn2 @ p["w1_t"] + p["b1"]
        h1 = 0.5 * h1 * (1.0 + jax.lax.erf(h1 * 0.7071067811865476))
        xt = xt + (h1 @ p["w2_t"] + p["b2"])
    return jnp.transpose(xt, (0, 2, 1))


# --------------------------------- main -----------------------------------

if __name__ == "__main__":
    B, DIM, N, HEADS, DEPTH = 2, 32, 8, 4, 1

    key = jax.random.PRNGKey(0)
    kx, kp = jax.random.split(key)
    x = jax.random.normal(kx, (B, DIM, N), jnp.float32)   # PyTorch layout (b, c, n)
    params = init_params(kp, DIM, DEPTH)
    prepped = prepare_params(params, DIM, HEADS)

    out = transformer_forward(x, prepped, HEADS)
    out = jax.block_until_ready(out)

    ref = reference_forward(x, params, HEADS)
    assert out.shape == (B, DIM, N)
    max_err = float(jnp.max(jnp.abs(out - ref)))
    # bf16 matmul inputs + approx reciprocal vs. the pure-f32 reference.
    assert jnp.allclose(out, ref, atol=5e-2, rtol=5e-2), \
        f"mismatch vs reference (max abs err {max_err})"

    print("KERNEL_OK")
</pallas_src>

<mosaic_0001>
module attributes {stable_mosaic.version = 11 : i64} {
  func.func @_attn_ff_kernel(%arg0: i32, %arg1: i32, %arg2: i32, %arg3: memref<1x8x128xf32, #tpu.memory_space<vmem>>, %arg4: memref<1x4x8x32xbf16, #tpu.memory_space<vmem>>, %arg5: memref<1x4x8x32xbf16, #tpu.memory_space<vmem>>, %arg6: memref<1x4x8x32xbf16, #tpu.memory_space<vmem>>, %arg7: memref<128x128xbf16, #tpu.memory_space<vmem>>, %arg8: memref<1x128xf32, #tpu.memory_space<vmem>>, %arg9: memref<1x128xf32, #tpu.memory_space<vmem>>, %arg10: memref<128x128xbf16, #tpu.memory_space<vmem>>, %arg11: memref<1x128xf32, #tpu.memory_space<vmem>>, %arg12: memref<128x128xbf16, #tpu.memory_space<vmem>>, %arg13: memref<1x128xf32, #tpu.memory_space<vmem>>, %arg14: memref<1x8x128xf32, #tpu.memory_space<vmem>>, %arg15: memref<4x8x1xf32, #tpu.memory_space<vmem>>, %arg16: memref<4x8x1xf32, #tpu.memory_space<vmem>>, %arg17: memref<4x8x32xf32, #tpu.memory_space<vmem>>) attributes {dimension_semantics = [#tpu.dimension_semantics<parallel>, #tpu.dimension_semantics<parallel>, #tpu.dimension_semantics<arbitrary>], iteration_bounds = array<i64: 2, 1, 1>, scalar_prefetch = 0 : i64, scratch_operands = 3 : i64, tpu.core_type = #tpu.core_type<tc>, window_params = [{transform_indices = @transform_0, window_bounds = array<i64: 1, 8, 128>}, {transform_indices = @transform_1, window_bounds = array<i64: 1, 4, 8, 32>}, {transform_indices = @transform_2, window_bounds = array<i64: 1, 4, 8, 32>}, {transform_indices = @transform_3, window_bounds = array<i64: 1, 4, 8, 32>}, {pipeline_mode = #tpu.pipeline_mode<synchronous>, transform_indices = @transform_4, window_bounds = array<i64: 128, 128>}, {pipeline_mode = #tpu.pipeline_mode<synchronous>, transform_indices = @transform_5, window_bounds = array<i64: 1, 128>}, {pipeline_mode = #tpu.pipeline_mode<synchronous>, transform_indices = @transform_6, window_bounds = array<i64: 1, 128>}, {pipeline_mode = #tpu.pipeline_mode<synchronous>, transform_indices = @transform_7, window_bounds = array<i64: 128, 128>}, {pipeline_mode = #tpu.pipeline_mode<synchronous>, transform_indices = @transform_8, window_bounds = array<i64: 1, 128>}, {pipeline_mode = #tpu.pipeline_mode<synchronous>, transform_indices = @transform_9, window_bounds = array<i64: 128, 128>}, {pipeline_mode = #tpu.pipeline_mode<synchronous>, transform_indices = @transform_10, window_bounds = array<i64: 1, 128>}, {transform_indices = @transform_11, window_bounds = array<i64: 1, 8, 128>}]} {
    %c0_i32 = arith.constant 0 : i32
    %0 = arith.cmpi eq, %arg2, %c0_i32 : i32
    %1 = arith.extui %0 : i1 to i32
    %c0_i32_0 = arith.constant 0 : i32
    %2 = arith.cmpi ne, %1, %c0_i32_0 : i32
    scf.if %2 {
      %cst_35 = arith.constant 0xFF800000 : f32
      %36 = vector.broadcast %cst_35 : f32 to vector<4x8x1xf32>
      %c0_36 = arith.constant 0 : index
      %c0_37 = arith.constant 0 : index
      %c0_38 = arith.constant 0 : index
      %37 = vector.load %arg15[%c0_36, %c0_37, %c0_38] : memref<4x8x1xf32, #tpu.memory_space<vmem>>, vector<4x8x1xf32>
      tpu.vector_store %arg15[%c0_36, %c0_37, %c0_38], %36 {strides = array<i32>} : memref<4x8x1xf32, #tpu.memory_space<vmem>>, vector<4x8x1xf32>,
      %cst_39 = arith.constant 0.000000e+00 : f32
      %38 = vector.broadcast %cst_39 : f32 to vector<4x8x1xf32>
      %c0_40 = arith.constant 0 : index
      %c0_41 = arith.constant 0 : index
      %c0_42 = arith.constant 0 : index
      %39 = vector.load %arg16[%c0_40, %c0_41, %c0_42] : memref<4x8x1xf32, #tpu.memory_space<vmem>>, vector<4x8x1xf32>
      tpu.vector_store %arg16[%c0_40, %c0_41, %c0_42], %38 {strides = array<i32>} : memref<4x8x1xf32, #tpu.memory_space<vmem>>, vector<4x8x1xf32>,
      %cst_43 = arith.constant 0.000000e+00 : f32
      %40 = vector.broadcast %cst_43 : f32 to vector<4x8x32xf32>
      %c0_44 = arith.constant 0 : index
      %c0_45 = arith.constant 0 : index
      %c0_46 = arith.constant 0 : index
      %41 = vector.load %arg17[%c0_44, %c0_45, %c0_46] : memref<4x8x32xf32, #tpu.memory_space<vmem>>, vector<4x8x32xf32>
      tpu.vector_store %arg17[%c0_44, %c0_45, %c0_46], %40 {strides = array<i32>} : memref<4x8x32xf32, #tpu.memory_space<vmem>>, vector<4x8x32xf32>,
    } else {
    }
    %c0 = arith.constant 0 : index
    %c0_1 = arith.constant 0 : index
    %c0_2 = arith.constant 0 : index
    %c0_3 = arith.constant 0 : index
    %3 = vector.load %arg4[%c0, %c0_1, %c0_2, %c0_3] : memref<1x4x8x32xbf16, #tpu.memory_space<vmem>>, vector<1x4x8x32xbf16>
    %4 = vector.shape_cast %3 : vector<1x4x8x32xbf16> to vector<4x8x32xbf16>
    %c0_4 = arith.constant 0 : index
    %c0_5 = arith.constant 0 : index
    %c0_6 = arith.constant 0 : index
    %c0_7 = arith.constant 0 : index
    %5 = vector.load %arg5[%c0_4, %c0_5, %c0_6, %c0_7] : memref<1x4x8x32xbf16, #tpu.memory_space<vmem>>, vector<1x4x8x32xbf16>
    %6 = vector.shape_cast %5 : vector<1x4x8x32xbf16> to vector<4x8x32xbf16>
    %c0_8 = arith.constant 0 : index
    %c0_9 = arith.constant 0 : index
    %c0_10 = arith.constant 0 : index
    %c0_11 = arith.constant 0 : index
    %7 = vector.load %arg6[%c0_8, %c0_9, %c0_10, %c0_11] : memref<1x4x8x32xbf16, #tpu.memory_space<vmem>>, vector<1x4x8x32xbf16>
    %8 = vector.shape_cast %7 : vector<1x4x8x32xbf16> to vector<4x8x32xbf16>
    "tpu.trace_start"() <{level = 10 : i32, message = "hqd,hkd->hqk"}> : () -> ()
    %cst = arith.constant dense<0.000000e+00> : vector<4x8x8xf32>
    %9 = tpu.matmul %4, %6, %cst {dimension_numbers = #tpu.dot_dimension_numbers<[2], [2], [1], [1], [0, 0, 0, 1, 1, 1], [0], [0]>} : vector<4x8x32xbf16>, vector<4x8x32xbf16>, vector<4x8x8xf32> -> vector<4x8x8xf32>
    "tpu.trace_stop"() : () -> ()
    %c0_12 = arith.constant 0 : index
    %c0_13 = arith.constant 0 : index
    %c0_14 = arith.constant 0 : index
    %10 = vector.load %arg15[%c0_12, %c0_13, %c0_14] : memref<4x8x1xf32, #tpu.memory_space<vmem>>, vector<4x8x1xf32>
    %cst_15 = arith.constant dense<0xFF800000> : vector<4x8xf32>
    %11 = vector.multi_reduction <maximumf>, %9, %cst_15 [2] : vector<4x8x8xf32> to vector<4x8xf32>
    %12 = vector.shape_cast %11 : vector<4x8xf32> to vector<4x8x1xf32>
    %13 = arith.maximumf %10, %12 : vector<4x8x1xf32>
    %14 = arith.subf %10, %13 : vector<4x8x1xf32>
    %15 = math.exp %14 : vector<4x8x1xf32>
    %16 = vector.broadcast %13 : vector<4x8x1xf32> to vector<4x8x8xf32>
    %17 = arith.subf %9, %16 : vector<4x8x8xf32>
    %18 = math.exp %17 : vector<4x8x8xf32>
    %c0_16 = arith.constant 0 : index
    %c0_17 = arith.constant 0 : index
    %c0_18 = arith.constant 0 : index
    %19 = vector.load %arg16[%c0_16, %c0_17, %c0_18] : memref<4x8x1xf32, #tpu.memory_space<vmem>>, vector<4x8x1xf32>
    %20 = arith.mulf %15, %19 : vector<4x8x1xf32>
    %cst_19 = arith.constant dense<0.000000e+00> : vector<4x8xf32>
    %21 = vector.multi_reduction <add>, %18, %cst_19 [2] : vector<4x8x8xf32> to vector<4x8xf32>
    %22 = vector.shape_cast %21 : vector<4x8xf32> to vector<4x8x1xf32>
    %23 = arith.addf %20, %22 : vector<4x8x1xf32>
    %c0_20 = arith.constant 0 : index
    %c0_21 = arith.constant 0 : index
    %c0_22 = arith.constant 0 : index
    %24 = vector.load %arg16[%c0_20, %c0_21, %c0_22] : memref<4x8x1xf32, #tpu.memory_space<vmem>>, vector<4x8x1xf32>
    tpu.vector_store %arg16[%c0_20, %c0_21, %c0_22], %23 {strides = array<i32>} : memref<4x8x1xf32, #tpu.memory_space<vmem>>, vector<4x8x1xf32>,
    %25 = arith.truncf %18 : vector<4x8x8xf32> to vector<4x8x8xbf16>
    "tpu.trace_start"() <{level = 10 : i32, message = "hqk,hkd->hqd"}> : () -> ()
    %cst_23 = arith.constant dense<0.000000e+00> : vector<4x8x32xf32>
    %26 = tpu.matmul %25, %8, %cst_23 {dimension_numbers = #tpu.dot_dimension_numbers<[2], [1], [1], [2], [0, 0, 0, 1, 1, 2], [0], [0]>} : vector<4x8x8xbf16>, vector<4x8x32xbf16>, vector<4x8x32xf32> -> vector<4x8x32xf32>
    "tpu.trace_stop"() : () -> ()
    %c0_24 = arith.constant 0 : index
    %c0_25 = arith.constant 0 : index
    %c0_26 = arith.constant 0 : index
    %27 = vector.load %arg17[%c0_24, %c0_25, %c0_26] : memref<4x8x32xf32, #tpu.memory_space<vmem>>, vector<4x8x32xf32>
    %28 = vector.broadcast %15 : vector<4x8x1xf32> to vector<4x8x32xf32>
    %29 = arith.mulf %28, %27 : vector<4x8x32xf32>
    %30 = arith.addf %29, %26 : vector<4x8x32xf32>
    %c0_27 = arith.constant 0 : index
    %c0_28 = arith.constant 0 : index
    %c0_29 = arith.constant 0 : index
    %31 = vector.load %arg17[%c0_27, %c0_28, %c0_29] : memref<4x8x32xf32, #tpu.memory_space<vmem>>, vector<4x8x32xf32>
    tpu.vector_store %arg17[%c0_27, %c0_28, %c0_29], %30 {strides = array<i32>} : memref<4x8x32xf32, #tpu.memory_space<vmem>>, vector<4x8x32xf32>,
    %c0_30 = arith.constant 0 : index
    %c0_31 = arith.constant 0 : index
    %c0_32 = arith.constant 0 : index
    %32 = vector.load %arg15[%c0_30, %c0_31, %c0_32] : memref<4x8x1xf32, #tpu.memory_space<vmem>>, vector<4x8x1xf32>
    tpu.vector_store %arg15[%c0_30, %c0_31, %c0_32], %13 {strides = array<i32>} : memref<4x8x1xf32, #tpu.memory_space<vmem>>, vector<4x8x1xf32>,
    %c0_i32_33 = arith.constant 0 : i32
    %33 = arith.cmpi eq, %arg2, %c0_i32_33 : i32
    %34 = arith.extui %33 : i1 to i32
    %c0_i32_34 = arith.constant 0 : i32
    %35 = arith.cmpi ne, %34, %c0_i32_34 : i32
    scf.if %35 {
      %c0_35 = arith.constant 0 : index
      %c0_36 = arith.constant 0 : index
      %c0_37 = arith.constant 0 : index
      %36 = vector.load %arg16[%c0_35, %c0_36, %c0_37] : memref<4x8x1xf32, #tpu.memory_space<vmem>>, vector<4x8x1xf32>
      %37 = tpu.reciprocal %36 {approx = true} : vector<4x8x1xf32> -> vector<4x8x1xf32>
      %c0_38 = arith.constant 0 : index
      %c0_39 = arith.constant 0 : index
      %c0_40 = arith.constant 0 : index
      %38 = vector.load %arg17[%c0_38, %c0_39, %c0_40] : memref<4x8x32xf32, #tpu.memory_space<vmem>>, vector<4x8x32xf32>
      %39 = vector.broadcast %37 : vector<4x8x1xf32> to vector<4x8x32xf32>
      %40 = arith.mulf %38, %39 : vector<4x8x32xf32>
      %41 = arith.truncf %40 : vector<4x8x32xf32> to vector<4x8x32xbf16>
      %42 = vector.extract_strided_slice %41 {offsets = [0, 0, 0], sizes = [1, 8, 32], strides = [1, 1, 1]} : vector<4x8x32xbf16> to vector<1x8x32xbf16>
      %43 = vector.shape_cast %42 : vector<1x8x32xbf16> to vector<8x32xbf16>
      %44 = vector.extract_strided_slice %41 {offsets = [1, 0, 0], sizes = [1, 8, 32], strides = [1, 1, 1]} : vector<4x8x32xbf16> to vector<1x8x32xbf16>
      %45 = vector.shape_cast %44 : vector<1x8x32xbf16> to vector<8x32xbf16>
      %46 = vector.extract_strided_slice %41 {offsets = [2, 0, 0], sizes = [1, 8, 32], strides = [1, 1, 1]} : vector<4x8x32xbf16> to vector<1x8x32xbf16>
      %47 = vector.shape_cast %46 : vector<1x8x32xbf16> to vector<8x32xbf16>
      %48 = vector.extract_strided_slice %41 {offsets = [3, 0, 0], sizes = [1, 8, 32], strides = [1, 1, 1]} : vector<4x8x32xbf16> to vector<1x8x32xbf16>
      %49 = vector.shape_cast %48 : vector<1x8x32xbf16> to vector<8x32xbf16>
      %50 = tpu.concatenate %43, %45, %47, %49 in 1 : vector<8x32xbf16>, vector<8x32xbf16>, vector<8x32xbf16>, vector<8x32xbf16> -> vector<8x128xbf16>
      %c0_41 = arith.constant 0 : index
      %c0_42 = arith.constant 0 : index
      %51 = vector.load %arg7[%c0_41, %c0_42] : memref<128x128xbf16, #tpu.memory_space<vmem>>, vector<128x128xbf16>
      %cst_43 = arith.constant dense<0.000000e+00> : vector<8x128xf32>
      %52 = tpu.matmul %50, %51, %cst_43 {dimension_numbers = #tpu.dot_dimension_numbers<[1], [0], [0], [1], [0, 0, 1, 1], [], []>} : vector<8x128xbf16>, vector<128x128xbf16>, vector<8x128xf32> -> vector<8x128xf32>
      %c0_44 = arith.constant 0 : index
      %c0_45 = arith.constant 0 : index
      %53 = vector.load %arg8[%c0_44, %c0_45] : memref<1x128xf32, #tpu.memory_space<vmem>>, vector<1x128xf32>
      %54 = vector.broadcast %53 : vector<1x128xf32> to vector<8x128xf32>
      %55 = arith.addf %52, %54 : vector<8x128xf32>
      %c0_46 = arith.constant 0 : index
      %c0_47 = arith.constant 0 : index
      %c0_48 = arith.constant 0 : index
      %56 = vector.load %arg3[%c0_46, %c0_47, %c0_48] : memref<1x8x128xf32, #tpu.memory_space<vmem>>, vector<1x8x128xf32>
      %57 = vector.shape_cast %56 : vector<1x8x128xf32> to vector<8x128xf32>
      %58 = arith.addf %57, %55 : vector<8x128xf32>
      %c0_49 = arith.constant 0 : index
      %c0_50 = arith.constant 0 : index
      %59 = vector.load %arg9[%c0_49, %c0_50] : memref<1x128xf32, #tpu.memory_space<vmem>>, vector<1x128xf32>
      %cst_51 = arith.constant dense<0.000000e+00> : vector<8xf32>
      %60 = vector.multi_reduction <add>, %58, %cst_51 [1] : vector<8x128xf32> to vector<8xf32>
      %61 = vector.shape_cast %60 : vector<8xf32> to vector<8x1xf32>
      %cst_52 = arith.constant 3.125000e-02 : f32
      %62 = vector.broadcast %cst_52 : f32 to vector<8x1xf32>
      %63 = arith.mulf %61, %62 : vector<8x1xf32>
      %64 = arith.mulf %58, %58 : vector<8x128xf32>
      %cst_53 = arith.constant dense<0.000000e+00> : vector<8xf32>
      %65 = vector.multi_reduction <add>, %64, %cst_53 [1] : vector<8x128xf32> to vector<8xf32>
      %66 = vector.shape_cast %65 : vector<8xf32> to vector<8x1xf32>
      %cst_54 = arith.constant 3.125000e-02 : f32
      %67 = vector.broadcast %cst_54 : f32 to vector<8x1xf32>
      %68 = arith.mulf %66, %67 : vector<8x1xf32>
      %69 = arith.mulf %63, %63 : vector<8x1xf32>
      %70 = arith.subf %68, %69 : vector<8x1xf32>
      %71 = vector.broadcast %63 : vector<8x1xf32> to vector<8x128xf32>
      %72 = arith.subf %58, %71 : vector<8x128xf32>
      %cst_55 = arith.constant 9.99999974E-6 : f32
      %73 = vector.broadcast %cst_55 : f32 to vector<8x1xf32>
      %74 = arith.addf %70, %73 : vector<8x1xf32>
      %75 = math.rsqrt %74 : vector<8x1xf32>
      %76 = vector.broadcast %75 : vector<8x1xf32> to vector<8x128xf32>
      %77 = arith.mulf %72, %76 : vector<8x128xf32>
      %78 = vector.broadcast %59 : vector<1x128xf32> to vector<8x128xf32>
      %79 = arith.mulf %77, %78 : vector<8x128xf32>
      %80 = arith.truncf %79 : vector<8x128xf32> to vector<8x128xbf16>
      %c0_56 = arith.constant 0 : index
      %c0_57 = arith.constant 0 : index
      %81 = vector.load %arg10[%c0_56, %c0_57] : memref<128x128xbf16, #tpu.memory_space<vmem>>, vector<128x128xbf16>
      %cst_58 = arith.constant dense<0.000000e+00> : vector<8x128xf32>
      %82 = tpu.matmul %80, %81, %cst_58 {dimension_numbers = #tpu.dot_dimension_numbers<[1], [0], [0], [1], [0, 0, 1, 1], [], []>} : vector<8x128xbf16>, vector<128x128xbf16>, vector<8x128xf32> -> vector<8x128xf32>
      %c0_59 = arith.constant 0 : index
      %c0_60 = arith.constant 0 : index
      %83 = vector.load %arg11[%c0_59, %c0_60] : memref<1x128xf32, #tpu.memory_space<vmem>>, vector<1x128xf32>
      %84 = vector.broadcast %83 : vector<1x128xf32> to vector<8x128xf32>
      %85 = arith.addf %82, %84 : vector<8x128xf32>
      %cst_61 = arith.constant 5.000000e-01 : f32
      %86 = vector.broadcast %cst_61 : f32 to vector<8x128xf32>
      %87 = arith.mulf %86, %85 : vector<8x128xf32>
      %cst_62 = arith.constant 0.707106769 : f32
      %88 = vector.broadcast %cst_62 : f32 to vector<8x128xf32>
      %89 = arith.mulf %85, %88 : vector<8x128xf32>
      %90 = math.erf %89 : vector<8x128xf32>
      %cst_63 = arith.constant 1.000000e+00 : f32
      %91 = vector.broadcast %cst_63 : f32 to vector<8x128xf32>
      %92 = arith.addf %91, %90 : vector<8x128xf32>
      %93 = arith.mulf %87, %92 : vector<8x128xf32>
      %94 = arith.truncf %93 : vector<8x128xf32> to vector<8x128xbf16>
      %c0_64 = arith.constant 0 : index
      %c0_65 = arith.constant 0 : index
      %95 = vector.load %arg12[%c0_64, %c0_65] : memref<128x128xbf16, #tpu.memory_space<vmem>>, vector<128x128xbf16>
      %cst_66 = arith.constant dense<0.000000e+00> : vector<8x128xf32>
      %96 = tpu.matmul %94, %95, %cst_66 {dimension_numbers = #tpu.dot_dimension_numbers<[1], [0], [0], [1], [0, 0, 1, 1], [], []>} : vector<8x128xbf16>, vector<128x128xbf16>, vector<8x128xf32> -> vector<8x128xf32>
      %c0_67 = arith.constant 0 : index
      %c0_68 = arith.constant 0 : index
      %97 = vector.load %arg13[%c0_67, %c0_68] : memref<1x128xf32, #tpu.memory_space<vmem>>, vector<1x128xf32>
      %98 = vector.broadcast %97 : vector<1x128xf32> to vector<8x128xf32>
      %99 = arith.addf %96, %98 : vector<8x128xf32>
      %100 = arith.addf %58, %99 : vector<8x128xf32>
      %c0_69 = arith.constant 0 : index
      %c0_70 = arith.constant 0 : index
      %c0_71 = arith.constant 0 : index
      %101 = vector.load %arg14[%c0_69, %c0_70, %c0_71] : memref<1x8x128xf32, #tpu.memory_space<vmem>>, vector<1x8x128xf32>
      %102 = vector.shape_cast %101 : vector<1x8x128xf32> to vector<8x128xf32>
      %103 = vector.shape_cast %100 : vector<8x128xf32> to vector<1x8x128xf32>
      tpu.vector_store %arg14[%c0_69, %c0_70, %c0_71], %103 {strides = array<i32>} : memref<1x8x128xf32, #tpu.memory_space<vmem>>, vector<1x8x128xf32>,
    } else {
    }
    return
  }
  func.func @transform_0(%arg0: i32, %arg1: i32, %arg2: i32) -> (i32, i32, i32) {
    %c0_i32 = arith.constant 0 : i32
    %c0_i32_0 = arith.constant 0 : i32
    return %arg0, %arg1, %c0_i32 : i32, i32, i32
  }
  func.func @transform_1(%arg0: i32, %arg1: i32, %arg2: i32) -> (i32, i32, i32, i32) {
    %c0_i32 = arith.constant 0 : i32
    %c0_i32_0 = arith.constant 0 : i32
    %c0_i32_1 = arith.constant 0 : i32
    return %arg0, %c0_i32, %arg1, %c0_i32_0 : i32, i32, i32, i32
  }
  func.func @transform_2(%arg0: i32, %arg1: i32, %arg2: i32) -> (i32, i32, i32, i32) {
    %c0_i32 = arith.constant 0 : i32
    %c0_i32_0 = arith.constant 0 : i32
    %c0_i32_1 = arith.constant 0 : i32
    return %arg0, %c0_i32, %arg2, %c0_i32_0 : i32, i32, i32, i32
  }
  func.func @transform_3(%arg0: i32, %arg1: i32, %arg2: i32) -> (i32, i32, i32, i32) {
    %c0_i32 = arith.constant 0 : i32
    %c0_i32_0 = arith.constant 0 : i32
    %c0_i32_1 = arith.constant 0 : i32
    return %arg0, %c0_i32, %arg2, %c0_i32_0 : i32, i32, i32, i32
  }
  func.func @transform_4(%arg0: i32, %arg1: i32, %arg2: i32) -> (i32, i32) {
    %c0_i32 = arith.constant 0 : i32
    %c0_i32_0 = arith.constant 0 : i32
    %c0_i32_1 = arith.constant 0 : i32
    return %c0_i32, %c0_i32_0 : i32, i32
  }
  func.func @transform_5(%arg0: i32, %arg1: i32, %arg2: i32) -> (i32, i32) {
    %c0_i32 = arith.constant 0 : i32
    %c0_i32_0 = arith.constant 0 : i32
    %c0_i32_1 = arith.constant 0 : i32
    return %c0_i32, %c0_i32_0 : i32, i32
  }
  func.func @transform_6(%arg0: i32, %arg1: i32, %arg2: i32) -> (i32, i32) {
    %c0_i32 = arith.constant 0 : i32
    %c0_i32_0 = arith.constant 0 : i32
    %c0_i32_1 = arith.constant 0 : i32
    return %c0_i32, %c0_i32_0 : i32, i32
  }
  func.func @transform_7(%arg0: i32, %arg1: i32, %arg2: i32) -> (i32, i32) {
    %c0_i32 = arith.constant 0 : i32
    %c0_i32_0 = arith.constant 0 : i32
    %c0_i32_1 = arith.constant 0 : i32
    return %c0_i32, %c0_i32_0 : i32, i32
  }
  func.func @transform_8(%arg0: i32, %arg1: i32, %arg2: i32) -> (i32, i32) {
    %c0_i32 = arith.constant 0 : i32
    %c0_i32_0 = arith.constant 0 : i32
    %c0_i32_1 = arith.constant 0 : i32
    return %c0_i32, %c0_i32_0 : i32, i32
  }
  func.func @transform_9(%arg0: i32, %arg1: i32, %arg2: i32) -> (i32, i32) {
    %c0_i32 = arith.constant 0 : i32
    %c0_i32_0 = arith.constant 0 : i32
    %c0_i32_1 = arith.constant 0 : i32
    return %c0_i32, %c0_i32_0 : i32, i32
  }
  func.func @transform_10(%arg0: i32, %arg1: i32, %arg2: i32) -> (i32, i32) {
    %c0_i32 = arith.constant 0 : i32
    %c0_i32_0 = arith.constant 0 : i32
    %c0_i32_1 = arith.constant 0 : i32
    return %c0_i32, %c0_i32_0 : i32, i32
  }
  func.func @transform_11(%arg0: i32, %arg1: i32, %arg2: i32) -> (i32, i32, i32) {
    %c0_i32 = arith.constant 0 : i32
    %c0_i32_0 = arith.constant 0 : i32
    return %arg0, %arg1, %c0_i32 : i32, i32, i32
  }
}

module attributes {stable_mosaic.version = 11 : i64} {
  func.func @_qkv_kernel(%arg0: i32, %arg1: i32, %arg2: memref<1x8x128xf32, #tpu.memory_space<vmem>>, %arg3: memref<1x128xf32, #tpu.memory_space<vmem>>, %arg4: memref<128x384xbf16, #tpu.memory_space<vmem>>, %arg5: memref<1x4x8x32xbf16, #tpu.memory_space<vmem>>, %arg6: memref<1x4x8x32xbf16, #tpu.memory_space<vmem>>, %arg7: memref<1x4x8x32xbf16, #tpu.memory_space<vmem>>) attributes {dimension_semantics = [#tpu.dimension_semantics<parallel>, #tpu.dimension_semantics<parallel>], iteration_bounds = array<i64: 2, 1>, scalar_prefetch = 0 : i64, scratch_operands = 0 : i64, tpu.core_type = #tpu.core_type<tc>, window_params = [{transform_indices = @transform_0, window_bounds = array<i64: 1, 8, 128>}, {pipeline_mode = #tpu.pipeline_mode<synchronous>, transform_indices = @transform_1, window_bounds = array<i64: 1, 128>}, {pipeline_mode = #tpu.pipeline_mode<synchronous>, transform_indices = @transform_2, window_bounds = array<i64: 128, 384>}, {transform_indices = @transform_3, window_bounds = array<i64: 1, 4, 8, 32>}, {transform_indices = @transform_4, window_bounds = array<i64: 1, 4, 8, 32>}, {transform_indices = @transform_5, window_bounds = array<i64: 1, 4, 8, 32>}]} {
    %c0 = arith.constant 0 : index
    %c0_0 = arith.constant 0 : index
    %c0_1 = arith.constant 0 : index
    %0 = vector.load %arg2[%c0, %c0_0, %c0_1] : memref<1x8x128xf32, #tpu.memory_space<vmem>>, vector<1x8x128xf32>
    %1 = vector.shape_cast %0 : vector<1x8x128xf32> to vector<8x128xf32>
    %c0_2 = arith.constant 0 : index
    %c0_3 = arith.constant 0 : index
    %2 = vector.load %arg3[%c0_2, %c0_3] : memref<1x128xf32, #tpu.memory_space<vmem>>, vector<1x128xf32>
    %cst = arith.constant dense<0.000000e+00> : vector<8xf32>
    %3 = vector.multi_reduction <add>, %1, %cst [1] : vector<8x128xf32> to vector<8xf32>
    %4 = vector.shape_cast %3 : vector<8xf32> to vector<8x1xf32>
    %cst_4 = arith.constant 3.125000e-02 : f32
    %5 = vector.broadcast %cst_4 : f32 to vector<8x1xf32>
    %6 = arith.mulf %4, %5 : vector<8x1xf32>
    %7 = arith.mulf %1, %1 : vector<8x128xf32>
    %cst_5 = arith.constant dense<0.000000e+00> : vector<8xf32>
    %8 = vector.multi_reduction <add>, %7, %cst_5 [1] : vector<8x128xf32> to vector<8xf32>
    %9 = vector.shape_cast %8 : vector<8xf32> to vector<8x1xf32>
    %cst_6 = arith.constant 3.125000e-02 : f32
    %10 = vector.broadcast %cst_6 : f32 to vector<8x1xf32>
    %11 = arith.mulf %9, %10 : vector<8x1xf32>
    %12 = arith.mulf %6, %6 : vector<8x1xf32>
    %13 = arith.subf %11, %12 : vector<8x1xf32>
    %14 = vector.broadcast %6 : vector<8x1xf32> to vector<8x128xf32>
    %15 = arith.subf %1, %14 : vector<8x128xf32>
    %cst_7 = arith.constant 9.99999974E-6 : f32
    %16 = vector.broadcast %cst_7 : f32 to vector<8x1xf32>
    %17 = arith.addf %13, %16 : vector<8x1xf32>
    %18 = math.rsqrt %17 : vector<8x1xf32>
    %19 = vector.broadcast %18 : vector<8x1xf32> to vector<8x128xf32>
    %20 = arith.mulf %15, %19 : vector<8x128xf32>
    %21 = vector.broadcast %2 : vector<1x128xf32> to vector<8x128xf32>
    %22 = arith.mulf %20, %21 : vector<8x128xf32>
    %23 = arith.truncf %22 : vector<8x128xf32> to vector<8x128xbf16>
    %c0_8 = arith.constant 0 : index
    %c0_9 = arith.constant 0 : index
    %24 = vector.load %arg4[%c0_8, %c0_9] : memref<128x384xbf16, #tpu.memory_space<vmem>>, vector<128x384xbf16>
    %cst_10 = arith.constant dense<0.000000e+00> : vector<8x384xf32>
    %25 = tpu.matmul %23, %24, %cst_10 {dimension_numbers = #tpu.dot_dimension_numbers<[1], [0], [0], [1], [0, 0, 1, 1], [], []>} : vector<8x128xbf16>, vector<128x384xbf16>, vector<8x384xf32> -> vector<8x384xf32>
    %26 = arith.truncf %25 : vector<8x384xf32> to vector<8x384xbf16>
    %27 = vector.extract_strided_slice %26 {offsets = [0, 0], sizes = [8, 32], strides = [1, 1]} : vector<8x384xbf16> to vector<8x32xbf16>
    %c0_11 = arith.constant 0 : index
    %c0_12 = arith.constant 0 : index
    %c0_13 = arith.constant 0 : index
    %c0_14 = arith.constant 0 : index
    %28 = vector.load %arg5[%c0_11, %c0_12, %c0_13, %c0_14] : memref<1x4x8x32xbf16, #tpu.memory_space<vmem>>, vector<1x1x8x32xbf16>
    %29 = vector.shape_cast %28 : vector<1x1x8x32xbf16> to vector<8x32xbf16>
    %30 = vector.shape_cast %27 : vector<8x32xbf16> to vector<1x1x8x32xbf16>
    tpu.vector_store %arg5[%c0_11, %c0_12, %c0_13, %c0_14], %30 {strides = array<i32>} : memref<1x4x8x32xbf16, #tpu.memory_space<vmem>>, vector<1x1x8x32xbf16>,
    %31 = vector.extract_strided_slice %26 {offsets = [0, 32], sizes = [8, 32], strides = [1, 1]} : vector<8x384xbf16> to vector<8x32xbf16>
    %c0_15 = arith.constant 0 : index
    %c1 = arith.constant 1 : index
    %c0_16 = arith.constant 0 : index
    %c0_17 = arith.constant 0 : index
    %32 = vector.load %arg5[%c0_15, %c1, %c0_16, %c0_17] : memref<1x4x8x32xbf16, #tpu.memory_space<vmem>>, vector<1x1x8x32xbf16>
    %33 = vector.shape_cast %32 : vector<1x1x8x32xbf16> to vector<8x32xbf16>
    %34 = vector.shape_cast %31 : vector<8x32xbf16> to vector<1x1x8x32xbf16>
    tpu.vector_store %arg5[%c0_15, %c1, %c0_16, %c0_17], %34 {strides = array<i32>} : memref<1x4x8x32xbf16, #tpu.memory_space<vmem>>, vector<1x1x8x32xbf16>,
    %35 = vector.extract_strided_slice %26 {offsets = [0, 64], sizes = [8, 32], strides = [1, 1]} : vector<8x384xbf16> to vector<8x32xbf16>
    %c0_18 = arith.constant 0 : index
    %c2 = arith.constant 2 : index
    %c0_19 = arith.constant 0 : index
    %c0_20 = arith.constant 0 : index
    %36 = vector.load %arg5[%c0_18, %c2, %c0_19, %c0_20] : memref<1x4x8x32xbf16, #tpu.memory_space<vmem>>, vector<1x1x8x32xbf16>
    %37 = vector.shape_cast %36 : vector<1x1x8x32xbf16> to vector<8x32xbf16>
    %38 = vector.shape_cast %35 : vector<8x32xbf16> to vector<1x1x8x32xbf16>
    tpu.vector_store %arg5[%c0_18, %c2, %c0_19, %c0_20], %38 {strides = array<i32>} : memref<1x4x8x32xbf16, #tpu.memory_space<vmem>>, vector<1x1x8x32xbf16>,
    %39 = vector.extract_strided_slice %26 {offsets = [0, 96], sizes = [8, 32], strides = [1, 1]} : vector<8x384xbf16> to vector<8x32xbf16>
    %c0_21 = arith.constant 0 : index
    %c3 = arith.constant 3 : index
    %c0_22 = arith.constant 0 : index
    %c0_23 = arith.constant 0 : index
    %40 = vector.load %arg5[%c0_21, %c3, %c0_22, %c0_23] : memref<1x4x8x32xbf16, #tpu.memory_space<vmem>>, vector<1x1x8x32xbf16>
    %41 = vector.shape_cast %40 : vector<1x1x8x32xbf16> to vector<8x32xbf16>
    %42 = vector.shape_cast %39 : vector<8x32xbf16> to vector<1x1x8x32xbf16>
    tpu.vector_store %arg5[%c0_21, %c3, %c0_22, %c0_23], %42 {strides = array<i32>} : memref<1x4x8x32xbf16, #tpu.memory_space<vmem>>, vector<1x1x8x32xbf16>,
    %43 = vector.extract_strided_slice %26 {offsets = [0, 128], sizes = [8, 32], strides = [1, 1]} : vector<8x384xbf16> to vector<8x32xbf16>
    %c0_24 = arith.constant 0 : index
    %c0_25 = arith.constant 0 : index
    %c0_26 = arith.constant 0 : index
    %c0_27 = arith.constant 0 : index
    %44 = vector.load %arg6[%c0_24, %c0_25, %c0_26, %c0_27] : memref<1x4x8x32xbf16, #tpu.memory_space<vmem>>, vector<1x1x8x32xbf16>
    %45 = vector.shape_cast %44 : vector<1x1x8x32xbf16> to vector<8x32xbf16>
    %46 = vector.shape_cast %43 : vector<8x32xbf16> to vector<1x1x8x32xbf16>
    tpu.vector_store %arg6[%c0_24, %c0_25, %c0_26, %c0_27], %46 {strides = array<i32>} : memref<1x4x8x32xbf16, #tpu.memory_space<vmem>>, vector<1x1x8x32xbf16>,
    %47 = vector.extract_strided_slice %26 {offsets = [0, 160], sizes = [8, 32], strides = [1, 1]} : vector<8x384xbf16> to vector<8x32xbf16>
    %c0_28 = arith.constant 0 : index
    %c1_29 = arith.constant 1 : index
    %c0_30 = arith.constant 0 : index
    %c0_31 = arith.constant 0 : index
    %48 = vector.load %arg6[%c0_28, %c1_29, %c0_30, %c0_31] : memref<1x4x8x32xbf16, #tpu.memory_space<vmem>>, vector<1x1x8x32xbf16>
    %49 = vector.shape_cast %48 : vector<1x1x8x32xbf16> to vector<8x32xbf16>
    %50 = vector.shape_cast %47 : vector<8x32xbf16> to vector<1x1x8x32xbf16>
    tpu.vector_store %arg6[%c0_28, %c1_29, %c0_30, %c0_31], %50 {strides = array<i32>} : memref<1x4x8x32xbf16, #tpu.memory_space<vmem>>, vector<1x1x8x32xbf16>,
    %51 = vector.extract_strided_slice %26 {offsets = [0, 192], sizes = [8, 32], strides = [1, 1]} : vector<8x384xbf16> to vector<8x32xbf16>
    %c0_32 = arith.constant 0 : index
    %c2_33 = arith.constant 2 : index
    %c0_34 = arith.constant 0 : index
    %c0_35 = arith.constant 0 : index
    %52 = vector.load %arg6[%c0_32, %c2_33, %c0_34, %c0_35] : memref<1x4x8x32xbf16, #tpu.memory_space<vmem>>, vector<1x1x8x32xbf16>
    %53 = vector.shape_cast %52 : vector<1x1x8x32xbf16> to vector<8x32xbf16>
    %54 = vector.shape_cast %51 : vector<8x32xbf16> to vector<1x1x8x32xbf16>
    tpu.vector_store %arg6[%c0_32, %c2_33, %c0_34, %c0_35], %54 {strides = array<i32>} : memref<1x4x8x32xbf16, #tpu.memory_space<vmem>>, vector<1x1x8x32xbf16>,
    %55 = vector.extract_strided_slice %26 {offsets = [0, 224], sizes = [8, 32], strides = [1, 1]} : vector<8x384xbf16> to vector<8x32xbf16>
    %c0_36 = arith.constant 0 : index
    %c3_37 = arith.constant 3 : index
    %c0_38 = arith.constant 0 : index
    %c0_39 = arith.constant 0 : index
    %56 = vector.load %arg6[%c0_36, %c3_37, %c0_38, %c0_39] : memref<1x4x8x32xbf16, #tpu.memory_space<vmem>>, vector<1x1x8x32xbf16>
    %57 = vector.shape_cast %56 : vector<1x1x8x32xbf16> to vector<8x32xbf16>
    %58 = vector.shape_cast %55 : vector<8x32xbf16> to vector<1x1x8x32xbf16>
    tpu.vector_store %arg6[%c0_36, %c3_37, %c0_38, %c0_39], %58 {strides = array<i32>} : memref<1x4x8x32xbf16, #tpu.memory_space<vmem>>, vector<1x1x8x32xbf16>,
    %59 = vector.extract_strided_slice %26 {offsets = [0, 256], sizes = [8, 32], strides = [1, 1]} : vector<8x384xbf16> to vector<8x32xbf16>
    %c0_40 = arith.constant 0 : index
    %c0_41 = arith.constant 0 : index
    %c0_42 = arith.constant 0 : index
    %c0_43 = arith.constant 0 : index
    %60 = vector.load %arg7[%c0_40, %c0_41, %c0_42, %c0_43] : memref<1x4x8x32xbf16, #tpu.memory_space<vmem>>, vector<1x1x8x32xbf16>
    %61 = vector.shape_cast %60 : vector<1x1x8x32xbf16> to vector<8x32xbf16>
    %62 = vector.shape_cast %59 : vector<8x32xbf16> to vector<1x1x8x32xbf16>
    tpu.vector_store %arg7[%c0_40, %c0_41, %c0_42, %c0_43], %62 {strides = array<i32>} : memref<1x4x8x32xbf16, #tpu.memory_space<vmem>>, vector<1x1x8x32xbf16>,
    %63 = vector.extract_strided_slice %26 {offsets = [0, 288], sizes = [8, 32], strides = [1, 1]} : vector<8x384xbf16> to vector<8x32xbf16>
    %c0_44 = arith.constant 0 : index
    %c1_45 = arith.constant 1 : index
    %c0_46 = arith.constant 0 : index
    %c0_47 = arith.constant 0 : index
    %64 = vector.load %arg7[%c0_44, %c1_45, %c0_46, %c0_47] : memref<1x4x8x32xbf16, #tpu.memory_space<vmem>>, vector<1x1x8x32xbf16>
    %65 = vector.shape_cast %64 : vector<1x1x8x32xbf16> to vector<8x32xbf16>
    %66 = vector.shape_cast %63 : vector<8x32xbf16> to vector<1x1x8x32xbf16>
    tpu.vector_store %arg7[%c0_44, %c1_45, %c0_46, %c0_47], %66 {strides = array<i32>} : memref<1x4x8x32xbf16, #tpu.memory_space<vmem>>, vector<1x1x8x32xbf16>,
    %67 = vector.extract_strided_slice %26 {offsets = [0, 320], sizes = [8, 32], strides = [1, 1]} : vector<8x384xbf16> to vector<8x32xbf16>
    %c0_48 = arith.constant 0 : index
    %c2_49 = arith.constant 2 : index
    %c0_50 = arith.constant 0 : index
    %c0_51 = arith.constant 0 : index
    %68 = vector.load %arg7[%c0_48, %c2_49, %c0_50, %c0_51] : memref<1x4x8x32xbf16, #tpu.memory_space<vmem>>, vector<1x1x8x32xbf16>
    %69 = vector.shape_cast %68 : vector<1x1x8x32xbf16> to vector<8x32xbf16>
    %70 = vector.shape_cast %67 : vector<8x32xbf16> to vector<1x1x8x32xbf16>
    tpu.vector_store %arg7[%c0_48, %c2_49, %c0_50, %c0_51], %70 {strides = array<i32>} : memref<1x4x8x32xbf16, #tpu.memory_space<vmem>>, vector<1x1x8x32xbf16>,
    %71 = vector.extract_strided_slice %26 {offsets = [0, 352], sizes = [8, 32], strides = [1, 1]} : vector<8x384xbf16> to vector<8x32xbf16>
    %c0_52 = arith.constant 0 : index
    %c3_53 = arith.constant 3 : index
    %c0_54 = arith.constant 0 : index
    %c0_55 = arith.constant 0 : index
    %72 = vector.load %arg7[%c0_52, %c3_53, %c0_54, %c0_55] : memref<1x4x8x32xbf16, #tpu.memory_space<vmem>>, vector<1x1x8x32xbf16>
    %73 = vector.shape_cast %72 : vector<1x1x8x32xbf16> to vector<8x32xbf16>
    %74 = vector.shape_cast %71 : vector<8x32xbf16> to vector<1x1x8x32xbf16>
    tpu.vector_store %arg7[%c0_52, %c3_53, %c0_54, %c0_55], %74 {strides = array<i32>} : memref<1x4x8x32xbf16, #tpu.memory_space<vmem>>, vector<1x1x8x32xbf16>,
    return
  }
  func.func @transform_0(%arg0: i32, %arg1: i32) -> (i32, i32, i32) {
    %c0_i32 = arith.constant 0 : i32
    %c0_i32_0 = arith.constant 0 : i32
    return %arg0, %arg1, %c0_i32 : i32, i32, i32
  }
  func.func @transform_1(%arg0: i32, %arg1: i32) -> (i32, i32) {
    %c0_i32 = arith.constant 0 : i32
    %c0_i32_0 = arith.constant 0 : i32
    %c0_i32_1 = arith.constant 0 : i32
    return %c0_i32, %c0_i32_0 : i32, i32
  }
  func.func @transform_2(%arg0: i32, %arg1: i32) -> (i32, i32) {
    %c0_i32 = arith.constant 0 : i32
    %c0_i32_0 = arith.constant 0 : i32
    %c0_i32_1 = arith.constant 0 : i32
    return %c0_i32, %c0_i32_0 : i32, i32
  }
  func.func @transform_3(%arg0: i32, %arg1: i32) -> (i32, i32, i32, i32) {
    %c0_i32 = arith.constant 0 : i32
    %c0_i32_0 = arith.constant 0 : i32
    %c0_i32_1 = arith.constant 0 : i32
    return %arg0, %c0_i32, %arg1, %c0_i32_0 : i32, i32, i32, i32
  }
  func.func @transform_4(%arg0: i32, %arg1: i32) -> (i32, i32, i32, i32) {
    %c0_i32 = arith.constant 0 : i32
    %c0_i32_0 = arith.constant 0 : i32
    %c0_i32_1 = arith.constant 0 : i32
    return %arg0, %c0_i32, %arg1, %c0_i32_0 : i32, i32, i32, i32
  }
  func.func @transform_5(%arg0: i32, %arg1: i32) -> (i32, i32, i32, i32) {
    %c0_i32 = arith.constant 0 : i32
    %c0_i32_0 = arith.constant 0 : i32
    %c0_i32_1 = arith.constant 0 : i32
    return %arg0, %c0_i32, %arg1, %c0_i32_0 : i32, i32, i32, i32
  }
}

module attributes {stable_mosaic.version = 11 : i64} {
  func.func @_attn_ff_kernel(%arg0: i32, %arg1: i32, %arg2: i32, %arg3: memref<1x8x128xf32, #tpu.memory_space<vmem>>, %arg4: memref<1x4x8x32xbf16, #tpu.memory_space<vmem>>, %arg5: memref<1x4x8x32xbf16, #tpu.memory_space<vmem>>, %arg6: memref<1x4x8x32xbf16, #tpu.memory_space<vmem>>, %arg7: memref<128x128xbf16, #tpu.memory_space<vmem>>, %arg8: memref<1x128xf32, #tpu.memory_space<vmem>>, %arg9: memref<1x128xf32, #tpu.memory_space<vmem>>, %arg10: memref<128x128xbf16, #tpu.memory_space<vmem>>, %arg11: memref<1x128xf32, #tpu.memory_space<vmem>>, %arg12: memref<128x128xbf16, #tpu.memory_space<vmem>>, %arg13: memref<1x128xf32, #tpu.memory_space<vmem>>, %arg14: memref<1x8x128xf32, #tpu.memory_space<vmem>>, %arg15: memref<4x8x1xf32, #tpu.memory_space<vmem>>, %arg16: memref<4x8x1xf32, #tpu.memory_space<vmem>>, %arg17: memref<4x8x32xf32, #tpu.memory_space<vmem>>) attributes {dimension_semantics = [#tpu.dimension_semantics<parallel>, #tpu.dimension_semantics<parallel>, #tpu.dimension_semantics<arbitrary>], iteration_bounds = array<i64: 2, 1, 1>, scalar_prefetch = 0 : i64, scratch_operands = 3 : i64, tpu.core_type = #tpu.core_type<tc>, window_params = [{transform_indices = @transform_0, window_bounds = array<i64: 1, 8, 128>}, {transform_indices = @transform_1, window_bounds = array<i64: 1, 4, 8, 32>}, {transform_indices = @transform_2, window_bounds = array<i64: 1, 4, 8, 32>}, {transform_indices = @transform_3, window_bounds = array<i64: 1, 4, 8, 32>}, {pipeline_mode = #tpu.pipeline_mode<synchronous>, transform_indices = @transform_4, window_bounds = array<i64: 128, 128>}, {pipeline_mode = #tpu.pipeline_mode<synchronous>, transform_indices = @transform_5, window_bounds = array<i64: 1, 128>}, {pipeline_mode = #tpu.pipeline_mode<synchronous>, transform_indices = @transform_6, window_bounds = array<i64: 1, 128>}, {pipeline_mode = #tpu.pipeline_mode<synchronous>, transform_indices = @transform_7, window_bounds = array<i64: 128, 128>}, {pipeline_mode = #tpu.pipeline_mode<synchronous>, transform_indices = @transform_8, window_bounds = array<i64: 1, 128>}, {pipeline_mode = #tpu.pipeline_mode<synchronous>, transform_indices = @transform_9, window_bounds = array<i64: 128, 128>}, {pipeline_mode = #tpu.pipeline_mode<synchronous>, transform_indices = @transform_10, window_bounds = array<i64: 1, 128>}, {transform_indices = @transform_11, window_bounds = array<i64: 1, 8, 128>}]} {
    %c0_i32 = arith.constant 0 : i32
    %0 = arith.cmpi eq, %arg2, %c0_i32 : i32
    %1 = arith.extui %0 : i1 to i32
    %c0_i32_0 = arith.constant 0 : i32
    %2 = arith.cmpi ne, %1, %c0_i32_0 : i32
    scf.if %2 {
      %cst_35 = arith.constant 0xFF800000 : f32
      %36 = vector.broadcast %cst_35 : f32 to vector<4x8x1xf32>
      %c0_36 = arith.constant 0 : index
      %c0_37 = arith.constant 0 : index
      %c0_38 = arith.constant 0 : index
      %37 = vector.load %arg15[%c0_36, %c0_37, %c0_38] : memref<4x8x1xf32, #tpu.memory_space<vmem>>, vector<4x8x1xf32>
      tpu.vector_store %arg15[%c0_36, %c0_37, %c0_38], %36 {strides = array<i32>} : memref<4x8x1xf32, #tpu.memory_space<vmem>>, vector<4x8x1xf32>,
      %cst_39 = arith.constant 0.000000e+00 : f32
      %38 = vector.broadcast %cst_39 : f32 to vector<4x8x1xf32>
      %c0_40 = arith.constant 0 : index
      %c0_41 = arith.constant 0 : index
      %c0_42 = arith.constant 0 : index
      %39 = vector.load %arg16[%c0_40, %c0_41, %c0_42] : memref<4x8x1xf32, #tpu.memory_space<vmem>>, vector<4x8x1xf32>
      tpu.vector_store %arg16[%c0_40, %c0_41, %c0_42], %38 {strides = array<i32>} : memref<4x8x1xf32, #tpu.memory_space<vmem>>, vector<4x8x1xf32>,
      %cst_43 = arith.constant 0.000000e+00 : f32
      %40 = vector.broadcast %cst_43 : f32 to vector<4x8x32xf32>
      %c0_44 = arith.constant 0 : index
      %c0_45 = arith.constant 0 : index
      %c0_46 = arith.constant 0 : index
      %41 = vector.load %arg17[%c0_44, %c0_45, %c0_46] : memref<4x8x32xf32, #tpu.memory_space<vmem>>, vector<4x8x32xf32>
      tpu.vector_store %arg17[%c0_44, %c0_45, %c0_46], %40 {strides = array<i32>} : memref<4x8x32xf32, #tpu.memory_space<vmem>>, vector<4x8x32xf32>,
    } else {
    }
    %c0 = arith.constant 0 : index
    %c0_1 = arith.constant 0 : index
    %c0_2 = arith.constant 0 : index
    %c0_3 = arith.constant 0 : index
    %3 = vector.load %arg4[%c0, %c0_1, %c0_2, %c0_3] : memref<1x4x8x32xbf16, #tpu.memory_space<vmem>>, vector<1x4x8x32xbf16>
    %4 = vector.shape_cast %3 : vector<1x4x8x32xbf16> to vector<4x8x32xbf16>
    %c0_4 = arith.constant 0 : index
    %c0_5 = arith.constant 0 : index
    %c0_6 = arith.constant 0 : index
    %c0_7 = arith.constant 0 : index
    %5 = vector.load %arg5[%c0_4, %c0_5, %c0_6, %c0_7] : memref<1x4x8x32xbf16, #tpu.memory_space<vmem>>, vector<1x4x8x32xbf16>
    %6 = vector.shape_cast %5 : vector<1x4x8x32xbf16> to vector<4x8x32xbf16>
    %c0_8 = arith.constant 0 : index
    %c0_9 = arith.constant 0 : index
    %c0_10 = arith.constant 0 : index
    %c0_11 = arith.constant 0 : index
    %7 = vector.load %arg6[%c0_8, %c0_9, %c0_10, %c0_11] : memref<1x4x8x32xbf16, #tpu.memory_space<vmem>>, vector<1x4x8x32xbf16>
    %8 = vector.shape_cast %7 : vector<1x4x8x32xbf16> to vector<4x8x32xbf16>
    "tpu.trace_start"() <{level = 10 : i32, message = "hqd,hkd->hqk"}> : () -> ()
    %cst = arith.constant dense<0.000000e+00> : vector<4x8x8xf32>
    %9 = tpu.matmul %4, %6, %cst {dimension_numbers = #tpu.dot_dimension_numbers<[2], [2], [1], [1], [0, 0, 0, 1, 1, 1], [0], [0]>} : vector<4x8x32xbf16>, vector<4x8x32xbf16>, vector<4x8x8xf32> -> vector<4x8x8xf32>
    "tpu.trace_stop"() : () -> ()
    %c0_12 = arith.constant 0 : index
    %c0_13 = arith.constant 0 : index
    %c0_14 = arith.constant 0 : index
    %10 = vector.load %arg15[%c0_12, %c0_13, %c0_14] : memref<4x8x1xf32, #tpu.memory_space<vmem>>, vector<4x8x1xf32>
    %cst_15 = arith.constant dense<0xFF800000> : vector<4x8xf32>
    %11 = vector.multi_reduction <maximumf>, %9, %cst_15 [2] : vector<4x8x8xf32> to vector<4x8xf32>
    %12 = vector.shape_cast %11 : vector<4x8xf32> to vector<4x8x1xf32>
    %13 = arith.maximumf %10, %12 : vector<4x8x1xf32>
    %14 = arith.subf %10, %13 : vector<4x8x1xf32>
    %15 = math.exp %14 : vector<4x8x1xf32>
    %16 = vector.broadcast %13 : vector<4x8x1xf32> to vector<4x8x8xf32>
    %17 = arith.subf %9, %16 : vector<4x8x8xf32>
    %18 = math.exp %17 : vector<4x8x8xf32>
    %c0_16 = arith.constant 0 : index
    %c0_17 = arith.constant 0 : index
    %c0_18 = arith.constant 0 : index
    %19 = vector.load %arg16[%c0_16, %c0_17, %c0_18] : memref<4x8x1xf32, #tpu.memory_space<vmem>>, vector<4x8x1xf32>
    %20 = arith.mulf %15, %19 : vector<4x8x1xf32>
    %cst_19 = arith.constant dense<0.000000e+00> : vector<4x8xf32>
    %21 = vector.multi_reduction <add>, %18, %cst_19 [2] : vector<4x8x8xf32> to vector<4x8xf32>
    %22 = vector.shape_cast %21 : vector<4x8xf32> to vector<4x8x1xf32>
    %23 = arith.addf %20, %22 : vector<4x8x1xf32>
    %c0_20 = arith.constant 0 : index
    %c0_21 = arith.constant 0 : index
    %c0_22 = arith.constant 0 : index
    %24 = vector.load %arg16[%c0_20, %c0_21, %c0_22] : memref<4x8x1xf32, #tpu.memory_space<vmem>>, vector<4x8x1xf32>
    tpu.vector_store %arg16[%c0_20, %c0_21, %c0_22], %23 {strides = array<i32>} : memref<4x8x1xf32, #tpu.memory_space<vmem>>, vector<4x8x1xf32>,
    %25 = arith.truncf %18 : vector<4x8x8xf32> to vector<4x8x8xbf16>
    "tpu.trace_start"() <{level = 10 : i32, message = "hqk,hkd->hqd"}> : () -> ()
    %cst_23 = arith.constant dense<0.000000e+00> : vector<4x8x32xf32>
    %26 = tpu.matmul %25, %8, %cst_23 {dimension_numbers = #tpu.dot_dimension_numbers<[2], [1], [1], [2], [0, 0, 0, 1, 1, 2], [0], [0]>} : vector<4x8x8xbf16>, vector<4x8x32xbf16>, vector<4x8x32xf32> -> vector<4x8x32xf32>
    "tpu.trace_stop"() : () -> ()
    %c0_24 = arith.constant 0 : index
    %c0_25 = arith.constant 0 : index
    %c0_26 = arith.constant 0 : index
    %27 = vector.load %arg17[%c0_24, %c0_25, %c0_26] : memref<4x8x32xf32, #tpu.memory_space<vmem>>, vector<4x8x32xf32>
    %28 = vector.broadcast %15 : vector<4x8x1xf32> to vector<4x8x32xf32>
    %29 = arith.mulf %28, %27 : vector<4x8x32xf32>
    %30 = arith.addf %29, %26 : vector<4x8x32xf32>
    %c0_27 = arith.constant 0 : index
    %c0_28 = arith.constant 0 : index
    %c0_29 = arith.constant 0 : index
    %31 = vector.load %arg17[%c0_27, %c0_28, %c0_29] : memref<4x8x32xf32, #tpu.memory_space<vmem>>, vector<4x8x32xf32>
    tpu.vector_store %arg17[%c0_27, %c0_28, %c0_29], %30 {strides = array<i32>} : memref<4x8x32xf32, #tpu.memory_space<vmem>>, vector<4x8x32xf32>,
    %c0_30 = arith.constant 0 : index
    %c0_31 = arith.constant 0 : index
    %c0_32 = arith.constant 0 : index
    %32 = vector.load %arg15[%c0_30, %c0_31, %c0_32] : memref<4x8x1xf32, #tpu.memory_space<vmem>>, vector<4x8x1xf32>
    tpu.vector_store %arg15[%c0_30, %c0_31, %c0_32], %13 {strides = array<i32>} : memref<4x8x1xf32, #tpu.memory_space<vmem>>, vector<4x8x1xf32>,
    %c0_i32_33 = arith.constant 0 : i32
    %33 = arith.cmpi eq, %arg2, %c0_i32_33 : i32
    %34 = arith.extui %33 : i1 to i32
    %c0_i32_34 = arith.constant 0 : i32
    %35 = arith.cmpi ne, %34, %c0_i32_34 : i32
    scf.if %35 {
      %c0_35 = arith.constant 0 : index
      %c0_36 = arith.constant 0 : index
      %c0_37 = arith.constant 0 : index
      %36 = vector.load %arg16[%c0_35, %c0_36, %c0_37] : memref<4x8x1xf32, #tpu.memory_space<vmem>>, vector<4x8x1xf32>
      %37 = tpu.reciprocal %36 {approx = true} : vector<4x8x1xf32> -> vector<4x8x1xf32>
      %c0_38 = arith.constant 0 : index
      %c0_39 = arith.constant 0 : index
      %c0_40 = arith.constant 0 : index
      %38 = vector.load %arg17[%c0_38, %c0_39, %c0_40] : memref<4x8x32xf32, #tpu.memory_space<vmem>>, vector<4x8x32xf32>
      %39 = vector.broadcast %37 : vector<4x8x1xf32> to vector<4x8x32xf32>
      %40 = arith.mulf %38, %39 : vector<4x8x32xf32>
      %41 = arith.truncf %40 : vector<4x8x32xf32> to vector<4x8x32xbf16>
      %42 = vector.extract_strided_slice %41 {offsets = [0, 0, 0], sizes = [1, 8, 32], strides = [1, 1, 1]} : vector<4x8x32xbf16> to vector<1x8x32xbf16>
      %43 = vector.shape_cast %42 : vector<1x8x32xbf16> to vector<8x32xbf16>
      %44 = vector.extract_strided_slice %41 {offsets = [1, 0, 0], sizes = [1, 8, 32], strides = [1, 1, 1]} : vector<4x8x32xbf16> to vector<1x8x32xbf16>
      %45 = vector.shape_cast %44 : vector<1x8x32xbf16> to vector<8x32xbf16>
      %46 = vector.extract_strided_slice %41 {offsets = [2, 0, 0], sizes = [1, 8, 32], strides = [1, 1, 1]} : vector<4x8x32xbf16> to vector<1x8x32xbf16>
      %47 = vector.shape_cast %46 : vector<1x8x32xbf16> to vector<8x32xbf16>
      %48 = vector.extract_strided_slice %41 {offsets = [3, 0, 0], sizes = [1, 8, 32], strides = [1, 1, 1]} : vector<4x8x32xbf16> to vector<1x8x32xbf16>
      %49 = vector.shape_cast %48 : vector<1x8x32xbf16> to vector<8x32xbf16>
      %50 = tpu.concatenate %43, %45, %47, %49 in 1 : vector<8x32xbf16>, vector<8x32xbf16>, vector<8x32xbf16>, vector<8x32xbf16> -> vector<8x128xbf16>
      %c0_41 = arith.constant 0 : index
      %c0_42 = arith.constant 0 : index
      %51 = vector.load %arg7[%c0_41, %c0_42] : memref<128x128xbf16, #tpu.memory_space<vmem>>, vector<128x128xbf16>
      %cst_43 = arith.constant dense<0.000000e+00> : vector<8x128xf32>
      %52 = tpu.matmul %50, %51, %cst_43 {dimension_numbers = #tpu.dot_dimension_numbers<[1], [0], [0], [1], [0, 0, 1, 1], [], []>} : vector<8x128xbf16>, vector<128x128xbf16>, vector<8x128xf32> -> vector<8x128xf32>
      %c0_44 = arith.constant 0 : index
      %c0_45 = arith.constant 0 : index
      %53 = vector.load %arg8[%c0_44, %c0_45] : memref<1x128xf32, #tpu.memory_space<vmem>>, vector<1x128xf32>
      %54 = vector.broadcast %53 : vector<1x128xf32> to vector<8x128xf32>
      %55 = arith.addf %52, %54 : vector<8x128xf32>
      %c0_46 = arith.constant 0 : index
      %c0_47 = arith.constant 0 : index
      %c0_48 = arith.constant 0 : index
      %56 = vector.load %arg3[%c0_46, %c0_47, %c0_48] : memref<1x8x128xf32, #tpu.memory_space<vmem>>, vector<1x8x128xf32>
      %57 = vector.shape_cast %56 : vector<1x8x128xf32> to vector<8x128xf32>
      %58 = arith.addf %57, %55 : vector<8x128xf32>
      %c0_49 = arith.constant 0 : index
      %c0_50 = arith.constant 0 : index
      %59 = vector.load %arg9[%c0_49, %c0_50] : memref<1x128xf32, #tpu.memory_space<vmem>>, vector<1x128xf32>
      %cst_51 = arith.constant dense<0.000000e+00> : vector<8xf32>
      %60 = vector.multi_reduction <add>, %58, %cst_51 [1] : vector<8x128xf32> to vector<8xf32>
      %61 = vector.shape_cast %60 : vector<8xf32> to vector<8x1xf32>
      %cst_52 = arith.constant 3.125000e-02 : f32
      %62 = vector.broadcast %cst_52 : f32 to vector<8x1xf32>
      %63 = arith.mulf %61, %62 : vector<8x1xf32>
      %64 = arith.mulf %58, %58 : vector<8x128xf32>
      %cst_53 = arith.constant dense<0.000000e+00> : vector<8xf32>
      %65 = vector.multi_reduction <add>, %64, %cst_53 [1] : vector<8x128xf32> to vector<8xf32>
      %66 = vector.shape_cast %65 : vector<8xf32> to vector<8x1xf32>
      %cst_54 = arith.constant 3.125000e-02 : f32
      %67 = vector.broadcast %cst_54 : f32 to vector<8x1xf32>
      %68 = arith.mulf %66, %67 : vector<8x1xf32>
      %69 = arith.mulf %63, %63 : vector<8x1xf32>
      %70 = arith.subf %68, %69 : vector<8x1xf32>
      %71 = vector.broadcast %63 : vector<8x1xf32> to vector<8x128xf32>
      %72 = arith.subf %58, %71 : vector<8x128xf32>
      %cst_55 = arith.constant 9.99999974E-6 : f32
      %73 = vector.broadcast %cst_55 : f32 to vector<8x1xf32>
      %74 = arith.addf %70, %73 : vector<8x1xf32>
      %75 = math.rsqrt %74 : vector<8x1xf32>
      %76 = vector.broadcast %75 : vector<8x1xf32> to vector<8x128xf32>
      %77 = arith.mulf %72, %76 : vector<8x128xf32>
      %78 = vector.broadcast %59 : vector<1x128xf32> to vector<8x128xf32>
      %79 = arith.mulf %77, %78 : vector<8x128xf32>
      %80 = arith.truncf %79 : vector<8x128xf32> to vector<8x128xbf16>
      %c0_56 = arith.constant 0 : index
      %c0_57 = arith.constant 0 : index
      %81 = vector.load %arg10[%c0_56, %c0_57] : memref<128x128xbf16, #tpu.memory_space<vmem>>, vector<128x128xbf16>
      %cst_58 = arith.constant dense<0.000000e+00> : vector<8x128xf32>
      %82 = tpu.matmul %80, %81, %cst_58 {dimension_numbers = #tpu.dot_dimension_numbers<[1], [0], [0], [1], [0, 0, 1, 1], [], []>} : vector<8x128xbf16>, vector<128x128xbf16>, vector<8x128xf32> -> vector<8x128xf32>
      %c0_59 = arith.constant 0 : index
      %c0_60 = arith.constant 0 : index
      %83 = vector.load %arg11[%c0_59, %c0_60] : memref<1x128xf32, #tpu.memory_space<vmem>>, vector<1x128xf32>
      %84 = vector.broadcast %83 : vector<1x128xf32> to vector<8x128xf32>
      %85 = arith.addf %82, %84 : vector<8x128xf32>
      %cst_61 = arith.constant 5.000000e-01 : f32
      %86 = vector.broadcast %cst_61 : f32 to vector<8x128xf32>
      %87 = arith.mulf %86, %85 : vector<8x128xf32>
      %cst_62 = arith.constant 0.707106769 : f32
      %88 = vector.broadcast %cst_62 : f32 to vector<8x128xf32>
      %89 = arith.mulf %85, %88 : vector<8x128xf32>
      %90 = math.erf %89 : vector<8x128xf32>
      %cst_63 = arith.constant 1.000000e+00 : f32
      %91 = vector.broadcast %cst_63 : f32 to vector<8x128xf32>
      %92 = arith.addf %91, %90 : vector<8x128xf32>
      %93 = arith.mulf %87, %92 : vector<8x128xf32>
      %94 = arith.truncf %93 : vector<8x128xf32> to vector<8x128xbf16>
      %c0_64 = arith.constant 0 : index
      %c0_65 = arith.constant 0 : index
      %95 = vector.load %arg12[%c0_64, %c0_65] : memref<128x128xbf16, #tpu.memory_space<vmem>>, vector<128x128xbf16>
      %cst_66 = arith.constant dense<0.000000e+00> : vector<8x128xf32>
      %96 = tpu.matmul %94, %95, %cst_66 {dimension_numbers = #tpu.dot_dimension_numbers<[1], [0], [0], [1], [0, 0, 1, 1], [], []>} : vector<8x128xbf16>, vector<128x128xbf16>, vector<8x128xf32> -> vector<8x128xf32>
      %c0_67 = arith.constant 0 : index
      %c0_68 = arith.constant 0 : index
      %97 = vector.load %arg13[%c0_67, %c0_68] : memref<1x128xf32, #tpu.memory_space<vmem>>, vector<1x128xf32>
      %98 = vector.broadcast %97 : vector<1x128xf32> to vector<8x128xf32>
      %99 = arith.addf %96, %98 : vector<8x128xf32>
      %100 = arith.addf %58, %99 : vector<8x128xf32>
      %c0_69 = arith.constant 0 : index
      %c0_70 = arith.constant 0 : index
      %c0_71 = arith.constant 0 : index
      %101 = vector.load %arg14[%c0_69, %c0_70, %c0_71] : memref<1x8x128xf32, #tpu.memory_space<vmem>>, vector<1x8x128xf32>
      %102 = vector.shape_cast %101 : vector<1x8x128xf32> to vector<8x128xf32>
      %103 = vector.shape_cast %100 : vector<8x128xf32> to vector<1x8x128xf32>
      tpu.vector_store %arg14[%c0_69, %c0_70, %c0_71], %103 {strides = array<i32>} : memref<1x8x128xf32, #tpu.memory_space<vmem>>, vector<1x8x128xf32>,
    } else {
    }
    return
  }
  func.func @transform_0(%arg0: i32, %arg1: i32, %arg2: i32) -> (i32, i32, i32) {
    %c0_i32 = arith.constant 0 : i32
    %c0_i32_0 = arith.constant 0 : i32
    return %arg0, %arg1, %c0_i32 : i32, i32, i32
  }
  func.func @transform_1(%arg0: i32, %arg1: i32, %arg2: i32) -> (i32, i32, i32, i32) {
    %c0_i32 = arith.constant 0 : i32
    %c0_i32_0 = arith.constant 0 : i32
    %c0_i32_1 = arith.constant 0 : i32
    return %arg0, %c0_i32, %arg1, %c0_i32_0 : i32, i32, i32, i32
  }
  func.func @transform_2(%arg0: i32, %arg1: i32, %arg2: i32) -> (i32, i32, i32, i32) {
    %c0_i32 = arith.constant 0 : i32
    %c0_i32_0 = arith.constant 0 : i32
    %c0_i32_1 = arith.constant 0 : i32
    return %arg0, %c0_i32, %arg2, %c0_i32_0 : i32, i32, i32, i32
  }
  func.func @transform_3(%arg0: i32, %arg1: i32, %arg2: i32) -> (i32, i32, i32, i32) {
    %c0_i32 = arith.constant 0 : i32
    %c0_i32_0 = arith.constant 0 : i32
    %c0_i32_1 = arith.constant 0 : i32
    return %arg0, %c0_i32, %arg2, %c0_i32_0 : i32, i32, i32, i32
  }
  func.func @transform_4(%arg0: i32, %arg1: i32, %arg2: i32) -> (i32, i32) {
    %c0_i32 = arith.constant 0 : i32
    %c0_i32_0 = arith.constant 0 : i32
    %c0_i32_1 = arith.constant 0 : i32
    return %c0_i32, %c0_i32_0 : i32, i32
  }
  func.func @transform_5(%arg0: i32, %arg1: i32, %arg2: i32) -> (i32, i32) {
    %c0_i32 = arith.constant 0 : i32
    %c0_i32_0 = arith.constant 0 : i32
    %c0_i32_1 = arith.constant 0 : i32
    return %c0_i32, %c0_i32_0 : i32, i32
  }
  func.func @transform_6(%arg0: i32, %arg1: i32, %arg2: i32) -> (i32, i32) {
    %c0_i32 = arith.constant 0 : i32
    %c0_i32_0 = arith.constant 0 : i32
    %c0_i32_1 = arith.constant 0 : i32
    return %c0_i32, %c0_i32_0 : i32, i32
  }
  func.func @transform_7(%arg0: i32, %arg1: i32, %arg2: i32) -> (i32, i32) {
    %c0_i32 = arith.constant 0 : i32
    %c0_i32_0 = arith.constant 0 : i32
    %c0_i32_1 = arith.constant 0 : i32
    return %c0_i32, %c0_i32_0 : i32, i32
  }
  func.func @transform_8(%arg0: i32, %arg1: i32, %arg2: i32) -> (i32, i32) {
    %c0_i32 = arith.constant 0 : i32
    %c0_i32_0 = arith.constant 0 : i32
    %c0_i32_1 = arith.constant 0 : i32
    return %c0_i32, %c0_i32_0 : i32, i32
  }
  func.func @transform_9(%arg0: i32, %arg1: i32, %arg2: i32) -> (i32, i32) {
    %c0_i32 = arith.constant 0 : i32
    %c0_i32_0 = arith.constant 0 : i32
    %c0_i32_1 = arith.constant 0 : i32
    return %c0_i32, %c0_i32_0 : i32, i32
  }
  func.func @transform_10(%arg0: i32, %arg1: i32, %arg2: i32) -> (i32, i32) {
    %c0_i32 = arith.constant 0 : i32
    %c0_i32_0 = arith.constant 0 : i32
    %c0_i32_1 = arith.constant 0 : i32
    return %c0_i32, %c0_i32_0 : i32, i32
  }
  func.func @transform_11(%arg0: i32, %arg1: i32, %arg2: i32) -> (i32, i32, i32) {
    %c0_i32 = arith.constant 0 : i32
    %c0_i32_0 = arith.constant 0 : i32
    return %arg0, %arg1, %c0_i32 : i32, i32, i32
  }
}

module attributes {stable_mosaic.version = 11 : i64} {
  func.func @_qkv_kernel(%arg0: i32, %arg1: i32, %arg2: memref<1x8x128xf32, #tpu.memory_space<vmem>>, %arg3: memref<1x128xf32, #tpu.memory_space<vmem>>, %arg4: memref<128x384xbf16, #tpu.memory_space<vmem>>, %arg5: memref<1x4x8x32xbf16, #tpu.memory_space<vmem>>, %arg6: memref<1x4x8x32xbf16, #tpu.memory_space<vmem>>, %arg7: memref<1x4x8x32xbf16, #tpu.memory_space<vmem>>) attributes {dimension_semantics = [#tpu.dimension_semantics<parallel>, #tpu.dimension_semantics<parallel>], iteration_bounds = array<i64: 2, 1>, scalar_prefetch = 0 : i64, scratch_operands = 0 : i64, tpu.core_type = #tpu.core_type<tc>, window_params = [{transform_indices = @transform_0, window_bounds = array<i64: 1, 8, 128>}, {pipeline_mode = #tpu.pipeline_mode<synchronous>, transform_indices = @transform_1, window_bounds = array<i64: 1, 128>}, {pipeline_mode = #tpu.pipeline_mode<synchronous>, transform_indices = @transform_2, window_bounds = array<i64: 128, 384>}, {transform_indices = @transform_3, window_bounds = array<i64: 1, 4, 8, 32>}, {transform_indices = @transform_4, window_bounds = array<i64: 1, 4, 8, 32>}, {transform_indices = @transform_5, window_bounds = array<i64: 1, 4, 8, 32>}]} {
    %c0 = arith.constant 0 : index
    %c0_0 = arith.constant 0 : index
    %c0_1 = arith.constant 0 : index
    %0 = vector.load %arg2[%c0, %c0_0, %c0_1] : memref<1x8x128xf32, #tpu.memory_space<vmem>>, vector<1x8x128xf32>
    %1 = vector.shape_cast %0 : vector<1x8x128xf32> to vector<8x128xf32>
    %c0_2 = arith.constant 0 : index
    %c0_3 = arith.constant 0 : index
    %2 = vector.load %arg3[%c0_2, %c0_3] : memref<1x128xf32, #tpu.memory_space<vmem>>, vector<1x128xf32>
    %cst = arith.constant dense<0.000000e+00> : vector<8xf32>
    %3 = vector.multi_reduction <add>, %1, %cst [1] : vector<8x128xf32> to vector<8xf32>
    %4 = vector.shape_cast %3 : vector<8xf32> to vector<8x1xf32>
    %cst_4 = arith.constant 3.125000e-02 : f32
    %5 = vector.broadcast %cst_4 : f32 to vector<8x1xf32>
    %6 = arith.mulf %4, %5 : vector<8x1xf32>
    %7 = arith.mulf %1, %1 : vector<8x128xf32>
    %cst_5 = arith.constant dense<0.000000e+00> : vector<8xf32>
    %8 = vector.multi_reduction <add>, %7, %cst_5 [1] : vector<8x128xf32> to vector<8xf32>
    %9 = vector.shape_cast %8 : vector<8xf32> to vector<8x1xf32>
    %cst_6 = arith.constant 3.125000e-02 : f32
    %10 = vector.broadcast %cst_6 : f32 to vector<8x1xf32>
    %11 = arith.mulf %9, %10 : vector<8x1xf32>
    %12 = arith.mulf %6, %6 : vector<8x1xf32>
    %13 = arith.subf %11, %12 : vector<8x1xf32>
    %14 = vector.broadcast %6 : vector<8x1xf32> to vector<8x128xf32>
    %15 = arith.subf %1, %14 : vector<8x128xf32>
    %cst_7 = arith.constant 9.99999974E-6 : f32
    %16 = vector.broadcast %cst_7 : f32 to vector<8x1xf32>
    %17 = arith.addf %13, %16 : vector<8x1xf32>
    %18 = math.rsqrt %17 : vector<8x1xf32>
    %19 = vector.broadcast %18 : vector<8x1xf32> to vector<8x128xf32>
    %20 = arith.mulf %15, %19 : vector<8x128xf32>
    %21 = vector.broadcast %2 : vector<1x128xf32> to vector<8x128xf32>
    %22 = arith.mulf %20, %21 : vector<8x128xf32>
    %23 = arith.truncf %22 : vector<8x128xf32> to vector<8x128xbf16>
    %c0_8 = arith.constant 0 : index
    %c0_9 = arith.constant 0 : index
    %24 = vector.load %arg4[%c0_8, %c0_9] : memref<128x384xbf16, #tpu.memory_space<vmem>>, vector<128x384xbf16>
    %cst_10 = arith.constant dense<0.000000e+00> : vector<8x384xf32>
    %25 = tpu.matmul %23, %24, %cst_10 {dimension_numbers = #tpu.dot_dimension_numbers<[1], [0], [0], [1], [0, 0, 1, 1], [], []>} : vector<8x128xbf16>, vector<128x384xbf16>, vector<8x384xf32> -> vector<8x384xf32>
    %26 = arith.truncf %25 : vector<8x384xf32> to vector<8x384xbf16>
    %27 = vector.extract_strided_slice %26 {offsets = [0, 0], sizes = [8, 32], strides = [1, 1]} : vector<8x384xbf16> to vector<8x32xbf16>
    %c0_11 = arith.constant 0 : index
    %c0_12 = arith.constant 0 : index
    %c0_13 = arith.constant 0 : index
    %c0_14 = arith.constant 0 : index
    %28 = vector.load %arg5[%c0_11, %c0_12, %c0_13, %c0_14] : memref<1x4x8x32xbf16, #tpu.memory_space<vmem>>, vector<1x1x8x32xbf16>
    %29 = vector.shape_cast %28 : vector<1x1x8x32xbf16> to vector<8x32xbf16>
    %30 = vector.shape_cast %27 : vector<8x32xbf16> to vector<1x1x8x32xbf16>
    tpu.vector_store %arg5[%c0_11, %c0_12, %c0_13, %c0_14], %30 {strides = array<i32>} : memref<1x4x8x32xbf16, #tpu.memory_space<vmem>>, vector<1x1x8x32xbf16>,
    %31 = vector.extract_strided_slice %26 {offsets = [0, 32], sizes = [8, 32], strides = [1, 1]} : vector<8x384xbf16> to vector<8x32xbf16>
    %c0_15 = arith.constant 0 : index
    %c1 = arith.constant 1 : index
    %c0_16 = arith.constant 0 : index
    %c0_17 = arith.constant 0 : index
    %32 = vector.load %arg5[%c0_15, %c1, %c0_16, %c0_17] : memref<1x4x8x32xbf16, #tpu.memory_space<vmem>>, vector<1x1x8x32xbf16>
    %33 = vector.shape_cast %32 : vector<1x1x8x32xbf16> to vector<8x32xbf16>
    %34 = vector.shape_cast %31 : vector<8x32xbf16> to vector<1x1x8x32xbf16>
    tpu.vector_store %arg5[%c0_15, %c1, %c0_16, %c0_17], %34 {strides = array<i32>} : memref<1x4x8x32xbf16, #tpu.memory_space<vmem>>, vector<1x1x8x32xbf16>,
    %35 = vector.extract_strided_slice %26 {offsets = [0, 64], sizes = [8, 32], strides = [1, 1]} : vector<8x384xbf16> to vector<8x32xbf16>
    %c0_18 = arith.constant 0 : index
    %c2 = arith.constant 2 : index
    %c0_19 = arith.constant 0 : index
    %c0_20 = arith.constant 0 : index
    %36 = vector.load %arg5[%c0_18, %c2, %c0_19, %c0_20] : memref<1x4x8x32xbf16, #tpu.memory_space<vmem>>, vector<1x1x8x32xbf16>
    %37 = vector.shape_cast %36 : vector<1x1x8x32xbf16> to vector<8x32xbf16>
    %38 = vector.shape_cast %35 : vector<8x32xbf16> to vector<1x1x8x32xbf16>
    tpu.vector_store %arg5[%c0_18, %c2, %c0_19, %c0_20], %38 {strides = array<i32>} : memref<1x4x8x32xbf16, #tpu.memory_space<vmem>>, vector<1x1x8x32xbf16>,
    %39 = vector.extract_strided_slice %26 {offsets = [0, 96], sizes = [8, 32], strides = [1, 1]} : vector<8x384xbf16> to vector<8x32xbf16>
    %c0_21 = arith.constant 0 : index
    %c3 = arith.constant 3 : index
    %c0_22 = arith.constant 0 : index
    %c0_23 = arith.constant 0 : index
    %40 = vector.load %arg5[%c0_21, %c3, %c0_22, %c0_23] : memref<1x4x8x32xbf16, #tpu.memory_space<vmem>>, vector<1x1x8x32xbf16>
    %41 = vector.shape_cast %40 : vector<1x1x8x32xbf16> to vector<8x32xbf16>
    %42 = vector.shape_cast %39 : vector<8x32xbf16> to vector<1x1x8x32xbf16>
    tpu.vector_store %arg5[%c0_21, %c3, %c0_22, %c0_23], %42 {strides = array<i32>} : memref<1x4x8x32xbf16, #tpu.memory_space<vmem>>, vector<1x1x8x32xbf16>,
    %43 = vector.extract_strided_slice %26 {offsets = [0, 128], sizes = [8, 32], strides = [1, 1]} : vector<8x384xbf16> to vector<8x32xbf16>
    %c0_24 = arith.constant 0 : index
    %c0_25 = arith.constant 0 : index
    %c0_26 = arith.constant 0 : index
    %c0_27 = arith.constant 0 : index
    %44 = vector.load %arg6[%c0_24, %c0_25, %c0_26, %c0_27] : memref<1x4x8x32xbf16, #tpu.memory_space<vmem>>, vector<1x1x8x32xbf16>
    %45 = vector.shape_cast %44 : vector<1x1x8x32xbf16> to vector<8x32xbf16>
    %46 = vector.shape_cast %43 : vector<8x32xbf16> to vector<1x1x8x32xbf16>
    tpu.vector_store %arg6[%c0_24, %c0_25, %c0_26, %c0_27], %46 {strides = array<i32>} : memref<1x4x8x32xbf16, #tpu.memory_space<vmem>>, vector<1x1x8x32xbf16>,
    %47 = vector.extract_strided_slice %26 {offsets = [0, 160], sizes = [8, 32], strides = [1, 1]} : vector<8x384xbf16> to vector<8x32xbf16>
    %c0_28 = arith.constant 0 : index
    %c1_29 = arith.constant 1 : index
    %c0_30 = arith.constant 0 : index
    %c0_31 = arith.constant 0 : index
    %48 = vector.load %arg6[%c0_28, %c1_29, %c0_30, %c0_31] : memref<1x4x8x32xbf16, #tpu.memory_space<vmem>>, vector<1x1x8x32xbf16>
    %49 = vector.shape_cast %48 : vector<1x1x8x32xbf16> to vector<8x32xbf16>
    %50 = vector.shape_cast %47 : vector<8x32xbf16> to vector<1x1x8x32xbf16>
    tpu.vector_store %arg6[%c0_28, %c1_29, %c0_30, %c0_31], %50 {strides = array<i32>} : memref<1x4x8x32xbf16, #tpu.memory_space<vmem>>, vector<1x1x8x32xbf16>,
    %51 = vector.extract_strided_slice %26 {offsets = [0, 192], sizes = [8, 32], strides = [1, 1]} : vector<8x384xbf16> to vector<8x32xbf16>
    %c0_32 = arith.constant 0 : index
    %c2_33 = arith.constant 2 : index
    %c0_34 = arith.constant 0 : index
    %c0_35 = arith.constant 0 : index
    %52 = vector.load %arg6[%c0_32, %c2_33, %c0_34, %c0_35] : memref<1x4x8x32xbf16, #tpu.memory_space<vmem>>, vector<1x1x8x32xbf16>
    %53 = vector.shape_cast %52 : vector<1x1x8x32xbf16> to vector<8x32xbf16>
    %54 = vector.shape_cast %51 : vector<8x32xbf16> to vector<1x1x8x32xbf16>
    tpu.vector_store %arg6[%c0_32, %c2_33, %c0_34, %c0_35], %54 {strides = array<i32>} : memref<1x4x8x32xbf16, #tpu.memory_space<vmem>>, vector<1x1x8x32xbf16>,
    %55 = vector.extract_strided_slice %26 {offsets = [0, 224], sizes = [8, 32], strides = [1, 1]} : vector<8x384xbf16> to vector<8x32xbf16>
    %c0_36 = arith.constant 0 : index
    %c3_37 = arith.constant 3 : index
    %c0_38 = arith.constant 0 : index
    %c0_39 = arith.constant 0 : index
    %56 = vector.load %arg6[%c0_36, %c3_37, %c0_38, %c0_39] : memref<1x4x8x32xbf16, #tpu.memory_space<vmem>>, vector<1x1x8x32xbf16>
    %57 = vector.shape_cast %56 : vector<1x1x8x32xbf16> to vector<8x32xbf16>
    %58 = vector.shape_cast %55 : vector<8x32xbf16> to vector<1x1x8x32xbf16>
    tpu.vector_store %arg6[%c0_36, %c3_37, %c0_38, %c0_39], %58 {strides = array<i32>} : memref<1x4x8x32xbf16, #tpu.memory_space<vmem>>, vector<1x1x8x32xbf16>,
    %59 = vector.extract_strided_slice %26 {offsets = [0, 256], sizes = [8, 32], strides = [1, 1]} : vector<8x384xbf16> to vector<8x32xbf16>
    %c0_40 = arith.constant 0 : index
    %c0_41 = arith.constant 0 : index
    %c0_42 = arith.constant 0 : index
    %c0_43 = arith.constant 0 : index
    %60 = vector.load %arg7[%c0_40, %c0_41, %c0_42, %c0_43] : memref<1x4x8x32xbf16, #tpu.memory_space<vmem>>, vector<1x1x8x32xbf16>
    %61 = vector.shape_cast %60 : vector<1x1x8x32xbf16> to vector<8x32xbf16>
    %62 = vector.shape_cast %59 : vector<8x32xbf16> to vector<1x1x8x32xbf16>
    tpu.vector_store %arg7[%c0_40, %c0_41, %c0_42, %c0_43], %62 {strides = array<i32>} : memref<1x4x8x32xbf16, #tpu.memory_space<vmem>>, vector<1x1x8x32xbf16>,
    %63 = vector.extract_strided_slice %26 {offsets = [0, 288], sizes = [8, 32], strides = [1, 1]} : vector<8x384xbf16> to vector<8x32xbf16>
    %c0_44 = arith.constant 0 : index
    %c1_45 = arith.constant 1 : index
    %c0_46 = arith.constant 0 : index
    %c0_47 = arith.constant 0 : index
    %64 = vector.load %arg7[%c0_44, %c1_45, %c0_46, %c0_47] : memref<1x4x8x32xbf16, #tpu.memory_space<vmem>>, vector<1x1x8x32xbf16>
    %65 = vector.shape_cast %64 : vector<1x1x8x32xbf16> to vector<8x32xbf16>
    %66 = vector.shape_cast %63 : vector<8x32xbf16> to vector<1x1x8x32xbf16>
    tpu.vector_store %arg7[%c0_44, %c1_45, %c0_46, %c0_47], %66 {strides = array<i32>} : memref<1x4x8x32xbf16, #tpu.memory_space<vmem>>, vector<1x1x8x32xbf16>,
    %67 = vector.extract_strided_slice %26 {offsets = [0, 320], sizes = [8, 32], strides = [1, 1]} : vector<8x384xbf16> to vector<8x32xbf16>
    %c0_48 = arith.constant 0 : index
    %c2_49 = arith.constant 2 : index
    %c0_50 = arith.constant 0 : index
    %c0_51 = arith.constant 0 : index
    %68 = vector.load %arg7[%c0_48, %c2_49, %c0_50, %c0_51] : memref<1x4x8x32xbf16, #tpu.memory_space<vmem>>, vector<1x1x8x32xbf16>
    %69 = vector.shape_cast %68 : vector<1x1x8x32xbf16> to vector<8x32xbf16>
    %70 = vector.shape_cast %67 : vector<8x32xbf16> to vector<1x1x8x32xbf16>
    tpu.vector_store %arg7[%c0_48, %c2_49, %c0_50, %c0_51], %70 {strides = array<i32>} : memref<1x4x8x32xbf16, #tpu.memory_space<vmem>>, vector<1x1x8x32xbf16>,
    %71 = vector.extract_strided_slice %26 {offsets = [0, 352], sizes = [8, 32], strides = [1, 1]} : vector<8x384xbf16> to vector<8x32xbf16>
    %c0_52 = arith.constant 0 : index
    %c3_53 = arith.constant 3 : index
    %c0_54 = arith.constant 0 : index
    %c0_55 = arith.constant 0 : index
    %72 = vector.load %arg7[%c0_52, %c3_53, %c0_54, %c0_55] : memref<1x4x8x32xbf16, #tpu.memory_space<vmem>>, vector<1x1x8x32xbf16>
    %73 = vector.shape_cast %72 : vector<1x1x8x32xbf16> to vector<8x32xbf16>
    %74 = vector.shape_cast %71 : vector<8x32xbf16> to vector<1x1x8x32xbf16>
    tpu.vector_store %arg7[%c0_52, %c3_53, %c0_54, %c0_55], %74 {strides = array<i32>} : memref<1x4x8x32xbf16, #tpu.memory_space<vmem>>, vector<1x1x8x32xbf16>,
    return
  }
  func.func @transform_0(%arg0: i32, %arg1: i32) -> (i32, i32, i32) {
    %c0_i32 = arith.constant 0 : i32
    %c0_i32_0 = arith.constant 0 : i32
    return %arg0, %arg1, %c0_i32 : i32, i32, i32
  }
  func.func @transform_1(%arg0: i32, %arg1: i32) -> (i32, i32) {
    %c0_i32 = arith.constant 0 : i32
    %c0_i32_0 = arith.constant 0 : i32
    %c0_i32_1 = arith.constant 0 : i32
    return %c0_i32, %c0_i32_0 : i32, i32
  }
  func.func @transform_2(%arg0: i32, %arg1: i32) -> (i32, i32) {
    %c0_i32 = arith.constant 0 : i32
    %c0_i32_0 = arith.constant 0 : i32
    %c0_i32_1 = arith.constant 0 : i32
    return %c0_i32, %c0_i32_0 : i32, i32
  }
  func.func @transform_3(%arg0: i32, %arg1: i32) -> (i32, i32, i32, i32) {
    %c0_i32 = arith.constant 0 : i32
    %c0_i32_0 = arith.constant 0 : i32
    %c0_i32_1 = arith.constant 0 : i32
    return %arg0, %c0_i32, %arg1, %c0_i32_0 : i32, i32, i32, i32
  }
  func.func @transform_4(%arg0: i32, %arg1: i32) -> (i32, i32, i32, i32) {
    %c0_i32 = arith.constant 0 : i32
    %c0_i32_0 = arith.constant 0 : i32
    %c0_i32_1 = arith.constant 0 : i32
    return %arg0, %c0_i32, %arg1, %c0_i32_0 : i32, i32, i32, i32
  }
  func.func @transform_5(%arg0: i32, %arg1: i32) -> (i32, i32, i32, i32) {
    %c0_i32 = arith.constant 0 : i32
    %c0_i32_0 = arith.constant 0 : i32
    %c0_i32_1 = arith.constant 0 : i32
    return %arg0, %c0_i32, %arg1, %c0_i32_0 : i32, i32, i32, i32
  }
}

</mosaic_0001>

<llo_original>
// kernel: _forward_impl.2
$region0: #{_forward_impl.2}
  #allocation0 [shape = 'u32[]', space=smem, size = 0x4, offset = 0x4, fixed_abs, tag = 'smem constant byte address 0x4 - core index']
  #allocation1 [shape = 'u32[144,128]{1,0:T(1,128)}', space=vmem, size = 0x12000, scoped, tag = 'internal scratch']
  %s0 = inlined_call_operand.vmem [shape: f32[2,8,128], index: 0, kind: input, shape index: {}]
  %s1 = inlined_call_operand.vmem [shape: f32[1,128], index: 1, kind: input, shape index: {}]
  %s2 = inlined_call_operand.hbm [shape: bf16[128,384], index: 2, kind: input, shape index: {}]
  %s3 = inlined_call_operand.vmem [shape: bf16[2,4,8,32], index: 3, kind: output, shape index: {0}]
  %s4 = inlined_call_operand.vmem [shape: bf16[2,4,8,32], index: 4, kind: output, shape index: {1}]
  %s5 = inlined_call_operand.vmem [shape: bf16[2,4,8,32], index: 5, kind: output, shape index: {2}]
  %6 = xla_tuple %s3, %s4, %s5
  %s7 = sld [smem:[#allocation0]]
  $region65: #{_forward_impl.2} parent=0
    _
  %s9 = ssub.s32 1, %s7
  %s10 = scalar_select 0, %s9, %s7
  $region1: #{_forward_impl.2} parent=0
    #allocation2 [shape = 'u8[98304]{0}', space=vmem, size = 0x18000, scoped, tag = 'input window, operand 2, single buffered']
    #allocation3 [shape = 's32[2]{0}', space=sflag, size = 0x8, scoped, tag = 'scoped memory for _forward_impl.2']
    %11 = vsyncpa [#allocation3], 0
    loop: start=0, step=1, limit=4
    $region2: #{_forward_impl.2} parent=1 // loop_pre_header
      _
    $region3: #{_forward_impl.2} parent=1 // loop_header
      %s13 = sphi 0, %s17
      %p14 = scmp.ge.s32.totalorder %s13, 4
      %s20 = sphi 0, %s32
      %s21 = sphi 0, %s28
      %s22 = sphi 0, %s20
      %s23 = sphi 0, %s21
      %s24 = sphi 0, %s22
      %s25 = sphi 0, %s23
      %s37 = sphi 0, %s39
      %s40 = sphi 0, %s37
      %s41 = sphi 0, %s40
      %s57 = sphi 0, %s41
      %s61 = sphi 0, %s61
      %s63 = sphi 0, %s61
      %s64 = sphi 0, %s63
      %s78 = sphi 0, %s64
      %s82 = sphi 0, %s82
      %s84 = sphi 0, %s82
      %s85 = sphi 0, %s84
      %s99 = sphi 0, %s85
      %s107 = sphi 0, %s109
      %s110 = sphi 0, %s107
      %s111 = sphi 0, %s110
      %s127 = sphi 0, %s111
      %s135 = sphi 0, %s137
      %s138 = sphi 0, %s135
      %s139 = sphi 0, %s138
      %s155 = sphi 0, %s139
      %s163 = sphi 0, %s165
      %s166 = sphi 0, %s163
      %s167 = sphi 0, %s166
      %s183 = sphi 0, %s167
    $region4: #{_forward_impl.2} parent=1 // loop_header_branch
      %16 = sbr.rel (%p14) target = $region8
    $region5: #{_forward_impl.2} parent=1 // loop_body
      %s18 = ssub.s32 %s13, 1
      %s19 = ssub.s32 %s13, 2
      %s26 = sadd.s32 1, %s21
      %p27 = scmp.ge.s32.totalorder %s26, 1
      %s28 = scalar_select %p27, 0, %s26
      %s29 = sadd.s32 1, %s20
      %s30 = scalar_select %p27, %s29, %s20
      %p31 = scmp.ge.s32.totalorder %s30, 2
      %s32 = scalar_select %p31, 0, %s30
      %s33 = ssub.s32 %s20, %s32
      %s34 = ssub.s32 %s21, %s28
      %s35 = sor.u32 %s33, %s34
      %p36 = scmp.eq.s32.totalorder %s35, 0
      %s38 = sadd.s32 %s37, 1
      %s39 = scalar_select %p36, %s37, %s38
      %p42 = pneg %p36
      %p43 = scmp.eq.s32.totalorder %s13, 1
      %p44 = por %p42, %p43
      %p45 = scmp.ne.s32.totalorder %s37, %s40
      %p46 = scmp.eq.s32.totalorder %s13, 0
      %p47 = por %p45, %p46
      %p48 = scmp.ne.s32.totalorder %s37, %s40
      %p49 = scmp.eq.s32.totalorder %s18, 1
      %p50 = por %p48, %p49
      %p51 = scmp.ne.s32.totalorder %s40, %s41
      %p52 = scmp.eq.s32.totalorder %s18, 0
      %p53 = por %p51, %p52
      %p54 = scmp.ne.s32.totalorder %s40, %s41
      %p55 = scmp.eq.s32.totalorder %s19, 1
      %p56 = por %p54, %p55
      %p58 = scmp.ne.s32.totalorder %s41, %s57
      %p59 = scmp.eq.s32.totalorder %s19, 0
      %p60 = por %p58, %p59
      %s62 = sadd.s32 %s61, 1
      %p65 = scmp.eq.s32.totalorder %s13, 1
      %p66 = scmp.ne.s32.totalorder %s61, %s63
      %p67 = scmp.eq.s32.totalorder %s13, 0
      %p68 = por %p66, %p67
      %p69 = scmp.ne.s32.totalorder %s61, %s63
      %p70 = scmp.eq.s32.totalorder %s18, 1
      %p71 = por %p69, %p70
      %p72 = scmp.ne.s32.totalorder %s63, %s64
      %p73 = scmp.eq.s32.totalorder %s18, 0
      %p74 = por %p72, %p73
      %p75 = scmp.ne.s32.totalorder %s63, %s64
      %p76 = scmp.eq.s32.totalorder %s19, 1
      %p77 = por %p75, %p76
      %p79 = scmp.ne.s32.totalorder %s64, %s78
      %p80 = scmp.eq.s32.totalorder %s19, 0
      %p81 = por %p79, %p80
      %s83 = sadd.s32 %s82, 1
      %p86 = scmp.eq.s32.totalorder %s13, 1
      %p87 = scmp.ne.s32.totalorder %s82, %s84
      %p88 = scmp.eq.s32.totalorder %s13, 0
      %p89 = por %p87, %p88
      %p90 = scmp.ne.s32.totalorder %s82, %s84
      %p91 = scmp.eq.s32.totalorder %s18, 1
      %p92 = por %p90, %p91
      %p93 = scmp.ne.s32.totalorder %s84, %s85
      %p94 = scmp.eq.s32.totalorder %s18, 0
      %p95 = por %p93, %p94
      %p96 = scmp.ne.s32.totalorder %s84, %s85
      %p97 = scmp.eq.s32.totalorder %s19, 1
      %p98 = por %p96, %p97
      %p100 = scmp.ne.s32.totalorder %s85, %s99
      %p101 = scmp.eq.s32.totalorder %s19, 0
      %p102 = por %p100, %p101
      %s103 = ssub.s32 %s20, %s32
      %s104 = ssub.s32 %s21, %s28
      %s105 = sor.u32 %s103, %s104
      %p106 = scmp.eq.s32.totalorder %s105, 0
      %s108 = sadd.s32 %s107, 1
      %s109 = scalar_select %p106, %s107, %s108
      %p112 = pneg %p106
      %p113 = scmp.eq.s32.totalorder %s13, 1
      %p114 = por %p112, %p113
      %p115 = scmp.ne.s32.totalorder %s107, %s110
      %p116 = scmp.eq.s32.totalorder %s13, 0
      %p117 = por %p115, %p116
      %p118 = scmp.ne.s32.totalorder %s107, %s110
      %p119 = scmp.eq.s32.totalorder %s18, 1
      %p120 = por %p118, %p119
      %p121 = scmp.ne.s32.totalorder %s110, %s111
      %p122 = scmp.eq.s32.totalorder %s18, 0
      %p123 = por %p121, %p122
      %p124 = scmp.ne.s32.totalorder %s110, %s111
      %p125 = scmp.eq.s32.totalorder %s19, 1
      %p126 = por %p124, %p125
      %p128 = scmp.ne.s32.totalorder %s111, %s127
      %p129 = scmp.eq.s32.totalorder %s19, 0
      %p130 = por %p128, %p129
      %s131 = ssub.s32 %s20, %s32
      %s132 = ssub.s32 %s21, %s28
      %s133 = sor.u32 %s131, %s132
      %p134 = scmp.eq.s32.totalorder %s133, 0
      %s136 = sadd.s32 %s135, 1
      %s137 = scalar_select %p134, %s135, %s136
      %p140 = pneg %p134
      %p141 = scmp.eq.s32.totalorder %s13, 1
      %p142 = por %p140, %p141
      %p143 = scmp.ne.s32.totalorder %s135, %s138
      %p144 = scmp.eq.s32.totalorder %s13, 0
      %p145 = por %p143, %p144
      %p146 = scmp.ne.s32.totalorder %s135, %s138
      %p147 = scmp.eq.s32.totalorder %s18, 1
      %p148 = por %p146, %p147
      %p149 = scmp.ne.s32.totalorder %s138, %s139
      %p150 = scmp.eq.s32.totalorder %s18, 0
      %p151 = por %p149, %p150
      %p152 = scmp.ne.s32.totalorder %s138, %s139
      %p153 = scmp.eq.s32.totalorder %s19, 1
      %p154 = por %p152, %p153
      %p156 = scmp.ne.s32.totalorder %s139, %s155
      %p157 = scmp.eq.s32.totalorder %s19, 0
      %p158 = por %p156, %p157
      %s159 = ssub.s32 %s20, %s32
      %s160 = ssub.s32 %s21, %s28
      %s161 = sor.u32 %s159, %s160
      %p162 = scmp.eq.s32.totalorder %s161, 0
      %s164 = sadd.s32 %s163, 1
      %s165 = scalar_select %p162, %s163, %s164
      %p168 = pneg %p162
      %p169 = scmp.eq.s32.totalorder %s13, 1
      %p170 = por %p168, %p169
      %p171 = scmp.ne.s32.totalorder %s163, %s166
      %p172 = scmp.eq.s32.totalorder %s13, 0
      %p173 = por %p171, %p172
      %p174 = scmp.ne.s32.totalorder %s163, %s166
      %p175 = scmp.eq.s32.totalorder %s18, 1
      %p176 = por %p174, %p175
      %p177 = scmp.ne.s32.totalorder %s166, %s167
      %p178 = scmp.eq.s32.totalorder %s18, 0
      %p179 = por %p177, %p178
      %p180 = scmp.ne.s32.totalorder %s166, %s167
      %p181 = scmp.eq.s32.totalorder %s19, 1
      %p182 = por %p180, %p181
      %p184 = scmp.ne.s32.totalorder %s167, %s183
      %p185 = scmp.eq.s32.totalorder %s19, 0
      %p186 = por %p184, %p185
      %p187 = scmp.le.s32.totalorder 1, %s13
      %p188 = scmp.lt.s32.totalorder %s13, 3
      %p189 = pnand %p187, %p188
      %p190 = pneg %p189
      // Predicated region
      $region9: #{_forward_impl.2} parent=5 // pred_check
        _
      $region10: #{_forward_impl.2} parent=5 // pred_check_branch
        %192 = sbr.rel (%p189) target = $region12
      $region11: #{_forward_impl.2} parent=5 // pred_region
        %s193 = ssub.s32 %s13, 1
        // Predicated region
        $region13: #{_forward_impl.2} parent=11 // pred_check
          %p194 = pneg %p74
        $region14: #{_forward_impl.2} parent=11 // pred_check_branch
          %196 = sbr.rel (%p194) target = $region16
        $region15: #{_forward_impl.2} parent=11 // pred_region
          _
        $region16: #{_forward_impl.2} parent=11 // pred_fallthru
          _
        // Predicated region
        $region17: #{_forward_impl.2} parent=11 // pred_check
          %p197 = pneg %p95
        $region18: #{_forward_impl.2} parent=11 // pred_check_branch
          %199 = sbr.rel (%p197) target = $region20
        $region19: #{_forward_impl.2} parent=11 // pred_region
          %s201 = ssub.s32 3072, 3072
          %202 = vsyncadd [#allocation3], %s201
          %s203 = sshll.u32 [#allocation2], 4
          %s204 = int_to_ptr.vmem [resolvable:$true] %s203
          %209 = dma.hbm_to_vmem [thread:$0]  %s2, 3072, %s204, [#allocation3], 192, 192, 12
        $region20: #{_forward_impl.2} parent=11 // pred_fallthru
          _
      $region12: #{_forward_impl.2} parent=5 // pred_fallthru
        _
      %p210 = scmp.lt.s32.totalorder %s13, 2
      // Predicated region
      $region21: #{_forward_impl.2} parent=5 // pred_check
        %p211 = pneg %p210
      $region22: #{_forward_impl.2} parent=5 // pred_check_branch
        %213 = sbr.rel (%p211) target = $region24
      $region23: #{_forward_impl.2} parent=5 // pred_region
        // Predicated region
        $region25: #{_forward_impl.2} parent=23 // pred_check
          %p214 = pneg %p47
        $region26: #{_forward_impl.2} parent=23 // pred_check_branch
          %216 = sbr.rel (%p214) target = $region28
        $region27: #{_forward_impl.2} parent=23 // pred_region
          %p217 = scmp.lt.s32.totalorder %s20, 1
          %s218 = scalar_select %p217, %s20, 1
          %p219 = scmp.lt.s32.totalorder %s21, 0
          %s220 = scalar_select %p219, %s21, 0
          %s221 = sadd.s32 %s220, %s218
          %s222 = smul.addr %s221, 8
          %s223 = scalar_lea.vmem %s0, %s222
        $region28: #{_forward_impl.2} parent=23 // pred_fallthru
          _
      $region24: #{_forward_impl.2} parent=5 // pred_fallthru
        _
      %p224 = scmp.le.s32.totalorder 1, %s13
      %p225 = scmp.lt.s32.totalorder %s13, 3
      %p226 = pnand %p224, %p225
      %p227 = pneg %p226
      // Predicated region
      $region29: #{_forward_impl.2} parent=5 // pred_check
        _
      $region30: #{_forward_impl.2} parent=5 // pred_check_branch
        %229 = sbr.rel (%p226) target = $region32
      $region31: #{_forward_impl.2} parent=5 // pred_region
        %s230 = ssub.s32 %s13, 1
        // Predicated region
        $region33: #{_forward_impl.2} parent=31 // pred_check
          %p231 = pneg %p95
        $region34: #{_forward_impl.2} parent=31 // pred_check_branch
          %233 = sbr.rel (%p231) target = $region36
        $region35: #{_forward_impl.2} parent=31 // pred_region
          %234 = dma.done [#allocation3], 3072
        $region36: #{_forward_impl.2} parent=31 // pred_fallthru
          _
        %p235 = scmp.lt.s32.totalorder %s22, 1
        %s236 = scalar_select %p235, %s22, 1
        %p237 = scmp.lt.s32.totalorder %s23, 0
        %s238 = scalar_select %p237, %s23, 0
        %s239 = sadd.s32 %s238, %s236
        %s240 = smul.addr %s239, 8
        %s241 = scalar_lea.vmem %s0, %s240
        %p242 = pneg %p53
        %p243 = pneg %p50
        %p244 = pneg %p74
        %p245 = pneg %p71
        %p246 = pneg %p95
        %p247 = pneg %p92
        %p248 = pneg %p123
        %p249 = pneg %p120
        %p250 = scmp.lt.s32.totalorder %s22, 1
        %s251 = scalar_select %p250, %s22, 1
        %p252 = scmp.lt.s32.totalorder %s23, 0
        %s253 = scalar_select %p252, %s23, 0
        %s254 = smul.addr %s251, 4
        %s255 = sadd.s32 %s253, %s254
        %s256 = smul.addr %s255, 4
        %s257 = scalar_lea.vmem %s3, %s256
        %p258 = pneg %p151
        %p259 = pneg %p148
        %p260 = scmp.lt.s32.totalorder %s22, 1
        %s261 = scalar_select %p260, %s22, 1
        %p262 = scmp.lt.s32.totalorder %s23, 0
        %s263 = scalar_select %p262, %s23, 0
        %s264 = smul.addr %s261, 4
        %s265 = sadd.s32 %s263, %s264
        %s266 = smul.addr %s265, 4
        %s267 = scalar_lea.vmem %s4, %s266
        %p268 = pneg %p179
        %p269 = pneg %p176
        %p270 = scmp.lt.s32.totalorder %s22, 1
        %s271 = scalar_select %p270, %s22, 1
        %p272 = scmp.lt.s32.totalorder %s23, 0
        %s273 = scalar_select %p272, %s23, 0
        %s274 = smul.addr %s271, 4
        %s275 = sadd.s32 %s273, %s274
        %s276 = smul.addr %s275, 4
        %s277 = scalar_lea.vmem %s5, %s276
        %p278 = scmp.lt.s32.totalorder %s22, 1
        %s279 = scalar_select %p278, %s22, 1
        %p280 = scmp.lt.s32.totalorder %s23, 0
        %s281 = scalar_select %p280, %s23, 0
        %s282 = sadd.s32 %s281, %s279
        %s283 = smul.addr %s282, 8
        %s284 = scalar_lea.vmem %s0, %s283
        %p285 = scmp.lt.s32.totalorder %s22, 1
        %s286 = scalar_select %p285, %s22, 1
        %p287 = scmp.lt.s32.totalorder %s23, 0
        %s288 = scalar_select %p287, %s23, 0
        %s289 = smul.addr %s286, 4
        %s290 = sadd.s32 %s288, %s289
        %s291 = smul.addr %s290, 4
        %s292 = scalar_lea.vmem %s3, %s291
        %p293 = scmp.lt.s32.totalorder %s22, 1
        %s294 = scalar_select %p293, %s22, 1
        %p295 = scmp.lt.s32.totalorder %s23, 0
        %s296 = scalar_select %p295, %s23, 0
        %s297 = smul.addr %s294, 4
        %s298 = sadd.s32 %s296, %s297
        %s299 = smul.addr %s298, 4
        %s300 = scalar_lea.vmem %s4, %s299
        %p301 = scmp.lt.s32.totalorder %s22, 1
        %s302 = scalar_select %p301, %s22, 1
        %p303 = scmp.lt.s32.totalorder %s23, 0
        %s304 = scalar_select %p303, %s23, 0
        %s305 = smul.addr %s302, 4
        %s306 = sadd.s32 %s304, %s305
        %s307 = smul.addr %s306, 4
        %s308 = scalar_lea.vmem %s5, %s307
        %v310 = vld [vmem:[%s284] sm:$0xff]
        %v311 = vld [vmem:[%s1] sm:$0x1]
        %312 = vadd.xlane.f32.xlu0 %v310
        %v313 = vpop.xlane.xlu0 %312
        %v314 = vmul.f32 %v313, 0.03125
        %v315 = vmul.f32 %v310, %v310
        %316 = vadd.xlane.f32.xlu0 %v315
        %v317 = vpop.xlane.xlu0 %316
        %v318 = vmul.f32 %v317, 0.03125
        %v319 = vmul.f32 %v314, %v314
        %v320 = vsub.f32 %v318, %v319
        %v321 = vsub.f32 %v310, %v314
        %v322 = vadd.f32 %v320, 1e-05
        %v323 = vrsqrt.pop %v322
        %v324 = vmul.f32 %v321, %v323
        %v326 = vlaneseq
        %v327 = vshrl.u32 %v326, 7
        %v328 = vsub.s32 0, %v327
        %v329 = vrot.slane %v311, %v328
        %v331 = vmul.f32 %v324, %v329
        %v332 = vpack.c.bf16 %v331, %v331
        %v333 = vld [vmem:[#allocation2] sm:$0xff]
        %v334 = vld [vmem:[#allocation2 + $0x8] sm:$0xf]
        %v335 = vld [vmem:[#allocation2 + $0xc] sm:$0xff]
        %v336 = vld [vmem:[#allocation2 + $0x14] sm:$0xf]
        %v337 = vld [vmem:[#allocation2 + $0x18] sm:$0xff]
        %v338 = vld [vmem:[#allocation2 + $0x20] sm:$0xf]
        %v339 = vld [vmem:[#allocation2 + $0x24] sm:$0xff]
        %v340 = vld [vmem:[#allocation2 + $0x2c] sm:$0xf]
        %v341 = vld [vmem:[#allocation2 + $0x30] sm:$0xff]
        %v342 = vld [vmem:[#allocation2 + $0x38] sm:$0xf]
        %v343 = vld [vmem:[#allocation2 + $0x3c] sm:$0xff]
        %v344 = vld [vmem:[#allocation2 + $0x44] sm:$0xf]
        %v345 = vld [vmem:[#allocation2 + $0x48] sm:$0xff]
        %v346 = vld [vmem:[#allocation2 + $0x50] sm:$0xf]
        %v347 = vld [vmem:[#allocation2 + $0x54] sm:$0xff]
        %v348 = vld [vmem:[#allocation2 + $0x5c] sm:$0xf]
        %v349 = vld [vmem:[#allocation2 + $0x60] sm:$0xff]
        %v350 = vld [vmem:[#allocation2 + $0x68] sm:$0xf]
        %v351 = vld [vmem:[#allocation2 + $0x6c] sm:$0xff]
        %v352 = vld [vmem:[#allocation2 + $0x74] sm:$0xf]
        %v353 = vld [vmem:[#allocation2 + $0x78] sm:$0xff]
        %v354 = vld [vmem:[#allocation2 + $0x80] sm:$0xf]
        %v355 = vld [vmem:[#allocation2 + $0x84] sm:$0xff]
        %v356 = vld [vmem:[#allocation2 + $0x8c] sm:$0xf]
        %v357 = vld [vmem:[#allocation2 + $0x90] sm:$0xff]
        %v358 = vld [vmem:[#allocation2 + $0x98] sm:$0xf]
        %v359 = vld [vmem:[#allocation2 + $0x9c] sm:$0xff]
        %v360 = vld [vmem:[#allocation2 + $0xa4] sm:$0xf]
        %v361 = vld [vmem:[#allocation2 + $0xa8] sm:$0xff]
        %v362 = vld [vmem:[#allocation2 + $0xb0] sm:$0xf]
        %v363 = vld [vmem:[#allocation2 + $0xb4] sm:$0xff]
        %v364 = vld [vmem:[#allocation2 + $0xbc] sm:$0xf]
        %v397 = vunpack.c.l.b16 %v333
        %v398 = vunpack.c.h.b16 %v333
        %v399 = vunpack.c.l.b16 %v334
        %v400 = vunpack.c.l.b16 %v335
        %v401 = vunpack.c.h.b16 %v335
        %v402 = vunpack.c.l.b16 %v336
        %v403 = vunpack.c.l.b16 %v337
        %v404 = vunpack.c.h.b16 %v337
        %v405 = vunpack.c.l.b16 %v338
        %v406 = vunpack.c.l.b16 %v339
        %v407 = vunpack.c.h.b16 %v339
        %v408 = vunpack.c.l.b16 %v340
        %v409 = vunpack.c.l.b16 %v341
        %v410 = vunpack.c.h.b16 %v341
        %v411 = vunpack.c.l.b16 %v342
        %v412 = vunpack.c.l.b16 %v343
        %v413 = vunpack.c.h.b16 %v343
        %v414 = vunpack.c.l.b16 %v344
        %v415 = vunpack.c.l.b16 %v345
        %v416 = vunpack.c.h.b16 %v345
        %v417 = vunpack.c.l.b16 %v346
        %v418 = vunpack.c.l.b16 %v347
        %v419 = vunpack.c.h.b16 %v347
        %v420 = vunpack.c.l.b16 %v348
        %v421 = vunpack.c.l.b16 %v349
        %v422 = vunpack.c.h.b16 %v349
        %v423 = vunpack.c.l.b16 %v350
        %v424 = vunpack.c.l.b16 %v351
        %v425 = vunpack.c.h.b16 %v351
        %v426 = vunpack.c.l.b16 %v352
        %v427 = vunpack.c.l.b16 %v353
        %v428 = vunpack.c.h.b16 %v353
        %v429 = vunpack.c.l.b16 %v354
        %v430 = vunpack.c.l.b16 %v355
        %v431 = vunpack.c.h.b16 %v355
        %v432 = vunpack.c.l.b16 %v356
        %v433 = vunpack.c.l.b16 %v357
        %v434 = vunpack.c.h.b16 %v357
        %v435 = vunpack.c.l.b16 %v358
        %v436 = vunpack.c.l.b16 %v359
        %v437 = vunpack.c.h.b16 %v359
        %v438 = vunpack.c.l.b16 %v360
        %v439 = vunpack.c.l.b16 %v361
        %v440 = vunpack.c.h.b16 %v361
        %v441 = vunpack.c.l.b16 %v362
        %v442 = vunpack.c.l.b16 %v363
        %v443 = vunpack.c.h.b16 %v363
        %v444 = vunpack.c.l.b16 %v364
        %v445 = vpack.c.b16 %v400, %v397
        %v446 = vpack.c.b16 %v401, %v398
        %v447 = vpack.c.b16 %v402, %v399
        %v448 = vpack.c.b16 %v406, %v403
        %v449 = vpack.c.b16 %v407, %v404
        %v450 = vpack.c.b16 %v408, %v405
        %v451 = vpack.c.b16 %v412, %v409
        %v452 = vpack.c.b16 %v413, %v410
        %v453 = vpack.c.b16 %v414, %v411
        %v454 = vpack.c.b16 %v418, %v415
        %v455 = vpack.c.b16 %v419, %v416
        %v456 = vpack.c.b16 %v420, %v417
        %v457 = vpack.c.b16 %v424, %v421
        %v458 = vpack.c.b16 %v425, %v422
        %v459 = vpack.c.b16 %v426, %v423
        %v460 = vpack.c.b16 %v430, %v427
        %v461 = vpack.c.b16 %v431, %v428
        %v462 = vpack.c.b16 %v432, %v429
        %v463 = vpack.c.b16 %v436, %v433
        %v464 = vpack.c.b16 %v437, %v434
        %v465 = vpack.c.b16 %v438, %v435
        %v466 = vpack.c.b16 %v442, %v439
        %v467 = vpack.c.b16 %v443, %v440
        %v468 = vpack.c.b16 %v444, %v441
        %493 = vmatprep.subr.bf16.mxu0 %v446
        %494 = vmatpush1.bf16.msra.mxu0 %v445
        %495 = vmatprep.subr.bf16.mxu0 %v449
        %496 = vmatpush1.bf16.msra.mxu0 %v448
        %497 = vmatprep.subr.bf16.mxu0 %v452
        %498 = vmatpush1.bf16.msra.mxu0 %v451
        %499 = vmatprep.subr.bf16.mxu0 %v455
        %500 = vmatpush1.bf16.msra.mxu0 %v454
        %501 = vmatprep.subr.bf16.mxu0 %v458
        %502 = vmatpush1.bf16.msra.mxu0 %v457
        %503 = vmatprep.subr.bf16.mxu0 %v461
        %504 = vmatpush1.bf16.msra.mxu0 %v460
        %505 = vmatprep.subr.bf16.mxu0 %v464
        %506 = vmatpush1.bf16.msra.mxu0 %v463
        %507 = vmatprep.subr.bf16.mxu0 %v467
        %508 = vmatpush1.bf16.msra.mxu0 %v466
        %509 = vmatprep.subr.bf16.mxu0 0
        %510 = vmatpush1.bf16.msra.mxu0 0
        %511 = vmatprep.subr.bf16.mxu0 0
        %512 = vmatpush1.bf16.msra.mxu0 0
        %513 = vmatprep.subr.bf16.mxu0 0
        %514 = vmatpush1.bf16.msra.mxu0 0
        %515 = vmatprep.subr.bf16.mxu0 0
        %516 = vmatpush1.bf16.msra.mxu0 0
        %517 = vmatprep.subr.bf16.mxu0 0
        %518 = vmatpush1.bf16.msra.mxu0 0
        %519 = vmatprep.subr.bf16.mxu0 0
        %520 = vmatpush1.bf16.msra.mxu0 0
        %521 = vmatprep.subr.bf16.mxu0 0
        %522 = vmatpush1.bf16.msra.mxu0 0
        %523 = vmatprep.subr.bf16.mxu0 0
        %524 = vmatpush1.bf16.msra.mxu0 0
        %525 = vmatprep.mubr.bf16.mxu0 0
        %526 = vmatmul.mubr.bf16.gmra.mrb[0].mxu0 %v332
        %v527 = vpop.f32.mrb[0].mxu0
        %v528 = vadd.f32 0.0, %v527
        %v529 = vpop.f32.mrb[0].mxu0
        %v530 = vadd.f32 0.0, %v529
        %v531 = vpop.f32.mrb[0].mxu0
        %v532 = vpop.f32.mrb[0].mxu0
        %533 = vdwg.mxu0
        %534 = vmatprep.subr.bf16.mxu0 0
        %535 = vmatpush1.bf16.msra.mxu0 %v447
        %536 = vmatprep.subr.bf16.mxu0 0
        %537 = vmatpush1.bf16.msra.mxu0 %v450
        %538 = vmatprep.subr.bf16.mxu0 0
        %539 = vmatpush1.bf16.msra.mxu0 %v453
        %540 = vmatprep.subr.bf16.mxu0 0
        %541 = vmatpush1.bf16.msra.mxu0 %v456
        %542 = vmatprep.subr.bf16.mxu0 0
        %543 = vmatpush1.bf16.msra.mxu0 %v459
        %544 = vmatprep.subr.bf16.mxu0 0
        %545 = vmatpush1.bf16.msra.mxu0 %v462
        %546 = vmatprep.subr.bf16.mxu0 0
        %547 = vmatpush1.bf16.msra.mxu0 %v465
        %548 = vmatprep.subr.bf16.mxu0 0
        %549 = vmatpush1.bf16.msra.mxu0 %v468
        %550 = vmatprep.subr.bf16.mxu0 0
        %551 = vmatpush1.bf16.msra.mxu0 0
        %552 = vmatprep.subr.bf16.mxu0 0
        %553 = vmatpush1.bf16.msra.mxu0 0
        %554 = vmatprep.subr.bf16.mxu0 0
        %555 = vmatpush1.bf16.msra.mxu0 0
        %556 = vmatprep.subr.bf16.mxu0 0
        %557 = vmatpush1.bf16.msra.mxu0 0
        %558 = vmatprep.subr.bf16.mxu0 0
        %559 = vmatpush1.bf16.msra.mxu0 0
        %560 = vmatprep.subr.bf16.mxu0 0
        %561 = vmatpush1.bf16.msra.mxu0 0
        %562 = vmatprep.subr.bf16.mxu0 0
        %563 = vmatpush1.bf16.msra.mxu0 0
        %564 = vmatprep.subr.bf16.mxu0 0
        %565 = vmatpush1.bf16.msra.mxu0 0
        %566 = vmatprep.mubr.bf16.mxu0 0
        %567 = vmatmul.mubr.bf16.gmra.mrb[0].mxu0 %v332
        %v568 = vpop.f32.mrb[0].mxu0
        %v569 = vadd.f32 0.0, %v568
        %v570 = vpop.f32.mrb[0].mxu0
        %v571 = vpop.f32.mrb[0].mxu0
        %v572 = vpop.f32.mrb[0].mxu0
        %573 = vdwg.mxu0
        %v574 = vpack.c.bf16 %v528, %v528
        %v575 = vpack.c.bf16 %v530, %v530
        %v576 = vpack.c.bf16 %v569, %v569
        %vm577 = vcmask 257024
        %578 = vst.msk [vmem:[%s292] sm:$0xf] %vm577, %v574
        %v580 = vunpack.c.l.b16 %v574
        %v581 = vpack.c.b16 %v580, %v580
        %582 = vrot.lane.b32.xlu0 %v581, 96
        %v583 = vpop.permute.xlu0 %582
        %s585 = scalar_lea.vmem %s292, 4
        %586 = vst.msk [vmem:[%s585] sm:$0xf] %vm577, %v583
        %587 = vrot.lane.b32.xlu0 %v581, 64
        %v588 = vpop.permute.xlu0 %587
        %s590 = scalar_lea.vmem %s292, 8
        %591 = vst.msk [vmem:[%s590] sm:$0xf] %vm577, %v588
        %592 = vrot.lane.b32.xlu0 %v581, 32
        %v593 = vpop.permute.xlu0 %592
        %s595 = scalar_lea.vmem %s292, 12
        %596 = vst.msk [vmem:[%s595] sm:$0xf] %vm577, %v593
        %597 = vst.msk [vmem:[%s300] sm:$0xf] %vm577, %v575
        %v599 = vunpack.c.l.b16 %v575
        %v600 = vpack.c.b16 %v599, %v599
        %601 = vrot.lane.b32.xlu0 %v600, 96
        %v602 = vpop.permute.xlu0 %601
        %s604 = scalar_lea.vmem %s300, 4
        %605 = vst.msk [vmem:[%s604] sm:$0xf] %vm577, %v602
        %606 = vrot.lane.b32.xlu0 %v600, 64
        %v607 = vpop.permute.xlu0 %606
        %s609 = scalar_lea.vmem %s300, 8
        %610 = vst.msk [vmem:[%s609] sm:$0xf] %vm577, %v607
        %611 = vrot.lane.b32.xlu0 %v600, 32
        %v612 = vpop.permute.xlu0 %611
        %s614 = scalar_lea.vmem %s300, 12
        %615 = vst.msk [vmem:[%s614] sm:$0xf] %vm577, %v612
        %616 = vst.msk [vmem:[%s308] sm:$0xf] %vm577, %v576
        %v618 = vunpack.c.l.b16 %v576
        %v619 = vpack.c.b16 %v618, %v618
        %620 = vrot.lane.b32.xlu0 %v619, 96
        %v621 = vpop.permute.xlu0 %620
        %s623 = scalar_lea.vmem %s308, 4
        %624 = vst.msk [vmem:[%s623] sm:$0xf] %vm577, %v621
        %625 = vrot.lane.b32.xlu0 %v619, 64
        %v626 = vpop.permute.xlu0 %625
        %s628 = scalar_lea.vmem %s308, 8
        %629 = vst.msk [vmem:[%s628] sm:$0xf] %vm577, %v626
        %630 = vrot.lane.b32.xlu0 %v619, 32
        %v631 = vpop.permute.xlu0 %630
        %s633 = scalar_lea.vmem %s308, 12
        %634 = vst.msk [vmem:[%s633] sm:$0xf] %vm577, %v631
        %p635 = scmp.lt.s32.totalorder %s22, 1
        %s636 = scalar_select %p635, %s22, 1
        %p637 = scmp.lt.s32.totalorder %s23, 0
        %s638 = scalar_select %p637, %s23, 0
        %s639 = smul.addr %s636, 4
        %s640 = sadd.s32 %s638, %s639
        %s641 = smul.addr %s640, 4
        %s642 = scalar_lea.vmem %s3, %s641
        %p643 = scmp.lt.s32.totalorder %s22, 1
        %s644 = scalar_select %p643, %s22, 1
        %p645 = scmp.lt.s32.totalorder %s23, 0
        %s646 = scalar_select %p645, %s23, 0
        %s647 = smul.addr %s644, 4
        %s648 = sadd.s32 %s646, %s647
        %s649 = smul.addr %s648, 4
        %s650 = scalar_lea.vmem %s4, %s649
        %p651 = scmp.lt.s32.totalorder %s22, 1
        %s652 = scalar_select %p651, %s22, 1
        %p653 = scmp.lt.s32.totalorder %s23, 0
        %s654 = scalar_select %p653, %s23, 0
        %s655 = smul.addr %s652, 4
        %s656 = sadd.s32 %s654, %s655
        %s657 = smul.addr %s656, 4
        %s658 = scalar_lea.vmem %s5, %s657
        // Predicated region
        $region37: #{_forward_impl.2} parent=31 // pred_check
          %p659 = pneg %p120
        $region38: #{_forward_impl.2} parent=31 // pred_check_branch
          %661 = sbr.rel (%p659) target = $region40
        $region39: #{_forward_impl.2} parent=31 // pred_region
          _
        $region40: #{_forward_impl.2} parent=31 // pred_fallthru
          _
        // Predicated region
        $region41: #{_forward_impl.2} parent=31 // pred_check
          %p662 = pneg %p148
        $region42: #{_forward_impl.2} parent=31 // pred_check_branch
          %664 = sbr.rel (%p662) target = $region44
        $region43: #{_forward_impl.2} parent=31 // pred_region
          _
        $region44: #{_forward_impl.2} parent=31 // pred_fallthru
          _
        // Predicated region
        $region45: #{_forward_impl.2} parent=31 // pred_check
          %p665 = pneg %p176
        $region46: #{_forward_impl.2} parent=31 // pred_check_branch
          %667 = sbr.rel (%p665) target = $region48
        $region47: #{_forward_impl.2} parent=31 // pred_region
          _
        $region48: #{_forward_impl.2} parent=31 // pred_fallthru
          _
      $region32: #{_forward_impl.2} parent=5 // pred_fallthru
        _
      %p668 = scmp.le.s32.totalorder 2, %s13
      // Predicated region
      $region49: #{_forward_impl.2} parent=5 // pred_check
        %p669 = pneg %p668
      $region50: #{_forward_impl.2} parent=5 // pred_check_branch
        %671 = sbr.rel (%p669) target = $region52
      $region51: #{_forward_impl.2} parent=5 // pred_region
        %s672 = ssub.s32 %s13, 2
        // Predicated region
        $region53: #{_forward_impl.2} parent=51 // pred_check
          %p673 = pneg %p126
        $region54: #{_forward_impl.2} parent=51 // pred_check_branch
          %675 = sbr.rel (%p673) target = $region56
        $region55: #{_forward_impl.2} parent=51 // pred_region
          %p676 = scmp.lt.s32.totalorder %s24, 1
          %s677 = scalar_select %p676, %s24, 1
          %p678 = scmp.lt.s32.totalorder %s25, 0
          %s679 = scalar_select %p678, %s25, 0
          %s680 = smul.addr %s677, 4
          %s681 = sadd.s32 %s679, %s680
          %s682 = smul.addr %s681, 4
          %s683 = scalar_lea.vmem %s3, %s682
        $region56: #{_forward_impl.2} parent=51 // pred_fallthru
          _
        // Predicated region
        $region57: #{_forward_impl.2} parent=51 // pred_check
          %p684 = pneg %p154
        $region58: #{_forward_impl.2} parent=51 // pred_check_branch
          %686 = sbr.rel (%p684) target = $region60
        $region59: #{_forward_impl.2} parent=51 // pred_region
          %p687 = scmp.lt.s32.totalorder %s24, 1
          %s688 = scalar_select %p687, %s24, 1
          %p689 = scmp.lt.s32.totalorder %s25, 0
          %s690 = scalar_select %p689, %s25, 0
          %s691 = smul.addr %s688, 4
          %s692 = sadd.s32 %s690, %s691
          %s693 = smul.addr %s692, 4
          %s694 = scalar_lea.vmem %s4, %s693
        $region60: #{_forward_impl.2} parent=51 // pred_fallthru
          _
        // Predicated region
        $region61: #{_forward_impl.2} parent=51 // pred_check
          %p695 = pneg %p182
        $region62: #{_forward_impl.2} parent=51 // pred_check_branch
          %697 = sbr.rel (%p695) target = $region64
        $region63: #{_forward_impl.2} parent=51 // pred_region
          %p698 = scmp.lt.s32.totalorder %s24, 1
          %s699 = scalar_select %p698, %s24, 1
          %p700 = scmp.lt.s32.totalorder %s25, 0
          %s701 = scalar_select %p700, %s25, 0
          %s702 = smul.addr %s699, 4
          %s703 = sadd.s32 %s701, %s702
          %s704 = smul.addr %s703, 4
          %s705 = scalar_lea.vmem %s5, %s704
        $region64: #{_forward_impl.2} parent=51 // pred_fallthru
          _
      $region52: #{_forward_impl.2} parent=5 // pred_fallthru
        _
    $region6: #{_forward_impl.2} parent=1 // loop_footer
      %s17 = sadd.s32 1, %s13
    $region7: #{_forward_impl.2} parent=1 // loop_footer_branch
      %12 = sbr.rel target = $region3
    $region8: #{_forward_impl.2} parent=1 // loop_exit
      _
    %706 = vsyncpa [#allocation3], 1
    %s707 = scalar_lea.sflag [#allocation3], 1
    %708 = vsyncpa %s707, 1

// kernel: _forward_impl.3
$region0: #{_forward_impl.3}
  #allocation0 [shape = 'u32[]', space=smem, size = 0x4, offset = 0x4, fixed_abs, tag = 'smem constant byte address 0x4 - core index']
  #allocation1 [shape = 'u32[144,128]{1,0:T(1,128)}', space=vmem, size = 0x12000, scoped, tag = 'internal scratch']
  #allocation2 [shape = 'f32[4,8,1]{2,1,0:T(8,128)}', space=vmem, size = 0x4000, scoped, tag = 'scratch operand']
  #allocation3 [shape = 'f32[4,8,1]{2,1,0:T(8,128)}', space=vmem, size = 0x4000, scoped, tag = 'scratch operand']
  #allocation4 [shape = 'f32[4,8,32]{2,1,0:T(8,128)}', space=vmem, size = 0x4000, scoped, tag = 'scratch operand']
  %s0 = inlined_call_operand.vmem [shape: f32[2,8,128], index: 0, kind: input, shape index: {}]
  %s1 = inlined_call_operand.vmem [shape: bf16[2,4,8,32], index: 1, kind: input, shape index: {}]
  %s2 = inlined_call_operand.vmem [shape: bf16[2,4,8,32], index: 2, kind: input, shape index: {}]
  %s3 = inlined_call_operand.vmem [shape: bf16[2,4,8,32], index: 3, kind: input, shape index: {}]
  %s4 = inlined_call_operand.vmem [shape: bf16[128,128], index: 4, kind: input, shape index: {}]
  %s5 = inlined_call_operand.vmem [shape: f32[1,128], index: 5, kind: input, shape index: {}]
  %s6 = inlined_call_operand.vmem [shape: f32[1,128], index: 6, kind: input, shape index: {}]
  %s7 = inlined_call_operand.vmem [shape: bf16[128,128], index: 7, kind: input, shape index: {}]
  %s8 = inlined_call_operand.vmem [shape: f32[1,128], index: 8, kind: input, shape index: {}]
  %s9 = inlined_call_operand.vmem [shape: bf16[128,128], index: 9, kind: input, shape index: {}]
  %s10 = inlined_call_operand.vmem [shape: f32[1,128], index: 10, kind: input, shape index: {}]
  %s11 = inlined_call_operand.vmem [shape: f32[2,8,128], index: 11, kind: output, shape index: {}]
  %s12 = sld [smem:[#allocation0]]
  $region85: #{_forward_impl.3} parent=0
    _
  %s14 = ssub.s32 1, %s12
  %s15 = scalar_select 0, %s14, %s12
  loop: start=0, step=1, limit=4
  $region2: #{_forward_impl.3} parent=0 // loop_pre_header
    _
  $region3: #{_forward_impl.3} parent=0 // loop_header
    %s17 = sphi 0, %s21
    %p18 = scmp.ge.s32.totalorder %s17, 4
    %s24 = sphi 0, %s43
    %s25 = sphi 0, %s39
    %s26 = sphi 0, %s35
    %s27 = sphi 0, %s24
    %s28 = sphi 0, %s25
    %s29 = sphi 0, %s26
    %s30 = sphi 0, %s27
    %s31 = sphi 0, %s28
    %s32 = sphi 0, %s29
    %s48 = sphi 0, %s50
    %s51 = sphi 0, %s48
    %s52 = sphi 0, %s51
    %s68 = sphi 0, %s52
    %s76 = sphi 0, %s78
    %s79 = sphi 0, %s76
    %s80 = sphi 0, %s79
    %s96 = sphi 0, %s80
    %s104 = sphi 0, %s106
    %s107 = sphi 0, %s104
    %s108 = sphi 0, %s107
    %s124 = sphi 0, %s108
    %s132 = sphi 0, %s134
    %s135 = sphi 0, %s132
    %s136 = sphi 0, %s135
    %s152 = sphi 0, %s136
    %s156 = sphi 0, %s156
    %s158 = sphi 0, %s156
    %s159 = sphi 0, %s158
    %s173 = sphi 0, %s159
    %s177 = sphi 0, %s177
    %s179 = sphi 0, %s177
    %s180 = sphi 0, %s179
    %s194 = sphi 0, %s180
    %s198 = sphi 0, %s198
    %s200 = sphi 0, %s198
    %s201 = sphi 0, %s200
    %s215 = sphi 0, %s201
    %s219 = sphi 0, %s219
    %s221 = sphi 0, %s219
    %s222 = sphi 0, %s221
    %s236 = sphi 0, %s222
    %s240 = sphi 0, %s240
    %s242 = sphi 0, %s240
    %s243 = sphi 0, %s242
    %s257 = sphi 0, %s243
    %s261 = sphi 0, %s261
    %s263 = sphi 0, %s261
    %s264 = sphi 0, %s263
    %s278 = sphi 0, %s264
    %s282 = sphi 0, %s282
    %s284 = sphi 0, %s282
    %s285 = sphi 0, %s284
    %s299 = sphi 0, %s285
    %s307 = sphi 0, %s309
    %s310 = sphi 0, %s307
    %s311 = sphi 0, %s310
    %s327 = sphi 0, %s311
  $region4: #{_forward_impl.3} parent=0 // loop_header_branch
    %20 = sbr.rel (%p18) target = $region8
  $region5: #{_forward_impl.3} parent=0 // loop_body
    %s22 = ssub.s32 %s17, 1
    %s23 = ssub.s32 %s17, 2
    %s33 = sadd.s32 1, %s26
    %p34 = scmp.ge.s32.totalorder %s33, 1
    %s35 = scalar_select %p34, 0, %s33
    %s36 = sadd.s32 1, %s25
    %s37 = scalar_select %p34, %s36, %s25
    %p38 = scmp.ge.s32.totalorder %s37, 1
    %s39 = scalar_select %p38, 0, %s37
    %s40 = sadd.s32 1, %s24
    %s41 = scalar_select %p38, %s40, %s24
    %p42 = scmp.ge.s32.totalorder %s41, 2
    %s43 = scalar_select %p42, 0, %s41
    %s44 = ssub.s32 %s24, %s43
    %s45 = ssub.s32 %s25, %s39
    %s46 = sor.u32 %s44, %s45
    %p47 = scmp.eq.s32.totalorder %s46, 0
    %s49 = sadd.s32 %s48, 1
    %s50 = scalar_select %p47, %s48, %s49
    %p53 = pneg %p47
    %p54 = scmp.eq.s32.totalorder %s17, 1
    %p55 = por %p53, %p54
    %p56 = scmp.ne.s32.totalorder %s48, %s51
    %p57 = scmp.eq.s32.totalorder %s17, 0
    %p58 = por %p56, %p57
    %p59 = scmp.ne.s32.totalorder %s48, %s51
    %p60 = scmp.eq.s32.totalorder %s22, 1
    %p61 = por %p59, %p60
    %p62 = scmp.ne.s32.totalorder %s51, %s52
    %p63 = scmp.eq.s32.totalorder %s22, 0
    %p64 = por %p62, %p63
    %p65 = scmp.ne.s32.totalorder %s51, %s52
    %p66 = scmp.eq.s32.totalorder %s23, 1
    %p67 = por %p65, %p66
    %p69 = scmp.ne.s32.totalorder %s52, %s68
    %p70 = scmp.eq.s32.totalorder %s23, 0
    %p71 = por %p69, %p70
    %s72 = ssub.s32 %s24, %s43
    %s73 = ssub.s32 %s25, %s39
    %s74 = sor.u32 %s72, %s73
    %p75 = scmp.eq.s32.totalorder %s74, 0
    %s77 = sadd.s32 %s76, 1
    %s78 = scalar_select %p75, %s76, %s77
    %p81 = pneg %p75
    %p82 = scmp.eq.s32.totalorder %s17, 1
    %p83 = por %p81, %p82
    %p84 = scmp.ne.s32.totalorder %s76, %s79
    %p85 = scmp.eq.s32.totalorder %s17, 0
    %p86 = por %p84, %p85
    %p87 = scmp.ne.s32.totalorder %s76, %s79
    %p88 = scmp.eq.s32.totalorder %s22, 1
    %p89 = por %p87, %p88
    %p90 = scmp.ne.s32.totalorder %s79, %s80
    %p91 = scmp.eq.s32.totalorder %s22, 0
    %p92 = por %p90, %p91
    %p93 = scmp.ne.s32.totalorder %s79, %s80
    %p94 = scmp.eq.s32.totalorder %s23, 1
    %p95 = por %p93, %p94
    %p97 = scmp.ne.s32.totalorder %s80, %s96
    %p98 = scmp.eq.s32.totalorder %s23, 0
    %p99 = por %p97, %p98
    %s100 = ssub.s32 %s24, %s43
    %s101 = ssub.s32 %s26, %s35
    %s102 = sor.u32 %s100, %s101
    %p103 = scmp.eq.s32.totalorder %s102, 0
    %s105 = sadd.s32 %s104, 1
    %s106 = scalar_select %p103, %s104, %s105
    %p109 = pneg %p103
    %p110 = scmp.eq.s32.totalorder %s17, 1
    %p111 = por %p109, %p110
    %p112 = scmp.ne.s32.totalorder %s104, %s107
    %p113 = scmp.eq.s32.totalorder %s17, 0
    %p114 = por %p112, %p113
    %p115 = scmp.ne.s32.totalorder %s104, %s107
    %p116 = scmp.eq.s32.totalorder %s22, 1
    %p117 = por %p115, %p116
    %p118 = scmp.ne.s32.totalorder %s107, %s108
    %p119 = scmp.eq.s32.totalorder %s22, 0
    %p120 = por %p118, %p119
    %p121 = scmp.ne.s32.totalorder %s107, %s108
    %p122 = scmp.eq.s32.totalorder %s23, 1
    %p123 = por %p121, %p122
    %p125 = scmp.ne.s32.totalorder %s108, %s124
    %p126 = scmp.eq.s32.totalorder %s23, 0
    %p127 = por %p125, %p126
    %s128 = ssub.s32 %s24, %s43
    %s129 = ssub.s32 %s26, %s35
    %s130 = sor.u32 %s128, %s129
    %p131 = scmp.eq.s32.totalorder %s130, 0
    %s133 = sadd.s32 %s132, 1
    %s134 = scalar_select %p131, %s132, %s133
    %p137 = pneg %p131
    %p138 = scmp.eq.s32.totalorder %s17, 1
    %p139 = por %p137, %p138
    %p140 = scmp.ne.s32.totalorder %s132, %s135
    %p141 = scmp.eq.s32.totalorder %s17, 0
    %p142 = por %p140, %p141
    %p143 = scmp.ne.s32.totalorder %s132, %s135
    %p144 = scmp.eq.s32.totalorder %s22, 1
    %p145 = por %p143, %p144
    %p146 = scmp.ne.s32.totalorder %s135, %s136
    %p147 = scmp.eq.s32.totalorder %s22, 0
    %p148 = por %p146, %p147
    %p149 = scmp.ne.s32.totalorder %s135, %s136
    %p150 = scmp.eq.s32.totalorder %s23, 1
    %p151 = por %p149, %p150
    %p153 = scmp.ne.s32.totalorder %s136, %s152
    %p154 = scmp.eq.s32.totalorder %s23, 0
    %p155 = por %p153, %p154
    %s157 = sadd.s32 %s156, 1
    %p160 = scmp.eq.s32.totalorder %s17, 1
    %p161 = scmp.ne.s32.totalorder %s156, %s158
    %p162 = scmp.eq.s32.totalorder %s17, 0
    %p163 = por %p161, %p162
    %p164 = scmp.ne.s32.totalorder %s156, %s158
    %p165 = scmp.eq.s32.totalorder %s22, 1
    %p166 = por %p164, %p165
    %p167 = scmp.ne.s32.totalorder %s158, %s159
    %p168 = scmp.eq.s32.totalorder %s22, 0
    %p169 = por %p167, %p168
    %p170 = scmp.ne.s32.totalorder %s158, %s159
    %p171 = scmp.eq.s32.totalorder %s23, 1
    %p172 = por %p170, %p171
    %p174 = scmp.ne.s32.totalorder %s159, %s173
    %p175 = scmp.eq.s32.totalorder %s23, 0
    %p176 = por %p174, %p175
    %s178 = sadd.s32 %s177, 1
    %p181 = scmp.eq.s32.totalorder %s17, 1
    %p182 = scmp.ne.s32.totalorder %s177, %s179
    %p183 = scmp.eq.s32.totalorder %s17, 0
    %p184 = por %p182, %p183
    %p185 = scmp.ne.s32.totalorder %s177, %s179
    %p186 = scmp.eq.s32.totalorder %s22, 1
    %p187 = por %p185, %p186
    %p188 = scmp.ne.s32.totalorder %s179, %s180
    %p189 = scmp.eq.s32.totalorder %s22, 0
    %p190 = por %p188, %p189
    %p191 = scmp.ne.s32.totalorder %s179, %s180
    %p192 = scmp.eq.s32.totalorder %s23, 1
    %p193 = por %p191, %p192
    %p195 = scmp.ne.s32.totalorder %s180, %s194
    %p196 = scmp.eq.s32.totalorder %s23, 0
    %p197 = por %p195, %p196
    %s199 = sadd.s32 %s198, 1
    %p202 = scmp.eq.s32.totalorder %s17, 1
    %p203 = scmp.ne.s32.totalorder %s198, %s200
    %p204 = scmp.eq.s32.totalorder %s17, 0
    %p205 = por %p203, %p204
    %p206 = scmp.ne.s32.totalorder %s198, %s200
    %p207 = scmp.eq.s32.totalorder %s22, 1
    %p208 = por %p206, %p207
    %p209 = scmp.ne.s32.totalorder %s200, %s201
    %p210 = scmp.eq.s32.totalorder %s22, 0
    %p211 = por %p209, %p210
    %p212 = scmp.ne.s32.totalorder %s200, %s201
    %p213 = scmp.eq.s32.totalorder %s23, 1
    %p214 = por %p212, %p213
    %p216 = scmp.ne.s32.totalorder %s201, %s215
    %p217 = scmp.eq.s32.totalorder %s23, 0
    %p218 = por %p216, %p217
    %s220 = sadd.s32 %s219, 1
    %p223 = scmp.eq.s32.totalorder %s17, 1
    %p224 = scmp.ne.s32.totalorder %s219, %s221
    %p225 = scmp.eq.s32.totalorder %s17, 0
    %p226 = por %p224, %p225
    %p227 = scmp.ne.s32.totalorder %s219, %s221
    %p228 = scmp.eq.s32.totalorder %s22, 1
    %p229 = por %p227, %p228
    %p230 = scmp.ne.s32.totalorder %s221, %s222
    %p231 = scmp.eq.s32.totalorder %s22, 0
    %p232 = por %p230, %p231
    %p233 = scmp.ne.s32.totalorder %s221, %s222
    %p234 = scmp.eq.s32.totalorder %s23, 1
    %p235 = por %p233, %p234
    %p237 = scmp.ne.s32.totalorder %s222, %s236
    %p238 = scmp.eq.s32.totalorder %s23, 0
    %p239 = por %p237, %p238
    %s241 = sadd.s32 %s240, 1
    %p244 = scmp.eq.s32.totalorder %s17, 1
    %p245 = scmp.ne.s32.totalorder %s240, %s242
    %p246 = scmp.eq.s32.totalorder %s17, 0
    %p247 = por %p245, %p246
    %p248 = scmp.ne.s32.totalorder %s240, %s242
    %p249 = scmp.eq.s32.totalorder %s22, 1
    %p250 = por %p248, %p249
    %p251 = scmp.ne.s32.totalorder %s242, %s243
    %p252 = scmp.eq.s32.totalorder %s22, 0
    %p253 = por %p251, %p252
    %p254 = scmp.ne.s32.totalorder %s242, %s243
    %p255 = scmp.eq.s32.totalorder %s23, 1
    %p256 = por %p254, %p255
    %p258 = scmp.ne.s32.totalorder %s243, %s257
    %p259 = scmp.eq.s32.totalorder %s23, 0
    %p260 = por %p258, %p259
    %s262 = sadd.s32 %s261, 1
    %p265 = scmp.eq.s32.totalorder %s17, 1
    %p266 = scmp.ne.s32.totalorder %s261, %s263
    %p267 = scmp.eq.s32.totalorder %s17, 0
    %p268 = por %p266, %p267
    %p269 = scmp.ne.s32.totalorder %s261, %s263
    %p270 = scmp.eq.s32.totalorder %s22, 1
    %p271 = por %p269, %p270
    %p272 = scmp.ne.s32.totalorder %s263, %s264
    %p273 = scmp.eq.s32.totalorder %s22, 0
    %p274 = por %p272, %p273
    %p275 = scmp.ne.s32.totalorder %s263, %s264
    %p276 = scmp.eq.s32.totalorder %s23, 1
    %p277 = por %p275, %p276
    %p279 = scmp.ne.s32.totalorder %s264, %s278
    %p280 = scmp.eq.s32.totalorder %s23, 0
    %p281 = por %p279, %p280
    %s283 = sadd.s32 %s282, 1
    %p286 = scmp.eq.s32.totalorder %s17, 1
    %p287 = scmp.ne.s32.totalorder %s282, %s284
    %p288 = scmp.eq.s32.totalorder %s17, 0
    %p289 = por %p287, %p288
    %p290 = scmp.ne.s32.totalorder %s282, %s284
    %p291 = scmp.eq.s32.totalorder %s22, 1
    %p292 = por %p290, %p291
    %p293 = scmp.ne.s32.totalorder %s284, %s285
    %p294 = scmp.eq.s32.totalorder %s22, 0
    %p295 = por %p293, %p294
    %p296 = scmp.ne.s32.totalorder %s284, %s285
    %p297 = scmp.eq.s32.totalorder %s23, 1
    %p298 = por %p296, %p297
    %p300 = scmp.ne.s32.totalorder %s285, %s299
    %p301 = scmp.eq.s32.totalorder %s23, 0
    %p302 = por %p300, %p301
    %s303 = ssub.s32 %s24, %s43
    %s304 = ssub.s32 %s25, %s39
    %s305 = sor.u32 %s303, %s304
    %p306 = scmp.eq.s32.totalorder %s305, 0
    %s308 = sadd.s32 %s307, 1
    %s309 = scalar_select %p306, %s307, %s308
    %p312 = pneg %p306
    %p313 = scmp.eq.s32.totalorder %s17, 1
    %p314 = por %p312, %p313
    %p315 = scmp.ne.s32.totalorder %s307, %s310
    %p316 = scmp.eq.s32.totalorder %s17, 0
    %p317 = por %p315, %p316
    %p318 = scmp.ne.s32.totalorder %s307, %s310
    %p319 = scmp.eq.s32.totalorder %s22, 1
    %p320 = por %p318, %p319
    %p321 = scmp.ne.s32.totalorder %s310, %s311
    %p322 = scmp.eq.s32.totalorder %s22, 0
    %p323 = por %p321, %p322
    %p324 = scmp.ne.s32.totalorder %s310, %s311
    %p325 = scmp.eq.s32.totalorder %s23, 1
    %p326 = por %p324, %p325
    %p328 = scmp.ne.s32.totalorder %s311, %s327
    %p329 = scmp.eq.s32.totalorder %s23, 0
    %p330 = por %p328, %p329
    %p331 = scmp.le.s32.totalorder 1, %s17
    %p332 = scmp.lt.s32.totalorder %s17, 3
    %p333 = pnand %p331, %p332
    %p334 = pneg %p333
    // Predicated region
    $region9: #{_forward_impl.3} parent=5 // pred_check
      _
    $region10: #{_forward_impl.3} parent=5 // pred_check_branch
      %336 = sbr.rel (%p333) target = $region12
    $region11: #{_forward_impl.3} parent=5 // pred_region
      %s337 = ssub.s32 %s17, 1
      // Predicated region
      $region13: #{_forward_impl.3} parent=11 // pred_check
        %p338 = pneg %p169
      $region14: #{_forward_impl.3} parent=11 // pred_check_branch
        %340 = sbr.rel (%p338) target = $region16
      $region15: #{_forward_impl.3} parent=11 // pred_region
        _
      $region16: #{_forward_impl.3} parent=11 // pred_fallthru
        _
      // Predicated region
      $region17: #{_forward_impl.3} parent=11 // pred_check
        %p341 = pneg %p190
      $region18: #{_forward_impl.3} parent=11 // pred_check_branch
        %343 = sbr.rel (%p341) target = $region20
      $region19: #{_forward_impl.3} parent=11 // pred_region
        _
      $region20: #{_forward_impl.3} parent=11 // pred_fallthru
        _
      // Predicated region
      $region21: #{_forward_impl.3} parent=11 // pred_check
        %p344 = pneg %p211
      $region22: #{_forward_impl.3} parent=11 // pred_check_branch
        %346 = sbr.rel (%p344) target = $region24
      $region23: #{_forward_impl.3} parent=11 // pred_region
        _
      $region24: #{_forward_impl.3} parent=11 // pred_fallthru
        _
      // Predicated region
      $region25: #{_forward_impl.3} parent=11 // pred_check
        %p347 = pneg %p232
      $region26: #{_forward_impl.3} parent=11 // pred_check_branch
        %349 = sbr.rel (%p347) target = $region28
      $region27: #{_forward_impl.3} parent=11 // pred_region
        _
      $region28: #{_forward_impl.3} parent=11 // pred_fallthru
        _
      // Predicated region
      $region29: #{_forward_impl.3} parent=11 // pred_check
        %p350 = pneg %p253
      $region30: #{_forward_impl.3} parent=11 // pred_check_branch
        %352 = sbr.rel (%p350) target = $region32
      $region31: #{_forward_impl.3} parent=11 // pred_region
        _
      $region32: #{_forward_impl.3} parent=11 // pred_fallthru
        _
      // Predicated region
      $region33: #{_forward_impl.3} parent=11 // pred_check
        %p353 = pneg %p274
      $region34: #{_forward_impl.3} parent=11 // pred_check_branch
        %355 = sbr.rel (%p353) target = $region36
      $region35: #{_forward_impl.3} parent=11 // pred_region
        _
      $region36: #{_forward_impl.3} parent=11 // pred_fallthru
        _
      // Predicated region
      $region37: #{_forward_impl.3} parent=11 // pred_check
        %p356 = pneg %p295
      $region38: #{_forward_impl.3} parent=11 // pred_check_branch
        %358 = sbr.rel (%p356) target = $region40
      $region39: #{_forward_impl.3} parent=11 // pred_region
        _
      $region40: #{_forward_impl.3} parent=11 // pred_fallthru
        _
    $region12: #{_forward_impl.3} parent=5 // pred_fallthru
      _
    %p359 = scmp.lt.s32.totalorder %s17, 2
    // Predicated region
    $region41: #{_forward_impl.3} parent=5 // pred_check
      %p360 = pneg %p359
    $region42: #{_forward_impl.3} parent=5 // pred_check_branch
      %362 = sbr.rel (%p360) target = $region44
    $region43: #{_forward_impl.3} parent=5 // pred_region
      // Predicated region
      $region45: #{_forward_impl.3} parent=43 // pred_check
        %p363 = pneg %p58
      $region46: #{_forward_impl.3} parent=43 // pred_check_branch
        %365 = sbr.rel (%p363) target = $region48
      $region47: #{_forward_impl.3} parent=43 // pred_region
        %p366 = scmp.lt.s32.totalorder %s24, 1
        %s367 = scalar_select %p366, %s24, 1
        %p368 = scmp.lt.s32.totalorder %s25, 0
        %s369 = scalar_select %p368, %s25, 0
        %s370 = sadd.s32 %s369, %s367
        %s371 = smul.addr %s370, 8
        %s372 = scalar_lea.vmem %s0, %s371
      $region48: #{_forward_impl.3} parent=43 // pred_fallthru
        _
      // Predicated region
      $region49: #{_forward_impl.3} parent=43 // pred_check
        %p373 = pneg %p86
      $region50: #{_forward_impl.3} parent=43 // pred_check_branch
        %375 = sbr.rel (%p373) target = $region52
      $region51: #{_forward_impl.3} parent=43 // pred_region
        %p376 = scmp.lt.s32.totalorder %s24, 1
        %s377 = scalar_select %p376, %s24, 1
        %p378 = scmp.lt.s32.totalorder %s25, 0
        %s379 = scalar_select %p378, %s25, 0
        %s380 = smul.addr %s377, 4
        %s381 = sadd.s32 %s379, %s380
        %s382 = smul.addr %s381, 4
        %s383 = scalar_lea.vmem %s1, %s382
      $region52: #{_forward_impl.3} parent=43 // pred_fallthru
        _
      // Predicated region
      $region53: #{_forward_impl.3} parent=43 // pred_check
        %p384 = pneg %p114
      $region54: #{_forward_impl.3} parent=43 // pred_check_branch
        %386 = sbr.rel (%p384) target = $region56
      $region55: #{_forward_impl.3} parent=43 // pred_region
        %p387 = scmp.lt.s32.totalorder %s24, 1
        %s388 = scalar_select %p387, %s24, 1
        %p389 = scmp.lt.s32.totalorder %s26, 0
        %s390 = scalar_select %p389, %s26, 0
        %s391 = smul.addr %s388, 4
        %s392 = sadd.s32 %s390, %s391
        %s393 = smul.addr %s392, 4
        %s394 = scalar_lea.vmem %s2, %s393
      $region56: #{_forward_impl.3} parent=43 // pred_fallthru
        _
      // Predicated region
      $region57: #{_forward_impl.3} parent=43 // pred_check
        %p395 = pneg %p142
      $region58: #{_forward_impl.3} parent=43 // pred_check_branch
        %397 = sbr.rel (%p395) target = $region60
      $region59: #{_forward_impl.3} parent=43 // pred_region
        %p398 = scmp.lt.s32.totalorder %s24, 1
        %s399 = scalar_select %p398, %s24, 1
        %p400 = scmp.lt.s32.totalorder %s26, 0
        %s401 = scalar_select %p400, %s26, 0
        %s402 = smul.addr %s399, 4
        %s403 = sadd.s32 %s401, %s402
        %s404 = smul.addr %s403, 4
        %s405 = scalar_lea.vmem %s3, %s404
      $region60: #{_forward_impl.3} parent=43 // pred_fallthru
        _
    $region44: #{_forward_impl.3} parent=5 // pred_fallthru
      _
    %p406 = scmp.le.s32.totalorder 1, %s17
    %p407 = scmp.lt.s32.totalorder %s17, 3
    %p408 = pnand %p406, %p407
    %p409 = pneg %p408
    // Predicated region
    $region61: #{_forward_impl.3} parent=5 // pred_check
      _
    $region62: #{_forward_impl.3} parent=5 // pred_check_branch
      %411 = sbr.rel (%p408) target = $region64
    $region63: #{_forward_impl.3} parent=5 // pred_region
      %s412 = ssub.s32 %s17, 1
      %p413 = scmp.lt.s32.totalorder %s27, 1
      %s414 = scalar_select %p413, %s27, 1
      %p415 = scmp.lt.s32.totalorder %s28, 0
      %s416 = scalar_select %p415, %s28, 0
      %s417 = sadd.s32 %s416, %s414
      %s418 = smul.addr %s417, 8
      %s419 = scalar_lea.vmem %s0, %s418
      %p420 = pneg %p64
      %p421 = pneg %p61
      %p422 = scmp.lt.s32.totalorder %s27, 1
      %s423 = scalar_select %p422, %s27, 1
      %p424 = scmp.lt.s32.totalorder %s28, 0
      %s425 = scalar_select %p424, %s28, 0
      %s426 = smul.addr %s423, 4
      %s427 = sadd.s32 %s425, %s426
      %s428 = smul.addr %s427, 4
      %s429 = scalar_lea.vmem %s1, %s428
      %p430 = pneg %p92
      %p431 = pneg %p89
      %p432 = scmp.lt.s32.totalorder %s27, 1
      %s433 = scalar_select %p432, %s27, 1
      %p434 = scmp.lt.s32.totalorder %s29, 0
      %s435 = scalar_select %p434, %s29, 0
      %s436 = smul.addr %s433, 4
      %s437 = sadd.s32 %s435, %s436
      %s438 = smul.addr %s437, 4
      %s439 = scalar_lea.vmem %s2, %s438
      %p440 = pneg %p120
      %p441 = pneg %p117
      %p442 = scmp.lt.s32.totalorder %s27, 1
      %s443 = scalar_select %p442, %s27, 1
      %p444 = scmp.lt.s32.totalorder %s29, 0
      %s445 = scalar_select %p444, %s29, 0
      %s446 = smul.addr %s443, 4
      %s447 = sadd.s32 %s445, %s446
      %s448 = smul.addr %s447, 4
      %s449 = scalar_lea.vmem %s3, %s448
      %p450 = pneg %p148
      %p451 = pneg %p145
      %p452 = pneg %p169
      %p453 = pneg %p166
      %p454 = pneg %p190
      %p455 = pneg %p187
      %p456 = pneg %p211
      %p457 = pneg %p208
      %p458 = pneg %p232
      %p459 = pneg %p229
      %p460 = pneg %p253
      %p461 = pneg %p250
      %p462 = pneg %p274
      %p463 = pneg %p271
      %p464 = pneg %p295
      %p465 = pneg %p292
      %p466 = pneg %p323
      %p467 = pneg %p320
      %p468 = scmp.lt.s32.totalorder %s27, 1
      %s469 = scalar_select %p468, %s27, 1
      %p470 = scmp.lt.s32.totalorder %s28, 0
      %s471 = scalar_select %p470, %s28, 0
      %s472 = sadd.s32 %s471, %s469
      %s473 = smul.addr %s472, 8
      %s474 = scalar_lea.vmem %s11, %s473
      %p475 = scmp.lt.s32.totalorder %s27, 1
      %s476 = scalar_select %p475, %s27, 1
      %p477 = scmp.lt.s32.totalorder %s28, 0
      %s478 = scalar_select %p477, %s28, 0
      %s479 = sadd.s32 %s478, %s476
      %s480 = smul.addr %s479, 8
      %s481 = scalar_lea.vmem %s0, %s480
      %p482 = scmp.lt.s32.totalorder %s27, 1
      %s483 = scalar_select %p482, %s27, 1
      %p484 = scmp.lt.s32.totalorder %s28, 0
      %s485 = scalar_select %p484, %s28, 0
      %s486 = smul.addr %s483, 4
      %s487 = sadd.s32 %s485, %s486
      %s488 = smul.addr %s487, 4
      %s489 = scalar_lea.vmem %s1, %s488
      %p490 = scmp.lt.s32.totalorder %s27, 1
      %s491 = scalar_select %p490, %s27, 1
      %p492 = scmp.lt.s32.totalorder %s29, 0
      %s493 = scalar_select %p492, %s29, 0
      %s494 = smul.addr %s491, 4
      %s495 = sadd.s32 %s493, %s494
      %s496 = smul.addr %s495, 4
      %s497 = scalar_lea.vmem %s2, %s496
      %p498 = scmp.lt.s32.totalorder %s27, 1
      %s499 = scalar_select %p498, %s27, 1
      %p500 = scmp.lt.s32.totalorder %s29, 0
      %s501 = scalar_select %p500, %s29, 0
      %s502 = smul.addr %s499, 4
      %s503 = sadd.s32 %s501, %s502
      %s504 = smul.addr %s503, 4
      %s505 = scalar_lea.vmem %s3, %s504
      %p506 = scmp.lt.s32.totalorder %s27, 1
      %s507 = scalar_select %p506, %s27, 1
      %p508 = scmp.lt.s32.totalorder %s28, 0
      %s509 = scalar_select %p508, %s28, 0
      %s510 = sadd.s32 %s509, %s507
      %s511 = smul.addr %s510, 8
      %s512 = scalar_lea.vmem %s11, %s511
      %p514 = scmp.eq.s32.totalorder %s29, 0
      // Predicated region
      $region65: #{_forward_impl.3} parent=63 // pred_check
        %p515 = pneg %p514
      $region66: #{_forward_impl.3} parent=63 // pred_check_branch
        %517 = sbr.rel (%p515) target = $region68
      $region67: #{_forward_impl.3} parent=63 // pred_region
        %vm518 = vcmask 7168
        %519 = vst.msk [vmem:[#allocation2] sm:$0xff] %vm518, -inf
        %520 = vst.msk [vmem:[#allocation2 + $0x8] sm:$0xff] %vm518, -inf
        %521 = vst.msk [vmem:[#allocation2 + $0x10] sm:$0xff] %vm518, -inf
        %522 = vst.msk [vmem:[#allocation2 + $0x18] sm:$0xff] %vm518, -inf
        %523 = vst.msk [vmem:[#allocation3] sm:$0xff] %vm518, 0.0
        %524 = vst.msk [vmem:[#allocation3 + $0x8] sm:$0xff] %vm518, 0.0
        %525 = vst.msk [vmem:[#allocation3 + $0x10] sm:$0xff] %vm518, 0.0
        %526 = vst.msk [vmem:[#allocation3 + $0x18] sm:$0xff] %vm518, 0.0
        %vm527 = vcmask 261120
        %528 = vst.msk [vmem:[#allocation4] sm:$0xff] %vm527, 0.0
        %529 = vst.msk [vmem:[#allocation4 + $0x8] sm:$0xff] %vm527, 0.0
        %530 = vst.msk [vmem:[#allocation4 + $0x10] sm:$0xff] %vm527, 0.0
        %531 = vst.msk [vmem:[#allocation4 + $0x18] sm:$0xff] %vm527, 0.0
      $region68: #{_forward_impl.3} parent=63 // pred_fallthru
        _
      %v532 = vld [vmem:[%s489] sm:$0xf]
      %v533 = vld [vmem:[%s489 + $0x4] sm:$0xf]
      %v534 = vld [vmem:[%s489 + $0x8] sm:$0xf]
      %v535 = vld [vmem:[%s489 + $0xc] sm:$0xf]
      %v536 = vld [vmem:[%s497] sm:$0xf]
      %v537 = vld [vmem:[%s497 + $0x4] sm:$0xf]
      %v538 = vld [vmem:[%s497 + $0x8] sm:$0xf]
      %v539 = vld [vmem:[%s497 + $0xc] sm:$0xf]
      %v540 = vld [vmem:[%s505] sm:$0xf]
      %v541 = vld [vmem:[%s505 + $0x4] sm:$0xf]
      %v542 = vld [vmem:[%s505 + $0x8] sm:$0xf]
      %v543 = vld [vmem:[%s505 + $0xc] sm:$0xf]
      %vm544 = vcmask 261120
      %v546 = vsel %vm544, %v532, 0
      %v549 = vsel %vm544, %v536, 0
      %551 = vmatprep.subr.bf16.mxu0 0
      %552 = vmatpush1.bf16.xpose.msra.mxu0 %v549
      %553 = vmatprep.subr.bf16.mxu0 0
      %554 = vmatpush1.bf16.xpose.msra.mxu0 0
      %555 = vmatprep.subr.bf16.mxu0 0
      %556 = vmatpush1.bf16.xpose.msra.mxu0 0
      %557 = vmatprep.subr.bf16.mxu0 0
      %558 = vmatpush1.bf16.xpose.msra.mxu0 0
      %559 = vmatprep.subr.bf16.mxu0 0
      %560 = vmatpush1.bf16.xpose.msra.mxu0 0
      %561 = vmatprep.subr.bf16.mxu0 0
      %562 = vmatpush1.bf16.xpose.msra.mxu0 0
      %563 = vmatprep.subr.bf16.mxu0 0
      %564 = vmatpush1.bf16.xpose.msra.mxu0 0
      %565 = vmatprep.subr.bf16.mxu0 0
      %566 = vmatpush1.bf16.xpose.msra.mxu0 0
      %567 = vmatprep.subr.bf16.mxu0 0
      %568 = vmatpush1.bf16.xpose.msra.mxu0 0
      %569 = vmatprep.subr.bf16.mxu0 0
      %570 = vmatpush1.bf16.xpose.msra.mxu0 0
      %571 = vmatprep.subr.bf16.mxu0 0
      %572 = vmatpush1.bf16.xpose.msra.mxu0 0
      %573 = vmatprep.subr.bf16.mxu0 0
      %574 = vmatpush1.bf16.xpose.msra.mxu0 0
      %575 = vmatprep.subr.bf16.mxu0 0
      %576 = vmatpush1.bf16.xpose.msra.mxu0 0
      %577 = vmatprep.subr.bf16.mxu0 0
      %578 = vmatpush1.bf16.xpose.msra.mxu0 0
      %579 = vmatprep.subr.bf16.mxu0 0
      %580 = vmatpush1.bf16.xpose.msra.mxu0 0
      %581 = vmatprep.subr.bf16.mxu0 0
      %582 = vmatpush1.bf16.xpose.msra.mxu0 0
      %583 = vmatprep.mubr.bf16.mxu0 0
      %584 = vmatmul.mubr.bf16.gmra.mrb[0].mxu0 %v546
      %v585 = vpop.f32.mrb[0].mxu0
      %v586 = vadd.f32 0.0, %v585
      %v587 = vpop.f32.mrb[0].mxu0
      %v588 = vpop.f32.mrb[0].mxu0
      %v589 = vpop.f32.mrb[0].mxu0
      %590 = vdwg.mxu0
      %v592 = vsel %vm544, %v533, 0
      %v595 = vsel %vm544, %v537, 0
      %597 = vmatprep.subr.bf16.mxu0 0
      %598 = vmatpush1.bf16.xpose.msra.mxu0 %v595
      %599 = vmatprep.subr.bf16.mxu0 0
      %600 = vmatpush1.bf16.xpose.msra.mxu0 0
      %601 = vmatprep.subr.bf16.mxu0 0
      %602 = vmatpush1.bf16.xpose.msra.mxu0 0
      %603 = vmatprep.subr.bf16.mxu0 0
      %604 = vmatpush1.bf16.xpose.msra.mxu0 0
      %605 = vmatprep.subr.bf16.mxu0 0
      %606 = vmatpush1.bf16.xpose.msra.mxu0 0
      %607 = vmatprep.subr.bf16.mxu0 0
      %608 = vmatpush1.bf16.xpose.msra.mxu0 0
      %609 = vmatprep.subr.bf16.mxu0 0
      %610 = vmatpush1.bf16.xpose.msra.mxu0 0
      %611 = vmatprep.subr.bf16.mxu0 0
      %612 = vmatpush1.bf16.xpose.msra.mxu0 0
      %613 = vmatprep.subr.bf16.mxu0 0
      %614 = vmatpush1.bf16.xpose.msra.mxu0 0
      %615 = vmatprep.subr.bf16.mxu0 0
      %616 = vmatpush1.bf16.xpose.msra.mxu0 0
      %617 = vmatprep.subr.bf16.mxu0 0
      %618 = vmatpush1.bf16.xpose.msra.mxu0 0
      %619 = vmatprep.subr.bf16.mxu0 0
      %620 = vmatpush1.bf16.xpose.msra.mxu0 0
      %621 = vmatprep.subr.bf16.mxu0 0
      %622 = vmatpush1.bf16.xpose.msra.mxu0 0
      %623 = vmatprep.subr.bf16.mxu0 0
      %624 = vmatpush1.bf16.xpose.msra.mxu0 0
      %625 = vmatprep.subr.bf16.mxu0 0
      %626 = vmatpush1.bf16.xpose.msra.mxu0 0
      %627 = vmatprep.subr.bf16.mxu0 0
      %628 = vmatpush1.bf16.xpose.msra.mxu0 0
      %629 = vmatprep.mubr.bf16.mxu0 0
      %630 = vmatmul.mubr.bf16.gmra.mrb[0].mxu0 %v592
      %v631 = vpop.f32.mrb[0].mxu0
      %v632 = vadd.f32 0.0, %v631
      %v633 = vpop.f32.mrb[0].mxu0
      %v634 = vpop.f32.mrb[0].mxu0
      %v635 = vpop.f32.mrb[0].mxu0
      %636 = vdwg.mxu0
      %v638 = vsel %vm544, %v534, 0
      %v641 = vsel %vm544, %v538, 0
      %643 = vmatprep.subr.bf16.mxu0 0
      %644 = vmatpush1.bf16.xpose.msra.mxu0 %v641
      %645 = vmatprep.subr.bf16.mxu0 0
      %646 = vmatpush1.bf16.xpose.msra.mxu0 0
      %647 = vmatprep.subr.bf16.mxu0 0
      %648 = vmatpush1.bf16.xpose.msra.mxu0 0
      %649 = vmatprep.subr.bf16.mxu0 0
      %650 = vmatpush1.bf16.xpose.msra.mxu0 0
      %651 = vmatprep.subr.bf16.mxu0 0
      %652 = vmatpush1.bf16.xpose.msra.mxu0 0
      %653 = vmatprep.subr.bf16.mxu0 0
      %654 = vmatpush1.bf16.xpose.msra.mxu0 0
      %655 = vmatprep.subr.bf16.mxu0 0
      %656 = vmatpush1.bf16.xpose.msra.mxu0 0
      %657 = vmatprep.subr.bf16.mxu0 0
      %658 = vmatpush1.bf16.xpose.msra.mxu0 0
      %659 = vmatprep.subr.bf16.mxu0 0
      %660 = vmatpush1.bf16.xpose.msra.mxu0 0
      %661 = vmatprep.subr.bf16.mxu0 0
      %662 = vmatpush1.bf16.xpose.msra.mxu0 0
      %663 = vmatprep.subr.bf16.mxu0 0
      %664 = vmatpush1.bf16.xpose.msra.mxu0 0
      %665 = vmatprep.subr.bf16.mxu0 0
      %666 = vmatpush1.bf16.xpose.msra.mxu0 0
      %667 = vmatprep.subr.bf16.mxu0 0
      %668 = vmatpush1.bf16.xpose.msra.mxu0 0
      %669 = vmatprep.subr.bf16.mxu0 0
      %670 = vmatpush1.bf16.xpose.msra.mxu0 0
      %671 = vmatprep.subr.bf16.mxu0 0
      %672 = vmatpush1.bf16.xpose.msra.mxu0 0
      %673 = vmatprep.subr.bf16.mxu0 0
      %674 = vmatpush1.bf16.xpose.msra.mxu0 0
      %675 = vmatprep.mubr.bf16.mxu0 0
      %676 = vmatmul.mubr.bf16.gmra.mrb[0].mxu0 %v638
      %v677 = vpop.f32.mrb[0].mxu0
      %v678 = vadd.f32 0.0, %v677
      %v679 = vpop.f32.mrb[0].mxu0
      %v680 = vpop.f32.mrb[0].mxu0
      %v681 = vpop.f32.mrb[0].mxu0
      %682 = vdwg.mxu0
      %v684 = vsel %vm544, %v535, 0
      %v687 = vsel %vm544, %v539, 0
      %689 = vmatprep.subr.bf16.mxu0 0
      %690 = vmatpush1.bf16.xpose.msra.mxu0 %v687
      %691 = vmatprep.subr.bf16.mxu0 0
      %692 = vmatpush1.bf16.xpose.msra.mxu0 0
      %693 = vmatprep.subr.bf16.mxu0 0
      %694 = vmatpush1.bf16.xpose.msra.mxu0 0
      %695 = vmatprep.subr.bf16.mxu0 0
      %696 = vmatpush1.bf16.xpose.msra.mxu0 0
      %697 = vmatprep.subr.bf16.mxu0 0
      %698 = vmatpush1.bf16.xpose.msra.mxu0 0
      %699 = vmatprep.subr.bf16.mxu0 0
      %700 = vmatpush1.bf16.xpose.msra.mxu0 0
      %701 = vmatprep.subr.bf16.mxu0 0
      %702 = vmatpush1.bf16.xpose.msra.mxu0 0
      %703 = vmatprep.subr.bf16.mxu0 0
      %704 = vmatpush1.bf16.xpose.msra.mxu0 0
      %705 = vmatprep.subr.bf16.mxu0 0
      %706 = vmatpush1.bf16.xpose.msra.mxu0 0
      %707 = vmatprep.subr.bf16.mxu0 0
      %708 = vmatpush1.bf16.xpose.msra.mxu0 0
      %709 = vmatprep.subr.bf16.mxu0 0
      %710 = vmatpush1.bf16.xpose.msra.mxu0 0
      %711 = vmatprep.subr.bf16.mxu0 0
      %712 = vmatpush1.bf16.xpose.msra.mxu0 0
      %713 = vmatprep.subr.bf16.mxu0 0
      %714 = vmatpush1.bf16.xpose.msra.mxu0 0
      %715 = vmatprep.subr.bf16.mxu0 0
      %716 = vmatpush1.bf16.xpose.msra.mxu0 0
      %717 = vmatprep.subr.bf16.mxu0 0
      %718 = vmatpush1.bf16.xpose.msra.mxu0 0
      %719 = vmatprep.subr.bf16.mxu0 0
      %720 = vmatpush1.bf16.xpose.msra.mxu0 0
      %721 = vmatprep.mubr.bf16.mxu0 0
      %722 = vmatmul.mubr.bf16.gmra.mrb[0].mxu0 %v684
      %v723 = vpop.f32.mrb[0].mxu0
      %v724 = vadd.f32 0.0, %v723
      %v725 = vpop.f32.mrb[0].mxu0
      %v726 = vpop.f32.mrb[0].mxu0
      %v727 = vpop.f32.mrb[0].mxu0
      %728 = vdwg.mxu0
      %v729 = vld [vmem:[#allocation2] sm:$0xff]
      %v730 = vld [vmem:[#allocation2 + $0x8] sm:$0xff]
      %v731 = vld [vmem:[#allocation2 + $0x10] sm:$0xff]
      %v732 = vld [vmem:[#allocation2 + $0x18] sm:$0xff]
      %vm733 = vcmask 64512
      %v734 = vsel %vm733, %v586, -inf
      %735 = vmax.xlane.f32.xlu0 %v734
      %v736 = vpop.xlane.xlu0 %735
      %v737 = vsel %vm733, %v632, -inf
      %738 = vmax.xlane.f32.xlu0 %v737
      %v739 = vpop.xlane.xlu0 %738
      %v740 = vsel %vm733, %v678, -inf
      %741 = vmax.xlane.f32.xlu0 %v740
      %v742 = vpop.xlane.xlu0 %741
      %v743 = vsel %vm733, %v724, -inf
      %744 = vmax.xlane.f32.xlu0 %v743
      %v745 = vpop.xlane.xlu0 %744
      %v746 = vmax.f32 %v729, %v736
      %v747 = vmax.f32 %v730, %v739
      %v748 = vmax.f32 %v731, %v742
      %v749 = vmax.f32 %v732, %v745
      %v750 = vsub.f32 %v729, %v746
      %v751 = vsub.f32 %v730, %v747
      %v752 = vsub.f32 %v731, %v748
      %v753 = vsub.f32 %v732, %v749
      %v754 = vmul.f32 %v750, 1.442695
      %v755 = vpow.pop %v754
      %v756 = vmul.f32 %v751, 1.442695
      %v757 = vpow.pop %v756
      %v758 = vmul.f32 %v752, 1.442695
      %v759 = vpow.pop %v758
      %v760 = vmul.f32 %v753, 1.442695
      %v761 = vpow.pop %v760
      %763 = vset.pattern.permute.xlu0 0
      %764 = vperm.xlu0 %763, %v746
      %v765 = vpop.permute.xlu0 %764
      %768 = vset.pattern.permute.xlu0 0
      %769 = vperm.xlu0 %768, %v747
      %v770 = vpop.permute.xlu0 %769
      %773 = vset.pattern.permute.xlu0 0
      %774 = vperm.xlu0 %773, %v748
      %v775 = vpop.permute.xlu0 %774
      %778 = vset.pattern.permute.xlu0 0
      %779 = vperm.xlu0 %778, %v749
      %v780 = vpop.permute.xlu0 %779
      %v782 = vsub.f32 %v586, %v765
      %v783 = vsub.f32 %v632, %v770
      %v784 = vsub.f32 %v678, %v775
      %v785 = vsub.f32 %v724, %v780
      %v786 = vmul.f32 %v782, 1.442695
      %v787 = vpow.pop %v786
      %v788 = vmul.f32 %v783, 1.442695
      %v789 = vpow.pop %v788
      %v790 = vmul.f32 %v784, 1.442695
      %v791 = vpow.pop %v790
      %v792 = vmul.f32 %v785, 1.442695
      %v793 = vpow.pop %v792
      %v794 = vld [vmem:[#allocation3] sm:$0xff]
      %v795 = vld [vmem:[#allocation3 + $0x8] sm:$0xff]
      %v796 = vld [vmem:[#allocation3 + $0x10] sm:$0xff]
      %v797 = vld [vmem:[#allocation3 + $0x18] sm:$0xff]
      %v798 = vmul.f32 %v755, %v794
      %v799 = vmul.f32 %v757, %v795
      %v800 = vmul.f32 %v759, %v796
      %v801 = vmul.f32 %v761, %v797
      %v802 = vsel %vm733, %v787, 0.0
      %803 = vadd.xlane.f32.xlu0 %v802
      %v804 = vpop.xlane.xlu0 %803
      %v805 = vsel %vm733, %v789, 0.0
      %806 = vadd.xlane.f32.xlu0 %v805
      %v807 = vpop.xlane.xlu0 %806
      %v808 = vsel %vm733, %v791, 0.0
      %809 = vadd.xlane.f32.xlu0 %v808
      %v810 = vpop.xlane.xlu0 %809
      %v811 = vsel %vm733, %v793, 0.0
      %812 = vadd.xlane.f32.xlu0 %v811
      %v813 = vpop.xlane.xlu0 %812
      %v814 = vadd.f32 %v798, %v804
      %v815 = vadd.f32 %v799, %v807
      %v816 = vadd.f32 %v800, %v810
      %v817 = vadd.f32 %v801, %v813
      %vm818 = vcmask 7168
      %819 = vst.msk [vmem:[#allocation3] sm:$0xff] %vm818, %v814
      %820 = vst.msk [vmem:[#allocation3 + $0x8] sm:$0xff] %vm818, %v815
      %821 = vst.msk [vmem:[#allocation3 + $0x10] sm:$0xff] %vm818, %v816
      %822 = vst.msk [vmem:[#allocation3 + $0x18] sm:$0xff] %vm818, %v817
      %v823 = vpack.c.bf16 %v787, %v787
      %v824 = vpack.c.bf16 %v789, %v789
      %v825 = vpack.c.bf16 %v791, %v791
      %v826 = vpack.c.bf16 %v793, %v793
      %v828 = vsel %vm733, %v823, 0
      %vm830 = vcmask 1043456
      %v832 = vsel %vm830, %v540, 0
      %834 = vmatprep.subr.bf16.mxu0 0
      %835 = vmatpush1.bf16.msra.mxu0 %v832
      %836 = vmatprep.subr.bf16.mxu0 0
      %837 = vmatpush1.bf16.msra.mxu0 0
      %838 = vmatprep.subr.bf16.mxu0 0
      %839 = vmatpush1.bf16.msra.mxu0 0
      %840 = vmatprep.subr.bf16.mxu0 0
      %841 = vmatpush1.bf16.msra.mxu0 0
      %842 = vmatprep.subr.bf16.mxu0 0
      %843 = vmatpush1.bf16.msra.mxu0 0
      %844 = vmatprep.subr.bf16.mxu0 0
      %845 = vmatpush1.bf16.msra.mxu0 0
      %846 = vmatprep.subr.bf16.mxu0 0
      %847 = vmatpush1.bf16.msra.mxu0 0
      %848 = vmatprep.subr.bf16.mxu0 0
      %849 = vmatpush1.bf16.msra.mxu0 0
      %850 = vmatprep.subr.bf16.mxu0 0
      %851 = vmatpush1.bf16.msra.mxu0 0
      %852 = vmatprep.subr.bf16.mxu0 0
      %853 = vmatpush1.bf16.msra.mxu0 0
      %854 = vmatprep.subr.bf16.mxu0 0
      %855 = vmatpush1.bf16.msra.mxu0 0
      %856 = vmatprep.subr.bf16.mxu0 0
      %857 = vmatpush1.bf16.msra.mxu0 0
      %858 = vmatprep.subr.bf16.mxu0 0
      %859 = vmatpush1.bf16.msra.mxu0 0
      %860 = vmatprep.subr.bf16.mxu0 0
      %861 = vmatpush1.bf16.msra.mxu0 0
      %862 = vmatprep.subr.bf16.mxu0 0
      %863 = vmatpush1.bf16.msra.mxu0 0
      %864 = vmatprep.subr.bf16.mxu0 0
      %865 = vmatpush1.bf16.msra.mxu0 0
      %866 = vmatprep.mubr.bf16.mxu0 0
      %867 = vmatmul.mubr.bf16.gmra.mrb[0].mxu0 %v828
      %v868 = vpop.f32.mrb[0].mxu0
      %v869 = vadd.f32 0.0, %v868
      %v870 = vpop.f32.mrb[0].mxu0
      %v871 = vpop.f32.mrb[0].mxu0
      %v872 = vpop.f32.mrb[0].mxu0
      %873 = vdwg.mxu0
      %v875 = vsel %vm733, %v824, 0
      %v878 = vsel %vm830, %v541, 0
      %880 = vmatprep.subr.bf16.mxu0 0
      %881 = vmatpush1.bf16.msra.mxu0 %v878
      %882 = vmatprep.subr.bf16.mxu0 0
      %883 = vmatpush1.bf16.msra.mxu0 0
      %884 = vmatprep.subr.bf16.mxu0 0
      %885 = vmatpush1.bf16.msra.mxu0 0
      %886 = vmatprep.subr.bf16.mxu0 0
      %887 = vmatpush1.bf16.msra.mxu0 0
      %888 = vmatprep.subr.bf16.mxu0 0
      %889 = vmatpush1.bf16.msra.mxu0 0
      %890 = vmatprep.subr.bf16.mxu0 0
      %891 = vmatpush1.bf16.msra.mxu0 0
      %892 = vmatprep.subr.bf16.mxu0 0
      %893 = vmatpush1.bf16.msra.mxu0 0
      %894 = vmatprep.subr.bf16.mxu0 0
      %895 = vmatpush1.bf16.msra.mxu0 0
      %896 = vmatprep.subr.bf16.mxu0 0
      %897 = vmatpush1.bf16.msra.mxu0 0
      %898 = vmatprep.subr.bf16.mxu0 0
      %899 = vmatpush1.bf16.msra.mxu0 0
      %900 = vmatprep.subr.bf16.mxu0 0
      %901 = vmatpush1.bf16.msra.mxu0 0
      %902 = vmatprep.subr.bf16.mxu0 0
      %903 = vmatpush1.bf16.msra.mxu0 0
      %904 = vmatprep.subr.bf16.mxu0 0
      %905 = vmatpush1.bf16.msra.mxu0 0
      %906 = vmatprep.subr.bf16.mxu0 0
      %907 = vmatpush1.bf16.msra.mxu0 0
      %908 = vmatprep.subr.bf16.mxu0 0
      %909 = vmatpush1.bf16.msra.mxu0 0
      %910 = vmatprep.subr.bf16.mxu0 0
      %911 = vmatpush1.bf16.msra.mxu0 0
      %912 = vmatprep.mubr.bf16.mxu0 0
      %913 = vmatmul.mubr.bf16.gmra.mrb[0].mxu0 %v875
      %v914 = vpop.f32.mrb[0].mxu0
      %v915 = vadd.f32 0.0, %v914
      %v916 = vpop.f32.mrb[0].mxu0
      %v917 = vpop.f32.mrb[0].mxu0
      %v918 = vpop.f32.mrb[0].mxu0
      %919 = vdwg.mxu0
      %v921 = vsel %vm733, %v825, 0
      %v924 = vsel %vm830, %v542, 0
      %926 = vmatprep.subr.bf16.mxu0 0
      %927 = vmatpush1.bf16.msra.mxu0 %v924
      %928 = vmatprep.subr.bf16.mxu0 0
      %929 = vmatpush1.bf16.msra.mxu0 0
      %930 = vmatprep.subr.bf16.mxu0 0
      %931 = vmatpush1.bf16.msra.mxu0 0
      %932 = vmatprep.subr.bf16.mxu0 0
      %933 = vmatpush1.bf16.msra.mxu0 0
      %934 = vmatprep.subr.bf16.mxu0 0
      %935 = vmatpush1.bf16.msra.mxu0 0
      %936 = vmatprep.subr.bf16.mxu0 0
      %937 = vmatpush1.bf16.msra.mxu0 0
      %938 = vmatprep.subr.bf16.mxu0 0
      %939 = vmatpush1.bf16.msra.mxu0 0
      %940 = vmatprep.subr.bf16.mxu0 0
      %941 = vmatpush1.bf16.msra.mxu0 0
      %942 = vmatprep.subr.bf16.mxu0 0
      %943 = vmatpush1.bf16.msra.mxu0 0
      %944 = vmatprep.subr.bf16.mxu0 0
      %945 = vmatpush1.bf16.msra.mxu0 0
      %946 = vmatprep.subr.bf16.mxu0 0
      %947 = vmatpush1.bf16.msra.mxu0 0
      %948 = vmatprep.subr.bf16.mxu0 0
      %949 = vmatpush1.bf16.msra.mxu0 0
      %950 = vmatprep.subr.bf16.mxu0 0
      %951 = vmatpush1.bf16.msra.mxu0 0
      %952 = vmatprep.subr.bf16.mxu0 0
      %953 = vmatpush1.bf16.msra.mxu0 0
      %954 = vmatprep.subr.bf16.mxu0 0
      %955 = vmatpush1.bf16.msra.mxu0 0
      %956 = vmatprep.subr.bf16.mxu0 0
      %957 = vmatpush1.bf16.msra.mxu0 0
      %958 = vmatprep.mubr.bf16.mxu0 0
      %959 = vmatmul.mubr.bf16.gmra.mrb[0].mxu0 %v921
      %v960 = vpop.f32.mrb[0].mxu0
      %v961 = vadd.f32 0.0, %v960
      %v962 = vpop.f32.mrb[0].mxu0
      %v963 = vpop.f32.mrb[0].mxu0
      %v964 = vpop.f32.mrb[0].mxu0
      %965 = vdwg.mxu0
      %v967 = vsel %vm733, %v826, 0
      %v970 = vsel %vm830, %v543, 0
      %972 = vmatprep.subr.bf16.mxu0 0
      %973 = vmatpush1.bf16.msra.mxu0 %v970
      %974 = vmatprep.subr.bf16.mxu0 0
      %975 = vmatpush1.bf16.msra.mxu0 0
      %976 = vmatprep.subr.bf16.mxu0 0
      %977 = vmatpush1.bf16.msra.mxu0 0
      %978 = vmatprep.subr.bf16.mxu0 0
      %979 = vmatpush1.bf16.msra.mxu0 0
      %980 = vmatprep.subr.bf16.mxu0 0
      %981 = vmatpush1.bf16.msra.mxu0 0
      %982 = vmatprep.subr.bf16.mxu0 0
      %983 = vmatpush1.bf16.msra.mxu0 0
      %984 = vmatprep.subr.bf16.mxu0 0
      %985 = vmatpush1.bf16.msra.mxu0 0
      %986 = vmatprep.subr.bf16.mxu0 0
      %987 = vmatpush1.bf16.msra.mxu0 0
      %988 = vmatprep.subr.bf16.mxu0 0
      %989 = vmatpush1.bf16.msra.mxu0 0
      %990 = vmatprep.subr.bf16.mxu0 0
      %991 = vmatpush1.bf16.msra.mxu0 0
      %992 = vmatprep.subr.bf16.mxu0 0
      %993 = vmatpush1.bf16.msra.mxu0 0
      %994 = vmatprep.subr.bf16.mxu0 0
      %995 = vmatpush1.bf16.msra.mxu0 0
      %996 = vmatprep.subr.bf16.mxu0 0
      %997 = vmatpush1.bf16.msra.mxu0 0
      %998 = vmatprep.subr.bf16.mxu0 0
      %999 = vmatpush1.bf16.msra.mxu0 0
      %1000 = vmatprep.subr.bf16.mxu0 0
      %1001 = vmatpush1.bf16.msra.mxu0 0
      %1002 = vmatprep.subr.bf16.mxu0 0
      %1003 = vmatpush1.bf16.msra.mxu0 0
      %1004 = vmatprep.mubr.bf16.mxu0 0
      %1005 = vmatmul.mubr.bf16.gmra.mrb[0].mxu0 %v967
      %v1006 = vpop.f32.mrb[0].mxu0
      %v1007 = vadd.f32 0.0, %v1006
      %v1008 = vpop.f32.mrb[0].mxu0
      %v1009 = vpop.f32.mrb[0].mxu0
      %v1010 = vpop.f32.mrb[0].mxu0
      %1011 = vdwg.mxu0
      %v1012 = vld [vmem:[#allocation4] sm:$0xff]
      %v1013 = vld [vmem:[#allocation4 + $0x8] sm:$0xff]
      %v1014 = vld [vmem:[#allocation4 + $0x10] sm:$0xff]
      %v1015 = vld [vmem:[#allocation4 + $0x18] sm:$0xff]
      %1017 = vset.pattern.permute.xlu0 0
      %1018 = vperm.xlu0 %1017, %v755
      %v1019 = vpop.permute.xlu0 %1018
      %1022 = vset.pattern.permute.xlu0 0
      %1023 = vperm.xlu0 %1022, %v757
      %v1024 = vpop.permute.xlu0 %1023
      %1027 = vset.pattern.permute.xlu0 0
      %1028 = vperm.xlu0 %1027, %v759
      %v1029 = vpop.permute.xlu0 %1028
      %1032 = vset.pattern.permute.xlu0 0
      %1033 = vperm.xlu0 %1032, %v761
      %v1034 = vpop.permute.xlu0 %1033
      %v1036 = vmul.f32 %v1019, %v1012
      %v1037 = vmul.f32 %v1024, %v1013
      %v1038 = vmul.f32 %v1029, %v1014
      %v1039 = vmul.f32 %v1034, %v1015
      %v1040 = vadd.f32 %v1036, %v869
      %v1041 = vadd.f32 %v1037, %v915
      %v1042 = vadd.f32 %v1038, %v961
      %v1043 = vadd.f32 %v1039, %v1007
      %1044 = vst.msk [vmem:[#allocation4] sm:$0xff] %vm544, %v1040
      %1045 = vst.msk [vmem:[#allocation4 + $0x8] sm:$0xff] %vm544, %v1041
      %1046 = vst.msk [vmem:[#allocation4 + $0x10] sm:$0xff] %vm544, %v1042
      %1047 = vst.msk [vmem:[#allocation4 + $0x18] sm:$0xff] %vm544, %v1043
      %1048 = vst.msk [vmem:[#allocation2] sm:$0xff] %vm818, %v746
      %1049 = vst.msk [vmem:[#allocation2 + $0x8] sm:$0xff] %vm818, %v747
      %1050 = vst.msk [vmem:[#allocation2 + $0x10] sm:$0xff] %vm818, %v748
      %1051 = vst.msk [vmem:[#allocation2 + $0x18] sm:$0xff] %vm818, %v749
      // Predicated region
      $region69: #{_forward_impl.3} parent=63 // pred_check
        %p1052 = pneg %p514
      $region70: #{_forward_impl.3} parent=63 // pred_check_branch
        %1054 = sbr.rel (%p1052) target = $region72
      $region71: #{_forward_impl.3} parent=63 // pred_region
        %v1055 = vld [vmem:[#allocation3] sm:$0xff]
        %v1056 = vld [vmem:[#allocation3 + $0x8] sm:$0xff]
        %v1057 = vld [vmem:[#allocation3 + $0x10] sm:$0xff]
        %v1058 = vld [vmem:[#allocation3 + $0x18] sm:$0xff]
        %v1059 = vrcp.pop %v1055
        %v1060 = vrcp.pop %v1056
        %v1061 = vrcp.pop %v1057
        %v1062 = vrcp.pop %v1058
        %v1063 = vld [vmem:[#allocation4] sm:$0xff]
        %v1064 = vld [vmem:[#allocation4 + $0x8] sm:$0xff]
        %v1065 = vld [vmem:[#allocation4 + $0x10] sm:$0xff]
        %v1066 = vld [vmem:[#allocation4 + $0x18] sm:$0xff]
        %1068 = vset.pattern.permute.xlu0 0
        %1069 = vperm.xlu0 %1068, %v1059
        %v1070 = vpop.permute.xlu0 %1069
        %1073 = vset.pattern.permute.xlu0 0
        %1074 = vperm.xlu0 %1073, %v1060
        %v1075 = vpop.permute.xlu0 %1074
        %1078 = vset.pattern.permute.xlu0 0
        %1079 = vperm.xlu0 %1078, %v1061
        %v1080 = vpop.permute.xlu0 %1079
        %1083 = vset.pattern.permute.xlu0 0
        %1084 = vperm.xlu0 %1083, %v1062
        %v1085 = vpop.permute.xlu0 %1084
        %v1087 = vmul.f32 %v1063, %v1070
        %v1088 = vmul.f32 %v1064, %v1075
        %v1089 = vmul.f32 %v1065, %v1080
        %v1090 = vmul.f32 %v1066, %v1085
        %v1091 = vpack.c.bf16 %v1087, %v1087
        %v1092 = vpack.c.bf16 %v1088, %v1088
        %v1093 = vpack.c.bf16 %v1089, %v1089
        %v1094 = vpack.c.bf16 %v1090, %v1090
        %1096 = vrot.lane.b32.xlu0 %v1092, 32
        %v1097 = vpop.permute.xlu0 %1096
        %1099 = vrot.lane.b32.xlu0 %v1093, 64
        %v1100 = vpop.permute.xlu0 %1099
        %1102 = vrot.lane.b32.xlu0 %v1094, 96
        %v1103 = vpop.permute.xlu0 %1102
        %v1106 = vsel %vm544, %v1091, %v1097
        %vm1107 = vcmask 523264
        %v1109 = vsel %vm1107, %v1106, %v1100
        %vm1110 = vcmask 785408
        %v1112 = vsel %vm1110, %v1109, %v1103
        %v1114 = vld [vmem:[%s4] sm:$0xf]
        %v1115 = vld [vmem:[%s4 + $0x4] sm:$0xf]
        %v1116 = vld [vmem:[%s4 + $0x8] sm:$0xf]
        %v1117 = vld [vmem:[%s4 + $0xc] sm:$0xf]
        %v1118 = vld [vmem:[%s4 + $0x10] sm:$0xf]
        %v1119 = vld [vmem:[%s4 + $0x14] sm:$0xf]
        %v1120 = vld [vmem:[%s4 + $0x18] sm:$0xf]
        %v1121 = vld [vmem:[%s4 + $0x1c] sm:$0xf]
        %v1122 = vld [vmem:[%s4 + $0x20] sm:$0xf]
        %v1123 = vld [vmem:[%s4 + $0x24] sm:$0xf]
        %v1124 = vld [vmem:[%s4 + $0x28] sm:$0xf]
        %v1125 = vld [vmem:[%s4 + $0x2c] sm:$0xf]
        %v1126 = vld [vmem:[%s4 + $0x30] sm:$0xf]
        %v1127 = vld [vmem:[%s4 + $0x34] sm:$0xf]
        %v1128 = vld [vmem:[%s4 + $0x38] sm:$0xf]
        %v1129 = vld [vmem:[%s4 + $0x3c] sm:$0xf]
        %v1130 = vld [vmem:[%s5] sm:$0x1]
        %v1132 = vlaneseq
        %v1133 = vshrl.u32 %v1132, 7
        %v1134 = vsub.s32 0, %v1133
        %v1135 = vrot.slane %v1130, %v1134
        %v1153 = vunpack.c.l.b16 %v1114
        %v1154 = vunpack.c.l.b16 %v1115
        %v1155 = vunpack.c.l.b16 %v1116
        %v1156 = vunpack.c.l.b16 %v1117
        %v1157 = vunpack.c.l.b16 %v1118
        %v1158 = vunpack.c.l.b16 %v1119
        %v1159 = vunpack.c.l.b16 %v1120
        %v1160 = vunpack.c.l.b16 %v1121
        %v1161 = vunpack.c.l.b16 %v1122
        %v1162 = vunpack.c.l.b16 %v1123
        %v1163 = vunpack.c.l.b16 %v1124
        %v1164 = vunpack.c.l.b16 %v1125
        %v1165 = vunpack.c.l.b16 %v1126
        %v1166 = vunpack.c.l.b16 %v1127
        %v1167 = vunpack.c.l.b16 %v1128
        %v1168 = vunpack.c.l.b16 %v1129
        %v1169 = vpack.c.b16 %v1154, %v1153
        %v1170 = vpack.c.b16 %v1156, %v1155
        %v1171 = vpack.c.b16 %v1158, %v1157
        %v1172 = vpack.c.b16 %v1160, %v1159
        %v1173 = vpack.c.b16 %v1162, %v1161
        %v1174 = vpack.c.b16 %v1164, %v1163
        %v1175 = vpack.c.b16 %v1166, %v1165
        %v1176 = vpack.c.b16 %v1168, %v1167
        %1185 = vmatprep.subr.bf16.mxu0 0
        %1186 = vmatpush1.bf16.msra.mxu0 %v1169
        %1187 = vmatprep.subr.bf16.mxu0 0
        %1188 = vmatpush1.bf16.msra.mxu0 %v1170
        %1189 = vmatprep.subr.bf16.mxu0 0
        %1190 = vmatpush1.bf16.msra.mxu0 %v1171
        %1191 = vmatprep.subr.bf16.mxu0 0
        %1192 = vmatpush1.bf16.msra.mxu0 %v1172
        %1193 = vmatprep.subr.bf16.mxu0 0
        %1194 = vmatpush1.bf16.msra.mxu0 %v1173
        %1195 = vmatprep.subr.bf16.mxu0 0
        %1196 = vmatpush1.bf16.msra.mxu0 %v1174
        %1197 = vmatprep.subr.bf16.mxu0 0
        %1198 = vmatpush1.bf16.msra.mxu0 %v1175
        %1199 = vmatprep.subr.bf16.mxu0 0
        %1200 = vmatpush1.bf16.msra.mxu0 %v1176
        %1201 = vmatprep.subr.bf16.mxu0 0
        %1202 = vmatpush1.bf16.msra.mxu0 0
        %1203 = vmatprep.subr.bf16.mxu0 0
        %1204 = vmatpush1.bf16.msra.mxu0 0
        %1205 = vmatprep.subr.bf16.mxu0 0
        %1206 = vmatpush1.bf16.msra.mxu0 0
        %1207 = vmatprep.subr.bf16.mxu0 0
        %1208 = vmatpush1.bf16.msra.mxu0 0
        %1209 = vmatprep.subr.bf16.mxu0 0
        %1210 = vmatpush1.bf16.msra.mxu0 0
        %1211 = vmatprep.subr.bf16.mxu0 0
        %1212 = vmatpush1.bf16.msra.mxu0 0
        %1213 = vmatprep.subr.bf16.mxu0 0
        %1214 = vmatpush1.bf16.msra.mxu0 0
        %1215 = vmatprep.subr.bf16.mxu0 0
        %1216 = vmatpush1.bf16.msra.mxu0 0
        %1217 = vmatprep.mubr.bf16.mxu0 0
        %1218 = vmatmul.mubr.bf16.gmra.mrb[0].mxu0 %v1112
        %v1219 = vpop.f32.mrb[0].mxu0
        %v1220 = vadd.f32 %v1135, %v1219
        %v1221 = vpop.f32.mrb[0].mxu0
        %v1222 = vpop.f32.mrb[0].mxu0
        %v1223 = vpop.f32.mrb[0].mxu0
        %1224 = vdwg.mxu0
        %v1225 = vld [vmem:[%s481] sm:$0xff]
        %v1226 = vadd.f32 %v1225, %v1220
        %v1227 = vld [vmem:[%s6] sm:$0x1]
        %1228 = vadd.xlane.f32.xlu0 %v1226
        %v1229 = vpop.xlane.xlu0 %1228
        %v1230 = vmul.f32 %v1229, 0.03125
        %v1231 = vmul.f32 %v1226, %v1226
        %1232 = vadd.xlane.f32.xlu0 %v1231
        %v1233 = vpop.xlane.xlu0 %1232
        %v1234 = vmul.f32 %v1233, 0.03125
        %v1235 = vmul.f32 %v1230, %v1230
        %v1236 = vsub.f32 %v1234, %v1235
        %v1237 = vsub.f32 %v1226, %v1230
        %v1238 = vadd.f32 %v1236, 1e-05
        %v1239 = vrsqrt.pop %v1238
        %v1240 = vmul.f32 %v1237, %v1239
        %v1242 = vlaneseq
        %v1243 = vshrl.u32 %v1242, 7
        %v1244 = vsub.s32 0, %v1243
        %v1245 = vrot.slane %v1227, %v1244
        %v1247 = vmul.f32 %v1240, %v1245
        %v1248 = vpack.c.bf16 %v1247, %v1247
        %v1249 = vld [vmem:[%s7] sm:$0xf]
        %v1250 = vld [vmem:[%s7 + $0x4] sm:$0xf]
        %v1251 = vld [vmem:[%s7 + $0x8] sm:$0xf]
        %v1252 = vld [vmem:[%s7 + $0xc] sm:$0xf]
        %v1253 = vld [vmem:[%s7 + $0x10] sm:$0xf]
        %v1254 = vld [vmem:[%s7 + $0x14] sm:$0xf]
        %v1255 = vld [vmem:[%s7 + $0x18] sm:$0xf]
        %v1256 = vld [vmem:[%s7 + $0x1c] sm:$0xf]
        %v1257 = vld [vmem:[%s7 + $0x20] sm:$0xf]
        %v1258 = vld [vmem:[%s7 + $0x24] sm:$0xf]
        %v1259 = vld [vmem:[%s7 + $0x28] sm:$0xf]
        %v1260 = vld [vmem:[%s7 + $0x2c] sm:$0xf]
        %v1261 = vld [vmem:[%s7 + $0x30] sm:$0xf]
        %v1262 = vld [vmem:[%s7 + $0x34] sm:$0xf]
        %v1263 = vld [vmem:[%s7 + $0x38] sm:$0xf]
        %v1264 = vld [vmem:[%s7 + $0x3c] sm:$0xf]
        %v1265 = vld [vmem:[%s8] sm:$0x1]
        %v1267 = vlaneseq
        %v1268 = vshrl.u32 %v1267, 7
        %v1269 = vsub.s32 0, %v1268
        %v1270 = vrot.slane %v1265, %v1269
        %v1288 = vunpack.c.l.b16 %v1249
        %v1289 = vunpack.c.l.b16 %v1250
        %v1290 = vunpack.c.l.b16 %v1251
        %v1291 = vunpack.c.l.b16 %v1252
        %v1292 = vunpack.c.l.b16 %v1253
        %v1293 = vunpack.c.l.b16 %v1254
        %v1294 = vunpack.c.l.b16 %v1255
        %v1295 = vunpack.c.l.b16 %v1256
        %v1296 = vunpack.c.l.b16 %v1257
        %v1297 = vunpack.c.l.b16 %v1258
        %v1298 = vunpack.c.l.b16 %v1259
        %v1299 = vunpack.c.l.b16 %v1260
        %v1300 = vunpack.c.l.b16 %v1261
        %v1301 = vunpack.c.l.b16 %v1262
        %v1302 = vunpack.c.l.b16 %v1263
        %v1303 = vunpack.c.l.b16 %v1264
        %v1304 = vpack.c.b16 %v1289, %v1288
        %v1305 = vpack.c.b16 %v1291, %v1290
        %v1306 = vpack.c.b16 %v1293, %v1292
        %v1307 = vpack.c.b16 %v1295, %v1294
        %v1308 = vpack.c.b16 %v1297, %v1296
        %v1309 = vpack.c.b16 %v1299, %v1298
        %v1310 = vpack.c.b16 %v1301, %v1300
        %v1311 = vpack.c.b16 %v1303, %v1302
        %1320 = vmatprep.subr.bf16.mxu0 0
        %1321 = vmatpush1.bf16.msra.mxu0 %v1304
        %1322 = vmatprep.subr.bf16.mxu0 0
        %1323 = vmatpush1.bf16.msra.mxu0 %v1305
        %1324 = vmatprep.subr.bf16.mxu0 0
        %1325 = vmatpush1.bf16.msra.mxu0 %v1306
        %1326 = vmatprep.subr.bf16.mxu0 0
        %1327 = vmatpush1.bf16.msra.mxu0 %v1307
        %1328 = vmatprep.subr.bf16.mxu0 0
        %1329 = vmatpush1.bf16.msra.mxu0 %v1308
        %1330 = vmatprep.subr.bf16.mxu0 0
        %1331 = vmatpush1.bf16.msra.mxu0 %v1309
        %1332 = vmatprep.subr.bf16.mxu0 0
        %1333 = vmatpush1.bf16.msra.mxu0 %v1310
        %1334 = vmatprep.subr.bf16.mxu0 0
        %1335 = vmatpush1.bf16.msra.mxu0 %v1311
        %1336 = vmatprep.subr.bf16.mxu0 0
        %1337 = vmatpush1.bf16.msra.mxu0 0
        %1338 = vmatprep.subr.bf16.mxu0 0
        %1339 = vmatpush1.bf16.msra.mxu0 0
        %1340 = vmatprep.subr.bf16.mxu0 0
        %1341 = vmatpush1.bf16.msra.mxu0 0
        %1342 = vmatprep.subr.bf16.mxu0 0
        %1343 = vmatpush1.bf16.msra.mxu0 0
        %1344 = vmatprep.subr.bf16.mxu0 0
        %1345 = vmatpush1.bf16.msra.mxu0 0
        %1346 = vmatprep.subr.bf16.mxu0 0
        %1347 = vmatpush1.bf16.msra.mxu0 0
        %1348 = vmatprep.subr.bf16.mxu0 0
        %1349 = vmatpush1.bf16.msra.mxu0 0
        %1350 = vmatprep.subr.bf16.mxu0 0
        %1351 = vmatpush1.bf16.msra.mxu0 0
        %1352 = vmatprep.mubr.bf16.mxu0 0
        %1353 = vmatmul.mubr.bf16.gmra.mrb[0].mxu0 %v1248
        %v1354 = vpop.f32.mrb[0].mxu0
        %v1355 = vadd.f32 %v1270, %v1354
        %v1356 = vpop.f32.mrb[0].mxu0
        %v1357 = vpop.f32.mrb[0].mxu0
        %v1358 = vpop.f32.mrb[0].mxu0
        %1359 = vdwg.mxu0
        %v1360 = vmul.f32 %v1355, 0.5
        %v1361 = vmul.f32 %v1355, 0.70710677
        %v1362 = verf.f32.pop %v1361
        %v1363 = vadd.f32 %v1362, 1.0
        %v1364 = vmul.f32 %v1360, %v1363
        %v1365 = vpack.c.bf16 %v1364, %v1364
        %v1366 = vld [vmem:[%s9] sm:$0xf]
        %v1367 = vld [vmem:[%s9 + $0x4] sm:$0xf]
        %v1368 = vld [vmem:[%s9 + $0x8] sm:$0xf]
        %v1369 = vld [vmem:[%s9 + $0xc] sm:$0xf]
        %v1370 = vld [vmem:[%s9 + $0x10] sm:$0xf]
        %v1371 = vld [vmem:[%s9 + $0x14] sm:$0xf]
        %v1372 = vld [vmem:[%s9 + $0x18] sm:$0xf]
        %v1373 = vld [vmem:[%s9 + $0x1c] sm:$0xf]
        %v1374 = vld [vmem:[%s9 + $0x20] sm:$0xf]
        %v1375 = vld [vmem:[%s9 + $0x24] sm:$0xf]
        %v1376 = vld [vmem:[%s9 + $0x28] sm:$0xf]
        %v1377 = vld [vmem:[%s9 + $0x2c] sm:$0xf]
        %v1378 = vld [vmem:[%s9 + $0x30] sm:$0xf]
        %v1379 = vld [vmem:[%s9 + $0x34] sm:$0xf]
        %v1380 = vld [vmem:[%s9 + $0x38] sm:$0xf]
        %v1381 = vld [vmem:[%s9 + $0x3c] sm:$0xf]
        %v1382 = vld [vmem:[%s10] sm:$0x1]
        %v1384 = vlaneseq
        %v1385 = vshrl.u32 %v1384, 7
        %v1386 = vsub.s32 0, %v1385
        %v1387 = vrot.slane %v1382, %v1386
        %v1405 = vunpack.c.l.b16 %v1366
        %v1406 = vunpack.c.l.b16 %v1367
        %v1407 = vunpack.c.l.b16 %v1368
        %v1408 = vunpack.c.l.b16 %v1369
        %v1409 = vunpack.c.l.b16 %v1370
        %v1410 = vunpack.c.l.b16 %v1371
        %v1411 = vunpack.c.l.b16 %v1372
        %v1412 = vunpack.c.l.b16 %v1373
        %v1413 = vunpack.c.l.b16 %v1374
        %v1414 = vunpack.c.l.b16 %v1375
        %v1415 = vunpack.c.l.b16 %v1376
        %v1416 = vunpack.c.l.b16 %v1377
        %v1417 = vunpack.c.l.b16 %v1378
        %v1418 = vunpack.c.l.b16 %v1379
        %v1419 = vunpack.c.l.b16 %v1380
        %v1420 = vunpack.c.l.b16 %v1381
        %v1421 = vpack.c.b16 %v1406, %v1405
        %v1422 = vpack.c.b16 %v1408, %v1407
        %v1423 = vpack.c.b16 %v1410, %v1409
        %v1424 = vpack.c.b16 %v1412, %v1411
        %v1425 = vpack.c.b16 %v1414, %v1413
        %v1426 = vpack.c.b16 %v1416, %v1415
        %v1427 = vpack.c.b16 %v1418, %v1417
        %v1428 = vpack.c.b16 %v1420, %v1419
        %1437 = vmatprep.subr.bf16.mxu0 0
        %1438 = vmatpush1.bf16.msra.mxu0 %v1421
        %1439 = vmatprep.subr.bf16.mxu0 0
        %1440 = vmatpush1.bf16.msra.mxu0 %v1422
        %1441 = vmatprep.subr.bf16.mxu0 0
        %1442 = vmatpush1.bf16.msra.mxu0 %v1423
        %1443 = vmatprep.subr.bf16.mxu0 0
        %1444 = vmatpush1.bf16.msra.mxu0 %v1424
        %1445 = vmatprep.subr.bf16.mxu0 0
        %1446 = vmatpush1.bf16.msra.mxu0 %v1425
        %1447 = vmatprep.subr.bf16.mxu0 0
        %1448 = vmatpush1.bf16.msra.mxu0 %v1426
        %1449 = vmatprep.subr.bf16.mxu0 0
        %1450 = vmatpush1.bf16.msra.mxu0 %v1427
        %1451 = vmatprep.subr.bf16.mxu0 0
        %1452 = vmatpush1.bf16.msra.mxu0 %v1428
        %1453 = vmatprep.subr.bf16.mxu0 0
        %1454 = vmatpush1.bf16.msra.mxu0 0
        %1455 = vmatprep.subr.bf16.mxu0 0
        %1456 = vmatpush1.bf16.msra.mxu0 0
        %1457 = vmatprep.subr.bf16.mxu0 0
        %1458 = vmatpush1.bf16.msra.mxu0 0
        %1459 = vmatprep.subr.bf16.mxu0 0
        %1460 = vmatpush1.bf16.msra.mxu0 0
        %1461 = vmatprep.subr.bf16.mxu0 0
        %1462 = vmatpush1.bf16.msra.mxu0 0
        %1463 = vmatprep.subr.bf16.mxu0 0
        %1464 = vmatpush1.bf16.msra.mxu0 0
        %1465 = vmatprep.subr.bf16.mxu0 0
        %1466 = vmatpush1.bf16.msra.mxu0 0
        %1467 = vmatprep.subr.bf16.mxu0 0
        %1468 = vmatpush1.bf16.msra.mxu0 0
        %1469 = vmatprep.mubr.bf16.mxu0 0
        %1470 = vmatmul.mubr.bf16.gmra.mrb[0].mxu0 %v1365
        %v1471 = vpop.f32.mrb[0].mxu0
        %v1472 = vadd.f32 %v1387, %v1471
        %v1473 = vpop.f32.mrb[0].mxu0
        %v1474 = vpop.f32.mrb[0].mxu0
        %v1475 = vpop.f32.mrb[0].mxu0
        %1476 = vdwg.mxu0
        %v1477 = vadd.f32 %v1226, %v1472
        %1478 = vst [vmem:[%s512] sm:$0xff] %v1477
      $region72: #{_forward_impl.3} parent=63 // pred_fallthru
        _
      %p1479 = scmp.lt.s32.totalorder %s27, 1
      %s1480 = scalar_select %p1479, %s27, 1
      %p1481 = scmp.lt.s32.totalorder %s28, 0
      %s1482 = scalar_select %p1481, %s28, 0
      %s1483 = sadd.s32 %s1482, %s1480
      %s1484 = smul.addr %s1483, 8
      %s1485 = scalar_lea.vmem %s11, %s1484
      // Predicated region
      $region73: #{_forward_impl.3} parent=63 // pred_check
        %p1486 = pneg %p320
      $region74: #{_forward_impl.3} parent=63 // pred_check_branch
        %1488 = sbr.rel (%p1486) target = $region76
      $region75: #{_forward_impl.3} parent=63 // pred_region
        _
      $region76: #{_forward_impl.3} parent=63 // pred_fallthru
        _
    $region64: #{_forward_impl.3} parent=5 // pred_fallthru
      _
    %p1489 = scmp.le.s32.totalorder 2, %s17
    // Predicated region
    $region77: #{_forward_impl.3} parent=5 // pred_check
      %p1490 = pneg %p1489
    $region78: #{_forward_impl.3} parent=5 // pred_check_branch
      %1492 = sbr.rel (%p1490) target = $region80
    $region79: #{_forward_impl.3} parent=5 // pred_region
      %s1493 = ssub.s32 %s17, 2
      // Predicated region
      $region81: #{_forward_impl.3} parent=79 // pred_check
        %p1494 = pneg %p326
      $region82: #{_forward_impl.3} parent=79 // pred_check_branch
        %1496 = sbr.rel (%p1494) target = $region84
      $region83: #{_forward_impl.3} parent=79 // pred_region
        %p1497 = scmp.lt.s32.totalorder %s30, 1
        %s1498 = scalar_select %p1497, %s30, 1
        %p1499 = scmp.lt.s32.totalorder %s31, 0
        %s1500 = scalar_select %p1499, %s31, 0
        %s1501 = sadd.s32 %s1500, %s1498
        %s1502 = smul.addr %s1501, 8
        %s1503 = scalar_lea.vmem %s11, %s1502
      $region84: #{_forward_impl.3} parent=79 // pred_fallthru
        _
    $region80: #{_forward_impl.3} parent=5 // pred_fallthru
      _
  $region6: #{_forward_impl.3} parent=0 // loop_footer
    %s21 = sadd.s32 1, %s17
  $region7: #{_forward_impl.3} parent=0 // loop_footer_branch
    %16 = sbr.rel target = $region3
  $region8: #{_forward_impl.3} parent=0 // loop_exit
    _

// kernel: _forward_impl.3
$region0: #{_forward_impl.3}
  #allocation0 [shape = 'u32[]', space=smem, size = 0x4, offset = 0x4, fixed_abs, tag = 'smem constant byte address 0x4 - core index']
  #allocation1 [shape = 'u32[144,128]{1,0:T(1,128)}', space=vmem, size = 0x12000, scoped, tag = 'internal scratch']
  #allocation2 [shape = 'f32[4,8,1]{2,1,0:T(8,128)}', space=vmem, size = 0x4000, scoped, tag = 'scratch operand']
  #allocation3 [shape = 'f32[4,8,1]{2,1,0:T(8,128)}', space=vmem, size = 0x4000, scoped, tag = 'scratch operand']
  #allocation4 [shape = 'f32[4,8,32]{2,1,0:T(8,128)}', space=vmem, size = 0x4000, scoped, tag = 'scratch operand']
  %s0 = inlined_call_operand.vmem [shape: f32[2,8,128], index: 0, kind: input, shape index: {}]
  %s1 = inlined_call_operand.vmem [shape: bf16[2,4,8,32], index: 1, kind: input, shape index: {}]
  %s2 = inlined_call_operand.vmem [shape: bf16[2,4,8,32], index: 2, kind: input, shape index: {}]
  %s3 = inlined_call_operand.vmem [shape: bf16[2,4,8,32], index: 3, kind: input, shape index: {}]
  %s4 = inlined_call_operand.vmem [shape: bf16[128,128], index: 4, kind: input, shape index: {}]
  %s5 = inlined_call_operand.vmem [shape: f32[1,128], index: 5, kind: input, shape index: {}]
  %s6 = inlined_call_operand.vmem [shape: f32[1,128], index: 6, kind: input, shape index: {}]
  %s7 = inlined_call_operand.vmem [shape: bf16[128,128], index: 7, kind: input, shape index: {}]
  %s8 = inlined_call_operand.vmem [shape: f32[1,128], index: 8, kind: input, shape index: {}]
  %s9 = inlined_call_operand.vmem [shape: bf16[128,128], index: 9, kind: input, shape index: {}]
  %s10 = inlined_call_operand.vmem [shape: f32[1,128], index: 10, kind: input, shape index: {}]
  %s11 = inlined_call_operand.vmem [shape: f32[2,8,128], index: 11, kind: output, shape index: {}]
  %s12 = sld [smem:[#allocation0]]
  $region85: #{_forward_impl.3} parent=0
    _
  %s14 = ssub.s32 1, %s12
  %s15 = scalar_select 0, %s14, %s12
  loop: start=0, step=1, limit=4
  $region2: #{_forward_impl.3} parent=0 // loop_pre_header
    _
  $region3: #{_forward_impl.3} parent=0 // loop_header
    %s17 = sphi 0, %s21
    %p18 = scmp.ge.s32.totalorder %s17, 4
    %s24 = sphi 0, %s43
    %s25 = sphi 0, %s39
    %s26 = sphi 0, %s35
    %s27 = sphi 0, %s24
    %s28 = sphi 0, %s25
    %s29 = sphi 0, %s26
    %s30 = sphi 0, %s27
    %s31 = sphi 0, %s28
    %s32 = sphi 0, %s29
    %s48 = sphi 0, %s50
    %s51 = sphi 0, %s48
    %s52 = sphi 0, %s51
    %s68 = sphi 0, %s52
    %s76 = sphi 0, %s78
    %s79 = sphi 0, %s76
    %s80 = sphi 0, %s79
    %s96 = sphi 0, %s80
    %s104 = sphi 0, %s106
    %s107 = sphi 0, %s104
    %s108 = sphi 0, %s107
    %s124 = sphi 0, %s108
    %s132 = sphi 0, %s134
    %s135 = sphi 0, %s132
    %s136 = sphi 0, %s135
    %s152 = sphi 0, %s136
    %s156 = sphi 0, %s156
    %s158 = sphi 0, %s156
    %s159 = sphi 0, %s158
    %s173 = sphi 0, %s159
    %s177 = sphi 0, %s177
    %s179 = sphi 0, %s177
    %s180 = sphi 0, %s179
    %s194 = sphi 0, %s180
    %s198 = sphi 0, %s198
    %s200 = sphi 0, %s198
    %s201 = sphi 0, %s200
    %s215 = sphi 0, %s201
    %s219 = sphi 0, %s219
    %s221 = sphi 0, %s219
    %s222 = sphi 0, %s221
    %s236 = sphi 0, %s222
    %s240 = sphi 0, %s240
    %s242 = sphi 0, %s240
    %s243 = sphi 0, %s242
    %s257 = sphi 0, %s243
    %s261 = sphi 0, %s261
    %s263 = sphi 0, %s261
    %s264 = sphi 0, %s263
    %s278 = sphi 0, %s264
    %s282 = sphi 0, %s282
    %s284 = sphi 0, %s282
    %s285 = sphi 0, %s284
    %s299 = sphi 0, %s285
    %s307 = sphi 0, %s309
    %s310 = sphi 0, %s307
    %s311 = sphi 0, %s310
    %s327 = sphi 0, %s311
  $region4: #{_forward_impl.3} parent=0 // loop_header_branch
    %20 = sbr.rel (%p18) target = $region8
  $region5: #{_forward_impl.3} parent=0 // loop_body
    %s22 = ssub.s32 %s17, 1
    %s23 = ssub.s32 %s17, 2
    %s33 = sadd.s32 1, %s26
    %p34 = scmp.ge.s32.totalorder %s33, 1
    %s35 = scalar_select %p34, 0, %s33
    %s36 = sadd.s32 1, %s25
    %s37 = scalar_select %p34, %s36, %s25
    %p38 = scmp.ge.s32.totalorder %s37, 1
    %s39 = scalar_select %p38, 0, %s37
    %s40 = sadd.s32 1, %s24
    %s41 = scalar_select %p38, %s40, %s24
    %p42 = scmp.ge.s32.totalorder %s41, 2
    %s43 = scalar_select %p42, 0, %s41
    %s44 = ssub.s32 %s24, %s43
    %s45 = ssub.s32 %s25, %s39
    %s46 = sor.u32 %s44, %s45
    %p47 = scmp.eq.s32.totalorder %s46, 0
    %s49 = sadd.s32 %s48, 1
    %s50 = scalar_select %p47, %s48, %s49
    %p53 = pneg %p47
    %p54 = scmp.eq.s32.totalorder %s17, 1
    %p55 = por %p53, %p54
    %p56 = scmp.ne.s32.totalorder %s48, %s51
    %p57 = scmp.eq.s32.totalorder %s17, 0
    %p58 = por %p56, %p57
    %p59 = scmp.ne.s32.totalorder %s48, %s51
    %p60 = scmp.eq.s32.totalorder %s22, 1
    %p61 = por %p59, %p60
    %p62 = scmp.ne.s32.totalorder %s51, %s52
    %p63 = scmp.eq.s32.totalorder %s22, 0
    %p64 = por %p62, %p63
    %p65 = scmp.ne.s32.totalorder %s51, %s52
    %p66 = scmp.eq.s32.totalorder %s23, 1
    %p67 = por %p65, %p66
    %p69 = scmp.ne.s32.totalorder %s52, %s68
    %p70 = scmp.eq.s32.totalorder %s23, 0
    %p71 = por %p69, %p70
    %s72 = ssub.s32 %s24, %s43
    %s73 = ssub.s32 %s25, %s39
    %s74 = sor.u32 %s72, %s73
    %p75 = scmp.eq.s32.totalorder %s74, 0
    %s77 = sadd.s32 %s76, 1
    %s78 = scalar_select %p75, %s76, %s77
    %p81 = pneg %p75
    %p82 = scmp.eq.s32.totalorder %s17, 1
    %p83 = por %p81, %p82
    %p84 = scmp.ne.s32.totalorder %s76, %s79
    %p85 = scmp.eq.s32.totalorder %s17, 0
    %p86 = por %p84, %p85
    %p87 = scmp.ne.s32.totalorder %s76, %s79
    %p88 = scmp.eq.s32.totalorder %s22, 1
    %p89 = por %p87, %p88
    %p90 = scmp.ne.s32.totalorder %s79, %s80
    %p91 = scmp.eq.s32.totalorder %s22, 0
    %p92 = por %p90, %p91
    %p93 = scmp.ne.s32.totalorder %s79, %s80
    %p94 = scmp.eq.s32.totalorder %s23, 1
    %p95 = por %p93, %p94
    %p97 = scmp.ne.s32.totalorder %s80, %s96
    %p98 = scmp.eq.s32.totalorder %s23, 0
    %p99 = por %p97, %p98
    %s100 = ssub.s32 %s24, %s43
    %s101 = ssub.s32 %s26, %s35
    %s102 = sor.u32 %s100, %s101
    %p103 = scmp.eq.s32.totalorder %s102, 0
    %s105 = sadd.s32 %s104, 1
    %s106 = scalar_select %p103, %s104, %s105
    %p109 = pneg %p103
    %p110 = scmp.eq.s32.totalorder %s17, 1
    %p111 = por %p109, %p110
    %p112 = scmp.ne.s32.totalorder %s104, %s107
    %p113 = scmp.eq.s32.totalorder %s17, 0
    %p114 = por %p112, %p113
    %p115 = scmp.ne.s32.totalorder %s104, %s107
    %p116 = scmp.eq.s32.totalorder %s22, 1
    %p117 = por %p115, %p116
    %p118 = scmp.ne.s32.totalorder %s107, %s108
    %p119 = scmp.eq.s32.totalorder %s22, 0
    %p120 = por %p118, %p119
    %p121 = scmp.ne.s32.totalorder %s107, %s108
    %p122 = scmp.eq.s32.totalorder %s23, 1
    %p123 = por %p121, %p122
    %p125 = scmp.ne.s32.totalorder %s108, %s124
    %p126 = scmp.eq.s32.totalorder %s23, 0
    %p127 = por %p125, %p126
    %s128 = ssub.s32 %s24, %s43
    %s129 = ssub.s32 %s26, %s35
    %s130 = sor.u32 %s128, %s129
    %p131 = scmp.eq.s32.totalorder %s130, 0
    %s133 = sadd.s32 %s132, 1
    %s134 = scalar_select %p131, %s132, %s133
    %p137 = pneg %p131
    %p138 = scmp.eq.s32.totalorder %s17, 1
    %p139 = por %p137, %p138
    %p140 = scmp.ne.s32.totalorder %s132, %s135
    %p141 = scmp.eq.s32.totalorder %s17, 0
    %p142 = por %p140, %p141
    %p143 = scmp.ne.s32.totalorder %s132, %s135
    %p144 = scmp.eq.s32.totalorder %s22, 1
    %p145 = por %p143, %p144
    %p146 = scmp.ne.s32.totalorder %s135, %s136
    %p147 = scmp.eq.s32.totalorder %s22, 0
    %p148 = por %p146, %p147
    %p149 = scmp.ne.s32.totalorder %s135, %s136
    %p150 = scmp.eq.s32.totalorder %s23, 1
    %p151 = por %p149, %p150
    %p153 = scmp.ne.s32.totalorder %s136, %s152
    %p154 = scmp.eq.s32.totalorder %s23, 0
    %p155 = por %p153, %p154
    %s157 = sadd.s32 %s156, 1
    %p160 = scmp.eq.s32.totalorder %s17, 1
    %p161 = scmp.ne.s32.totalorder %s156, %s158
    %p162 = scmp.eq.s32.totalorder %s17, 0
    %p163 = por %p161, %p162
    %p164 = scmp.ne.s32.totalorder %s156, %s158
    %p165 = scmp.eq.s32.totalorder %s22, 1
    %p166 = por %p164, %p165
    %p167 = scmp.ne.s32.totalorder %s158, %s159
    %p168 = scmp.eq.s32.totalorder %s22, 0
    %p169 = por %p167, %p168
    %p170 = scmp.ne.s32.totalorder %s158, %s159
    %p171 = scmp.eq.s32.totalorder %s23, 1
    %p172 = por %p170, %p171
    %p174 = scmp.ne.s32.totalorder %s159, %s173
    %p175 = scmp.eq.s32.totalorder %s23, 0
    %p176 = por %p174, %p175
    %s178 = sadd.s32 %s177, 1
    %p181 = scmp.eq.s32.totalorder %s17, 1
    %p182 = scmp.ne.s32.totalorder %s177, %s179
    %p183 = scmp.eq.s32.totalorder %s17, 0
    %p184 = por %p182, %p183
    %p185 = scmp.ne.s32.totalorder %s177, %s179
    %p186 = scmp.eq.s32.totalorder %s22, 1
    %p187 = por %p185, %p186
    %p188 = scmp.ne.s32.totalorder %s179, %s180
    %p189 = scmp.eq.s32.totalorder %s22, 0
    %p190 = por %p188, %p189
    %p191 = scmp.ne.s32.totalorder %s179, %s180
    %p192 = scmp.eq.s32.totalorder %s23, 1
    %p193 = por %p191, %p192
    %p195 = scmp.ne.s32.totalorder %s180, %s194
    %p196 = scmp.eq.s32.totalorder %s23, 0
    %p197 = por %p195, %p196
    %s199 = sadd.s32 %s198, 1
    %p202 = scmp.eq.s32.totalorder %s17, 1
    %p203 = scmp.ne.s32.totalorder %s198, %s200
    %p204 = scmp.eq.s32.totalorder %s17, 0
    %p205 = por %p203, %p204
    %p206 = scmp.ne.s32.totalorder %s198, %s200
    %p207 = scmp.eq.s32.totalorder %s22, 1
    %p208 = por %p206, %p207
    %p209 = scmp.ne.s32.totalorder %s200, %s201
    %p210 = scmp.eq.s32.totalorder %s22, 0
    %p211 = por %p209, %p210
    %p212 = scmp.ne.s32.totalorder %s200, %s201
    %p213 = scmp.eq.s32.totalorder %s23, 1
    %p214 = por %p212, %p213
    %p216 = scmp.ne.s32.totalorder %s201, %s215
    %p217 = scmp.eq.s32.totalorder %s23, 0
    %p218 = por %p216, %p217
    %s220 = sadd.s32 %s219, 1
    %p223 = scmp.eq.s32.totalorder %s17, 1
    %p224 = scmp.ne.s32.totalorder %s219, %s221
    %p225 = scmp.eq.s32.totalorder %s17, 0
    %p226 = por %p224, %p225
    %p227 = scmp.ne.s32.totalorder %s219, %s221
    %p228 = scmp.eq.s32.totalorder %s22, 1
    %p229 = por %p227, %p228
    %p230 = scmp.ne.s32.totalorder %s221, %s222
    %p231 = scmp.eq.s32.totalorder %s22, 0
    %p232 = por %p230, %p231
    %p233 = scmp.ne.s32.totalorder %s221, %s222
    %p234 = scmp.eq.s32.totalorder %s23, 1
    %p235 = por %p233, %p234
    %p237 = scmp.ne.s32.totalorder %s222, %s236
    %p238 = scmp.eq.s32.totalorder %s23, 0
    %p239 = por %p237, %p238
    %s241 = sadd.s32 %s240, 1
    %p244 = scmp.eq.s32.totalorder %s17, 1
    %p245 = scmp.ne.s32.totalorder %s240, %s242
    %p246 = scmp.eq.s32.totalorder %s17, 0
    %p247 = por %p245, %p246
    %p248 = scmp.ne.s32.totalorder %s240, %s242
    %p249 = scmp.eq.s32.totalorder %s22, 1
    %p250 = por %p248, %p249
    %p251 = scmp.ne.s32.totalorder %s242, %s243
    %p252 = scmp.eq.s32.totalorder %s22, 0
    %p253 = por %p251, %p252
    %p254 = scmp.ne.s32.totalorder %s242, %s243
    %p255 = scmp.eq.s32.totalorder %s23, 1
    %p256 = por %p254, %p255
    %p258 = scmp.ne.s32.totalorder %s243, %s257
    %p259 = scmp.eq.s32.totalorder %s23, 0
    %p260 = por %p258, %p259
    %s262 = sadd.s32 %s261, 1
    %p265 = scmp.eq.s32.totalorder %s17, 1
    %p266 = scmp.ne.s32.totalorder %s261, %s263
    %p267 = scmp.eq.s32.totalorder %s17, 0
    %p268 = por %p266, %p267
    %p269 = scmp.ne.s32.totalorder %s261, %s263
    %p270 = scmp.eq.s32.totalorder %s22, 1
    %p271 = por %p269, %p270
    %p272 = scmp.ne.s32.totalorder %s263, %s264
    %p273 = scmp.eq.s32.totalorder %s22, 0
    %p274 = por %p272, %p273
    %p275 = scmp.ne.s32.totalorder %s263, %s264
    %p276 = scmp.eq.s32.totalorder %s23, 1
    %p277 = por %p275, %p276
    %p279 = scmp.ne.s32.totalorder %s264, %s278
    %p280 = scmp.eq.s32.totalorder %s23, 0
    %p281 = por %p279, %p280
    %s283 = sadd.s32 %s282, 1
    %p286 = scmp.eq.s32.totalorder %s17, 1
    %p287 = scmp.ne.s32.totalorder %s282, %s284
    %p288 = scmp.eq.s32.totalorder %s17, 0
    %p289 = por %p287, %p288
    %p290 = scmp.ne.s32.totalorder %s282, %s284
    %p291 = scmp.eq.s32.totalorder %s22, 1
    %p292 = por %p290, %p291
    %p293 = scmp.ne.s32.totalorder %s284, %s285
    %p294 = scmp.eq.s32.totalorder %s22, 0
    %p295 = por %p293, %p294
    %p296 = scmp.ne.s32.totalorder %s284, %s285
    %p297 = scmp.eq.s32.totalorder %s23, 1
    %p298 = por %p296, %p297
    %p300 = scmp.ne.s32.totalorder %s285, %s299
    %p301 = scmp.eq.s32.totalorder %s23, 0
    %p302 = por %p300, %p301
    %s303 = ssub.s32 %s24, %s43
    %s304 = ssub.s32 %s25, %s39
    %s305 = sor.u32 %s303, %s304
    %p306 = scmp.eq.s32.totalorder %s305, 0
    %s308 = sadd.s32 %s307, 1
    %s309 = scalar_select %p306, %s307, %s308
    %p312 = pneg %p306
    %p313 = scmp.eq.s32.totalorder %s17, 1
    %p314 = por %p312, %p313
    %p315 = scmp.ne.s32.totalorder %s307, %s310
    %p316 = scmp.eq.s32.totalorder %s17, 0
    %p317 = por %p315, %p316
    %p318 = scmp.ne.s32.totalorder %s307, %s310
    %p319 = scmp.eq.s32.totalorder %s22, 1
    %p320 = por %p318, %p319
    %p321 = scmp.ne.s32.totalorder %s310, %s311
    %p322 = scmp.eq.s32.totalorder %s22, 0
    %p323 = por %p321, %p322
    %p324 = scmp.ne.s32.totalorder %s310, %s311
    %p325 = scmp.eq.s32.totalorder %s23, 1
    %p326 = por %p324, %p325
    %p328 = scmp.ne.s32.totalorder %s311, %s327
    %p329 = scmp.eq.s32.totalorder %s23, 0
    %p330 = por %p328, %p329
    %p331 = scmp.le.s32.totalorder 1, %s17
    %p332 = scmp.lt.s32.totalorder %s17, 3
    %p333 = pnand %p331, %p332
    %p334 = pneg %p333
    // Predicated region
    $region9: #{_forward_impl.3} parent=5 // pred_check
      _
    $region10: #{_forward_impl.3} parent=5 // pred_check_branch
      %336 = sbr.rel (%p333) target = $region12
    $region11: #{_forward_impl.3} parent=5 // pred_region
      %s337 = ssub.s32 %s17, 1
      // Predicated region
      $region13: #{_forward_impl.3} parent=11 // pred_check
        %p338 = pneg %p169
      $region14: #{_forward_impl.3} parent=11 // pred_check_branch
        %340 = sbr.rel (%p338) target = $region16
      $region15: #{_forward_impl.3} parent=11 // pred_region
        _
      $region16: #{_forward_impl.3} parent=11 // pred_fallthru
        _
      // Predicated region
      $region17: #{_forward_impl.3} parent=11 // pred_check
        %p341 = pneg %p190
      $region18: #{_forward_impl.3} parent=11 // pred_check_branch
        %343 = sbr.rel (%p341) target = $region20
      $region19: #{_forward_impl.3} parent=11 // pred_region
        _
      $region20: #{_forward_impl.3} parent=11 // pred_fallthru
        _
      // Predicated region
      $region21: #{_forward_impl.3} parent=11 // pred_check
        %p344 = pneg %p211
      $region22: #{_forward_impl.3} parent=11 // pred_check_branch
        %346 = sbr.rel (%p344) target = $region24
      $region23: #{_forward_impl.3} parent=11 // pred_region
        _
      $region24: #{_forward_impl.3} parent=11 // pred_fallthru
        _
      // Predicated region
      $region25: #{_forward_impl.3} parent=11 // pred_check
        %p347 = pneg %p232
      $region26: #{_forward_impl.3} parent=11 // pred_check_branch
        %349 = sbr.rel (%p347) target = $region28
      $region27: #{_forward_impl.3} parent=11 // pred_region
        _
      $region28: #{_forward_impl.3} parent=11 // pred_fallthru
        _
      // Predicated region
      $region29: #{_forward_impl.3} parent=11 // pred_check
        %p350 = pneg %p253
      $region30: #{_forward_impl.3} parent=11 // pred_check_branch
        %352 = sbr.rel (%p350) target = $region32
      $region31: #{_forward_impl.3} parent=11 // pred_region
        _
      $region32: #{_forward_impl.3} parent=11 // pred_fallthru
        _
      // Predicated region
      $region33: #{_forward_impl.3} parent=11 // pred_check
        %p353 = pneg %p274
      $region34: #{_forward_impl.3} parent=11 // pred_check_branch
        %355 = sbr.rel (%p353) target = $region36
      $region35: #{_forward_impl.3} parent=11 // pred_region
        _
      $region36: #{_forward_impl.3} parent=11 // pred_fallthru
        _
      // Predicated region
      $region37: #{_forward_impl.3} parent=11 // pred_check
        %p356 = pneg %p295
      $region38: #{_forward_impl.3} parent=11 // pred_check_branch
        %358 = sbr.rel (%p356) target = $region40
      $region39: #{_forward_impl.3} parent=11 // pred_region
        _
      $region40: #{_forward_impl.3} parent=11 // pred_fallthru
        _
    $region12: #{_forward_impl.3} parent=5 // pred_fallthru
      _
    %p359 = scmp.lt.s32.totalorder %s17, 2
    // Predicated region
    $region41: #{_forward_impl.3} parent=5 // pred_check
      %p360 = pneg %p359
    $region42: #{_forward_impl.3} parent=5 // pred_check_branch
      %362 = sbr.rel (%p360) target = $region44
    $region43: #{_forward_impl.3} parent=5 // pred_region
      // Predicated region
      $region45: #{_forward_impl.3} parent=43 // pred_check
        %p363 = pneg %p58
      $region46: #{_forward_impl.3} parent=43 // pred_check_branch
        %365 = sbr.rel (%p363) target = $region48
      $region47: #{_forward_impl.3} parent=43 // pred_region
        %p366 = scmp.lt.s32.totalorder %s24, 1
        %s367 = scalar_select %p366, %s24, 1
        %p368 = scmp.lt.s32.totalorder %s25, 0
        %s369 = scalar_select %p368, %s25, 0
        %s370 = sadd.s32 %s369, %s367
        %s371 = smul.addr %s370, 8
        %s372 = scalar_lea.vmem %s0, %s371
      $region48: #{_forward_impl.3} parent=43 // pred_fallthru
        _
      // Predicated region
      $region49: #{_forward_impl.3} parent=43 // pred_check
        %p373 = pneg %p86
      $region50: #{_forward_impl.3} parent=43 // pred_check_branch
        %375 = sbr.rel (%p373) target = $region52
      $region51: #{_forward_impl.3} parent=43 // pred_region
        %p376 = scmp.lt.s32.totalorder %s24, 1
        %s377 = scalar_select %p376, %s24, 1
        %p378 = scmp.lt.s32.totalorder %s25, 0
        %s379 = scalar_select %p378, %s25, 0
        %s380 = smul.addr %s377, 4
        %s381 = sadd.s32 %s379, %s380
        %s382 = smul.addr %s381, 4
        %s383 = scalar_lea.vmem %s1, %s382
      $region52: #{_forward_impl.3} parent=43 // pred_fallthru
        _
      // Predicated region
      $region53: #{_forward_impl.3} parent=43 // pred_check
        %p384 = pneg %p114
      $region54: #{_forward_impl.3} parent=43 // pred_check_branch
        %386 = sbr.rel (%p384) target = $region56
      $region55: #{_forward_impl.3} parent=43 // pred_region
        %p387 = scmp.lt.s32.totalorder %s24, 1
        %s388 = scalar_select %p387, %s24, 1
        %p389 = scmp.lt.s32.totalorder %s26, 0
        %s390 = scalar_select %p389, %s26, 0
        %s391 = smul.addr %s388, 4
        %s392 = sadd.s32 %s390, %s391
        %s393 = smul.addr %s392, 4
        %s394 = scalar_lea.vmem %s2, %s393
      $region56: #{_forward_impl.3} parent=43 // pred_fallthru
        _
      // Predicated region
      $region57: #{_forward_impl.3} parent=43 // pred_check
        %p395 = pneg %p142
      $region58: #{_forward_impl.3} parent=43 // pred_check_branch
        %397 = sbr.rel (%p395) target = $region60
      $region59: #{_forward_impl.3} parent=43 // pred_region
        %p398 = scmp.lt.s32.totalorder %s24, 1
        %s399 = scalar_select %p398, %s24, 1
        %p400 = scmp.lt.s32.totalorder %s26, 0
        %s401 = scalar_select %p400, %s26, 0
        %s402 = smul.addr %s399, 4
        %s403 = sadd.s32 %s401, %s402
        %s404 = smul.addr %s403, 4
        %s405 = scalar_lea.vmem %s3, %s404
      $region60: #{_forward_impl.3} parent=43 // pred_fallthru
        _
    $region44: #{_forward_impl.3} parent=5 // pred_fallthru
      _
    %p406 = scmp.le.s32.totalorder 1, %s17
    %p407 = scmp.lt.s32.totalorder %s17, 3
    %p408 = pnand %p406, %p407
    %p409 = pneg %p408
    // Predicated region
    $region61: #{_forward_impl.3} parent=5 // pred_check
      _
    $region62: #{_forward_impl.3} parent=5 // pred_check_branch
      %411 = sbr.rel (%p408) target = $region64
    $region63: #{_forward_impl.3} parent=5 // pred_region
      %s412 = ssub.s32 %s17, 1
      %p413 = scmp.lt.s32.totalorder %s27, 1
      %s414 = scalar_select %p413, %s27, 1
      %p415 = scmp.lt.s32.totalorder %s28, 0
      %s416 = scalar_select %p415, %s28, 0
      %s417 = sadd.s32 %s416, %s414
      %s418 = smul.addr %s417, 8
      %s419 = scalar_lea.vmem %s0, %s418
      %p420 = pneg %p64
      %p421 = pneg %p61
      %p422 = scmp.lt.s32.totalorder %s27, 1
      %s423 = scalar_select %p422, %s27, 1
      %p424 = scmp.lt.s32.totalorder %s28, 0
      %s425 = scalar_select %p424, %s28, 0
      %s426 = smul.addr %s423, 4
      %s427 = sadd.s32 %s425, %s426
      %s428 = smul.addr %s427, 4
      %s429 = scalar_lea.vmem %s1, %s428
      %p430 = pneg %p92
      %p431 = pneg %p89
      %p432 = scmp.lt.s32.totalorder %s27, 1
      %s433 = scalar_select %p432, %s27, 1
      %p434 = scmp.lt.s32.totalorder %s29, 0
      %s435 = scalar_select %p434, %s29, 0
      %s436 = smul.addr %s433, 4
      %s437 = sadd.s32 %s435, %s436
      %s438 = smul.addr %s437, 4
      %s439 = scalar_lea.vmem %s2, %s438
      %p440 = pneg %p120
      %p441 = pneg %p117
      %p442 = scmp.lt.s32.totalorder %s27, 1
      %s443 = scalar_select %p442, %s27, 1
      %p444 = scmp.lt.s32.totalorder %s29, 0
      %s445 = scalar_select %p444, %s29, 0
      %s446 = smul.addr %s443, 4
      %s447 = sadd.s32 %s445, %s446
      %s448 = smul.addr %s447, 4
      %s449 = scalar_lea.vmem %s3, %s448
      %p450 = pneg %p148
      %p451 = pneg %p145
      %p452 = pneg %p169
      %p453 = pneg %p166
      %p454 = pneg %p190
      %p455 = pneg %p187
      %p456 = pneg %p211
      %p457 = pneg %p208
      %p458 = pneg %p232
      %p459 = pneg %p229
      %p460 = pneg %p253
      %p461 = pneg %p250
      %p462 = pneg %p274
      %p463 = pneg %p271
      %p464 = pneg %p295
      %p465 = pneg %p292
      %p466 = pneg %p323
      %p467 = pneg %p320
      %p468 = scmp.lt.s32.totalorder %s27, 1
      %s469 = scalar_select %p468, %s27, 1
      %p470 = scmp.lt.s32.totalorder %s28, 0
      %s471 = scalar_select %p470, %s28, 0
      %s472 = sadd.s32 %s471, %s469
      %s473 = smul.addr %s472, 8
      %s474 = scalar_lea.vmem %s11, %s473
      %p475 = scmp.lt.s32.totalorder %s27, 1
      %s476 = scalar_select %p475, %s27, 1
      %p477 = scmp.lt.s32.totalorder %s28, 0
      %s478 = scalar_select %p477, %s28, 0
      %s479 = sadd.s32 %s478, %s476
      %s480 = smul.addr %s479, 8
      %s481 = scalar_lea.vmem %s0, %s480
      %p482 = scmp.lt.s32.totalorder %s27, 1
      %s483 = scalar_select %p482, %s27, 1
      %p484 = scmp.lt.s32.totalorder %s28, 0
      %s485 = scalar_select %p484, %s28, 0
      %s486 = smul.addr %s483, 4
      %s487 = sadd.s32 %s485, %s486
      %s488 = smul.addr %s487, 4
      %s489 = scalar_lea.vmem %s1, %s488
      %p490 = scmp.lt.s32.totalorder %s27, 1
      %s491 = scalar_select %p490, %s27, 1
      %p492 = scmp.lt.s32.totalorder %s29, 0
      %s493 = scalar_select %p492, %s29, 0
      %s494 = smul.addr %s491, 4
      %s495 = sadd.s32 %s493, %s494
      %s496 = smul.addr %s495, 4
      %s497 = scalar_lea.vmem %s2, %s496
      %p498 = scmp.lt.s32.totalorder %s27, 1
      %s499 = scalar_select %p498, %s27, 1
      %p500 = scmp.lt.s32.totalorder %s29, 0
      %s501 = scalar_select %p500, %s29, 0
      %s502 = smul.addr %s499, 4
      %s503 = sadd.s32 %s501, %s502
      %s504 = smul.addr %s503, 4
      %s505 = scalar_lea.vmem %s3, %s504
      %p506 = scmp.lt.s32.totalorder %s27, 1
      %s507 = scalar_select %p506, %s27, 1
      %p508 = scmp.lt.s32.totalorder %s28, 0
      %s509 = scalar_select %p508, %s28, 0
      %s510 = sadd.s32 %s509, %s507
      %s511 = smul.addr %s510, 8
      %s512 = scalar_lea.vmem %s11, %s511
      %p514 = scmp.eq.s32.totalorder %s29, 0
      // Predicated region
      $region65: #{_forward_impl.3} parent=63 // pred_check
        %p515 = pneg %p514
      $region66: #{_forward_impl.3} parent=63 // pred_check_branch
        %517 = sbr.rel (%p515) target = $region68
      $region67: #{_forward_impl.3} parent=63 // pred_region
        %vm518 = vcmask 7168
        %519 = vst.msk [vmem:[#allocation2] sm:$0xff] %vm518, -inf
        %520 = vst.msk [vmem:[#allocation2 + $0x8] sm:$0xff] %vm518, -inf
        %521 = vst.msk [vmem:[#allocation2 + $0x10] sm:$0xff] %vm518, -inf
        %522 = vst.msk [vmem:[#allocation2 + $0x18] sm:$0xff] %vm518, -inf
        %523 = vst.msk [vmem:[#allocation3] sm:$0xff] %vm518, 0.0
        %524 = vst.msk [vmem:[#allocation3 + $0x8] sm:$0xff] %vm518, 0.0
        %525 = vst.msk [vmem:[#allocation3 + $0x10] sm:$0xff] %vm518, 0.0
        %526 = vst.msk [vmem:[#allocation3 + $0x18] sm:$0xff] %vm518, 0.0
        %vm527 = vcmask 261120
        %528 = vst.msk [vmem:[#allocation4] sm:$0xff] %vm527, 0.0
        %529 = vst.msk [vmem:[#allocation4 + $0x8] sm:$0xff] %vm527, 0.0
        %530 = vst.msk [vmem:[#allocation4 + $0x10] sm:$0xff] %vm527, 0.0
        %531 = vst.msk [vmem:[#allocation4 + $0x18] sm:$0xff] %vm527, 0.0
      $region68: #{_forward_impl.3} parent=63 // pred_fallthru
        _
      %v532 = vld [vmem:[%s489] sm:$0xf]
      %v533 = vld [vmem:[%s489 + $0x4] sm:$0xf]
      %v534 = vld [vmem:[%s489 + $0x8] sm:$0xf]
      %v535 = vld [vmem:[%s489 + $0xc] sm:$0xf]
      %v536 = vld [vmem:[%s497] sm:$0xf]
      %v537 = vld [vmem:[%s497 + $0x4] sm:$0xf]
      %v538 = vld [vmem:[%s497 + $0x8] sm:$0xf]
      %v539 = vld [vmem:[%s497 + $0xc] sm:$0xf]
      %v540 = vld [vmem:[%s505] sm:$0xf]
      %v541 = vld [vmem:[%s505 + $0x4] sm:$0xf]
      %v542 = vld [vmem:[%s505 + $0x8] sm:$0xf]
      %v543 = vld [vmem:[%s505 + $0xc] sm:$0xf]
      %vm544 = vcmask 261120
      %v546 = vsel %vm544, %v532, 0
      %v549 = vsel %vm544, %v536, 0
      %551 = vmatprep.subr.bf16.mxu0 0
      %552 = vmatpush1.bf16.xpose.msra.mxu0 %v549
      %553 = vmatprep.subr.bf16.mxu0 0
      %554 = vmatpush1.bf16.xpose.msra.mxu0 0
      %555 = vmatprep.subr.bf16.mxu0 0
      %556 = vmatpush1.bf16.xpose.msra.mxu0 0
      %557 = vmatprep.subr.bf16.mxu0 0
      %558 = vmatpush1.bf16.xpose.msra.mxu0 0
      %559 = vmatprep.subr.bf16.mxu0 0
      %560 = vmatpush1.bf16.xpose.msra.mxu0 0
      %561 = vmatprep.subr.bf16.mxu0 0
      %562 = vmatpush1.bf16.xpose.msra.mxu0 0
      %563 = vmatprep.subr.bf16.mxu0 0
      %564 = vmatpush1.bf16.xpose.msra.mxu0 0
      %565 = vmatprep.subr.bf16.mxu0 0
      %566 = vmatpush1.bf16.xpose.msra.mxu0 0
      %567 = vmatprep.subr.bf16.mxu0 0
      %568 = vmatpush1.bf16.xpose.msra.mxu0 0
      %569 = vmatprep.subr.bf16.mxu0 0
      %570 = vmatpush1.bf16.xpose.msra.mxu0 0
      %571 = vmatprep.subr.bf16.mxu0 0
      %572 = vmatpush1.bf16.xpose.msra.mxu0 0
      %573 = vmatprep.subr.bf16.mxu0 0
      %574 = vmatpush1.bf16.xpose.msra.mxu0 0
      %575 = vmatprep.subr.bf16.mxu0 0
      %576 = vmatpush1.bf16.xpose.msra.mxu0 0
      %577 = vmatprep.subr.bf16.mxu0 0
      %578 = vmatpush1.bf16.xpose.msra.mxu0 0
      %579 = vmatprep.subr.bf16.mxu0 0
      %580 = vmatpush1.bf16.xpose.msra.mxu0 0
      %581 = vmatprep.subr.bf16.mxu0 0
      %582 = vmatpush1.bf16.xpose.msra.mxu0 0
      %583 = vmatprep.mubr.bf16.mxu0 0
      %584 = vmatmul.mubr.bf16.gmra.mrb[0].mxu0 %v546
      %v585 = vpop.f32.mrb[0].mxu0
      %v586 = vadd.f32 0.0, %v585
      %v587 = vpop.f32.mrb[0].mxu0
      %v588 = vpop.f32.mrb[0].mxu0
      %v589 = vpop.f32.mrb[0].mxu0
      %590 = vdwg.mxu0
      %v592 = vsel %vm544, %v533, 0
      %v595 = vsel %vm544, %v537, 0
      %597 = vmatprep.subr.bf16.mxu0 0
      %598 = vmatpush1.bf16.xpose.msra.mxu0 %v595
      %599 = vmatprep.subr.bf16.mxu0 0
      %600 = vmatpush1.bf16.xpose.msra.mxu0 0
      %601 = vmatprep.subr.bf16.mxu0 0
      %602 = vmatpush1.bf16.xpose.msra.mxu0 0
      %603 = vmatprep.subr.bf16.mxu0 0
      %604 = vmatpush1.bf16.xpose.msra.mxu0 0
      %605 = vmatprep.subr.bf16.mxu0 0
      %606 = vmatpush1.bf16.xpose.msra.mxu0 0
      %607 = vmatprep.subr.bf16.mxu0 0
      %608 = vmatpush1.bf16.xpose.msra.mxu0 0
      %609 = vmatprep.subr.bf16.mxu0 0
      %610 = vmatpush1.bf16.xpose.msra.mxu0 0
      %611 = vmatprep.subr.bf16.mxu0 0
      %612 = vmatpush1.bf16.xpose.msra.mxu0 0
      %613 = vmatprep.subr.bf16.mxu0 0
      %614 = vmatpush1.bf16.xpose.msra.mxu0 0
      %615 = vmatprep.subr.bf16.mxu0 0
      %616 = vmatpush1.bf16.xpose.msra.mxu0 0
      %617 = vmatprep.subr.bf16.mxu0 0
      %618 = vmatpush1.bf16.xpose.msra.mxu0 0
      %619 = vmatprep.subr.bf16.mxu0 0
      %620 = vmatpush1.bf16.xpose.msra.mxu0 0
      %621 = vmatprep.subr.bf16.mxu0 0
      %622 = vmatpush1.bf16.xpose.msra.mxu0 0
      %623 = vmatprep.subr.bf16.mxu0 0
      %624 = vmatpush1.bf16.xpose.msra.mxu0 0
      %625 = vmatprep.subr.bf16.mxu0 0
      %626 = vmatpush1.bf16.xpose.msra.mxu0 0
      %627 = vmatprep.subr.bf16.mxu0 0
      %628 = vmatpush1.bf16.xpose.msra.mxu0 0
      %629 = vmatprep.mubr.bf16.mxu0 0
      %630 = vmatmul.mubr.bf16.gmra.mrb[0].mxu0 %v592
      %v631 = vpop.f32.mrb[0].mxu0
      %v632 = vadd.f32 0.0, %v631
      %v633 = vpop.f32.mrb[0].mxu0
      %v634 = vpop.f32.mrb[0].mxu0
      %v635 = vpop.f32.mrb[0].mxu0
      %636 = vdwg.mxu0
      %v638 = vsel %vm544, %v534, 0
      %v641 = vsel %vm544, %v538, 0
      %643 = vmatprep.subr.bf16.mxu0 0
      %644 = vmatpush1.bf16.xpose.msra.mxu0 %v641
      %645 = vmatprep.subr.bf16.mxu0 0
      %646 = vmatpush1.bf16.xpose.msra.mxu0 0
      %647 = vmatprep.subr.bf16.mxu0 0
      %648 = vmatpush1.bf16.xpose.msra.mxu0 0
      %649 = vmatprep.subr.bf16.mxu0 0
      %650 = vmatpush1.bf16.xpose.msra.mxu0 0
      %651 = vmatprep.subr.bf16.mxu0 0
      %652 = vmatpush1.bf16.xpose.msra.mxu0 0
      %653 = vmatprep.subr.bf16.mxu0 0
      %654 = vmatpush1.bf16.xpose.msra.mxu0 0
      %655 = vmatprep.subr.bf16.mxu0 0
      %656 = vmatpush1.bf16.xpose.msra.mxu0 0
      %657 = vmatprep.subr.bf16.mxu0 0
      %658 = vmatpush1.bf16.xpose.msra.mxu0 0
      %659 = vmatprep.subr.bf16.mxu0 0
      %660 = vmatpush1.bf16.xpose.msra.mxu0 0
      %661 = vmatprep.subr.bf16.mxu0 0
      %662 = vmatpush1.bf16.xpose.msra.mxu0 0
      %663 = vmatprep.subr.bf16.mxu0 0
      %664 = vmatpush1.bf16.xpose.msra.mxu0 0
      %665 = vmatprep.subr.bf16.mxu0 0
      %666 = vmatpush1.bf16.xpose.msra.mxu0 0
      %667 = vmatprep.subr.bf16.mxu0 0
      %668 = vmatpush1.bf16.xpose.msra.mxu0 0
      %669 = vmatprep.subr.bf16.mxu0 0
      %670 = vmatpush1.bf16.xpose.msra.mxu0 0
      %671 = vmatprep.subr.bf16.mxu0 0
      %672 = vmatpush1.bf16.xpose.msra.mxu0 0
      %673 = vmatprep.subr.bf16.mxu0 0
      %674 = vmatpush1.bf16.xpose.msra.mxu0 0
      %675 = vmatprep.mubr.bf16.mxu0 0
      %676 = vmatmul.mubr.bf16.gmra.mrb[0].mxu0 %v638
      %v677 = vpop.f32.mrb[0].mxu0
      %v678 = vadd.f32 0.0, %v677
      %v679 = vpop.f32.mrb[0].mxu0
      %v680 = vpop.f32.mrb[0].mxu0
      %v681 = vpop.f32.mrb[0].mxu0
      %682 = vdwg.mxu0
      %v684 = vsel %vm544, %v535, 0
      %v687 = vsel %vm544, %v539, 0
      %689 = vmatprep.subr.bf16.mxu0 0
      %690 = vmatpush1.bf16.xpose.msra.mxu0 %v687
      %691 = vmatprep.subr.bf16.mxu0 0
      %692 = vmatpush1.bf16.xpose.msra.mxu0 0
      %693 = vmatprep.subr.bf16.mxu0 0
      %694 = vmatpush1.bf16.xpose.msra.mxu0 0
      %695 = vmatprep.subr.bf16.mxu0 0
      %696 = vmatpush1.bf16.xpose.msra.mxu0 0
      %697 = vmatprep.subr.bf16.mxu0 0
      %698 = vmatpush1.bf16.xpose.msra.mxu0 0
      %699 = vmatprep.subr.bf16.mxu0 0
      %700 = vmatpush1.bf16.xpose.msra.mxu0 0
      %701 = vmatprep.subr.bf16.mxu0 0
      %702 = vmatpush1.bf16.xpose.msra.mxu0 0
      %703 = vmatprep.subr.bf16.mxu0 0
      %704 = vmatpush1.bf16.xpose.msra.mxu0 0
      %705 = vmatprep.subr.bf16.mxu0 0
      %706 = vmatpush1.bf16.xpose.msra.mxu0 0
      %707 = vmatprep.subr.bf16.mxu0 0
      %708 = vmatpush1.bf16.xpose.msra.mxu0 0
      %709 = vmatprep.subr.bf16.mxu0 0
      %710 = vmatpush1.bf16.xpose.msra.mxu0 0
      %711 = vmatprep.subr.bf16.mxu0 0
      %712 = vmatpush1.bf16.xpose.msra.mxu0 0
      %713 = vmatprep.subr.bf16.mxu0 0
      %714 = vmatpush1.bf16.xpose.msra.mxu0 0
      %715 = vmatprep.subr.bf16.mxu0 0
      %716 = vmatpush1.bf16.xpose.msra.mxu0 0
      %717 = vmatprep.subr.bf16.mxu0 0
      %718 = vmatpush1.bf16.xpose.msra.mxu0 0
      %719 = vmatprep.subr.bf16.mxu0 0
      %720 = vmatpush1.bf16.xpose.msra.mxu0 0
      %721 = vmatprep.mubr.bf16.mxu0 0
      %722 = vmatmul.mubr.bf16.gmra.mrb[0].mxu0 %v684
      %v723 = vpop.f32.mrb[0].mxu0
      %v724 = vadd.f32 0.0, %v723
      %v725 = vpop.f32.mrb[0].mxu0
      %v726 = vpop.f32.mrb[0].mxu0
      %v727 = vpop.f32.mrb[0].mxu0
      %728 = vdwg.mxu0
      %v729 = vld [vmem:[#allocation2] sm:$0xff]
      %v730 = vld [vmem:[#allocation2 + $0x8] sm:$0xff]
      %v731 = vld [vmem:[#allocation2 + $0x10] sm:$0xff]
      %v732 = vld [vmem:[#allocation2 + $0x18] sm:$0xff]
      %vm733 = vcmask 64512
      %v734 = vsel %vm733, %v586, -inf
      %735 = vmax.xlane.f32.xlu0 %v734
      %v736 = vpop.xlane.xlu0 %735
      %v737 = vsel %vm733, %v632, -inf
      %738 = vmax.xlane.f32.xlu0 %v737
      %v739 = vpop.xlane.xlu0 %738
      %v740 = vsel %vm733, %v678, -inf
      %741 = vmax.xlane.f32.xlu0 %v740
      %v742 = vpop.xlane.xlu0 %741
      %v743 = vsel %vm733, %v724, -inf
      %744 = vmax.xlane.f32.xlu0 %v743
      %v745 = vpop.xlane.xlu0 %744
      %v746 = vmax.f32 %v729, %v736
      %v747 = vmax.f32 %v730, %v739
      %v748 = vmax.f32 %v731, %v742
      %v749 = vmax.f32 %v732, %v745
      %v750 = vsub.f32 %v729, %v746
      %v751 = vsub.f32 %v730, %v747
      %v752 = vsub.f32 %v731, %v748
      %v753 = vsub.f32 %v732, %v749
      %v754 = vmul.f32 %v750, 1.442695
      %v755 = vpow.pop %v754
      %v756 = vmul.f32 %v751, 1.442695
      %v757 = vpow.pop %v756
      %v758 = vmul.f32 %v752, 1.442695
      %v759 = vpow.pop %v758
      %v760 = vmul.f32 %v753, 1.442695
      %v761 = vpow.pop %v760
      %763 = vset.pattern.permute.xlu0 0
      %764 = vperm.xlu0 %763, %v746
      %v765 = vpop.permute.xlu0 %764
      %768 = vset.pattern.permute.xlu0 0
      %769 = vperm.xlu0 %768, %v747
      %v770 = vpop.permute.xlu0 %769
      %773 = vset.pattern.permute.xlu0 0
      %774 = vperm.xlu0 %773, %v748
      %v775 = vpop.permute.xlu0 %774
      %778 = vset.pattern.permute.xlu0 0
      %779 = vperm.xlu0 %778, %v749
      %v780 = vpop.permute.xlu0 %779
      %v782 = vsub.f32 %v586, %v765
      %v783 = vsub.f32 %v632, %v770
      %v784 = vsub.f32 %v678, %v775
      %v785 = vsub.f32 %v724, %v780
      %v786 = vmul.f32 %v782, 1.442695
      %v787 = vpow.pop %v786
      %v788 = vmul.f32 %v783, 1.442695
      %v789 = vpow.pop %v788
      %v790 = vmul.f32 %v784, 1.442695
      %v791 = vpow.pop %v790
      %v792 = vmul.f32 %v785, 1.442695
      %v793 = vpow.pop %v792
      %v794 = vld [vmem:[#allocation3] sm:$0xff]
      %v795 = vld [vmem:[#allocation3 + $0x8] sm:$0xff]
      %v796 = vld [vmem:[#allocation3 + $0x10] sm:$0xff]
      %v797 = vld [vmem:[#allocation3 + $0x18] sm:$0xff]
      %v798 = vmul.f32 %v755, %v794
      %v799 = vmul.f32 %v757, %v795
      %v800 = vmul.f32 %v759, %v796
      %v801 = vmul.f32 %v761, %v797
      %v802 = vsel %vm733, %v787, 0.0
      %803 = vadd.xlane.f32.xlu0 %v802
      %v804 = vpop.xlane.xlu0 %803
      %v805 = vsel %vm733, %v789, 0.0
      %806 = vadd.xlane.f32.xlu0 %v805
      %v807 = vpop.xlane.xlu0 %806
      %v808 = vsel %vm733, %v791, 0.0
      %809 = vadd.xlane.f32.xlu0 %v808
      %v810 = vpop.xlane.xlu0 %809
      %v811 = vsel %vm733, %v793, 0.0
      %812 = vadd.xlane.f32.xlu0 %v811
      %v813 = vpop.xlane.xlu0 %812
      %v814 = vadd.f32 %v798, %v804
      %v815 = vadd.f32 %v799, %v807
      %v816 = vadd.f32 %v800, %v810
      %v817 = vadd.f32 %v801, %v813
      %vm818 = vcmask 7168
      %819 = vst.msk [vmem:[#allocation3] sm:$0xff] %vm818, %v814
      %820 = vst.msk [vmem:[#allocation3 + $0x8] sm:$0xff] %vm818, %v815
      %821 = vst.msk [vmem:[#allocation3 + $0x10] sm:$0xff] %vm818, %v816
      %822 = vst.msk [vmem:[#allocation3 + $0x18] sm:$0xff] %vm818, %v817
      %v823 = vpack.c.bf16 %v787, %v787
      %v824 = vpack.c.bf16 %v789, %v789
      %v825 = vpack.c.bf16 %v791, %v791
      %v826 = vpack.c.bf16 %v793, %v793
      %v828 = vsel %vm733, %v823, 0
      %vm830 = vcmask 1043456
      %v832 = vsel %vm830, %v540, 0
      %834 = vmatprep.subr.bf16.mxu0 0
      %835 = vmatpush1.bf16.msra.mxu0 %v832
      %836 = vmatprep.subr.bf16.mxu0 0
      %837 = vmatpush1.bf16.msra.mxu0 0
      %838 = vmatprep.subr.bf16.mxu0 0
      %839 = vmatpush1.bf16.msra.mxu0 0
      %840 = vmatprep.subr.bf16.mxu0 0
      %841 = vmatpush1.bf16.msra.mxu0 0
      %842 = vmatprep.subr.bf16.mxu0 0
      %843 = vmatpush1.bf16.msra.mxu0 0
      %844 = vmatprep.subr.bf16.mxu0 0
      %845 = vmatpush1.bf16.msra.mxu0 0
      %846 = vmatprep.subr.bf16.mxu0 0
      %847 = vmatpush1.bf16.msra.mxu0 0
      %848 = vmatprep.subr.bf16.mxu0 0
      %849 = vmatpush1.bf16.msra.mxu0 0
      %850 = vmatprep.subr.bf16.mxu0 0
      %851 = vmatpush1.bf16.msra.mxu0 0
      %852 = vmatprep.subr.bf16.mxu0 0
      %853 = vmatpush1.bf16.msra.mxu0 0
      %854 = vmatprep.subr.bf16.mxu0 0
      %855 = vmatpush1.bf16.msra.mxu0 0
      %856 = vmatprep.subr.bf16.mxu0 0
      %857 = vmatpush1.bf16.msra.mxu0 0
      %858 = vmatprep.subr.bf16.mxu0 0
      %859 = vmatpush1.bf16.msra.mxu0 0
      %860 = vmatprep.subr.bf16.mxu0 0
      %861 = vmatpush1.bf16.msra.mxu0 0
      %862 = vmatprep.subr.bf16.mxu0 0
      %863 = vmatpush1.bf16.msra.mxu0 0
      %864 = vmatprep.subr.bf16.mxu0 0
      %865 = vmatpush1.bf16.msra.mxu0 0
      %866 = vmatprep.mubr.bf16.mxu0 0
      %867 = vmatmul.mubr.bf16.gmra.mrb[0].mxu0 %v828
      %v868 = vpop.f32.mrb[0].mxu0
      %v869 = vadd.f32 0.0, %v868
      %v870 = vpop.f32.mrb[0].mxu0
      %v871 = vpop.f32.mrb[0].mxu0
      %v872 = vpop.f32.mrb[0].mxu0
      %873 = vdwg.mxu0
      %v875 = vsel %vm733, %v824, 0
      %v878 = vsel %vm830, %v541, 0
      %880 = vmatprep.subr.bf16.mxu0 0
      %881 = vmatpush1.bf16.msra.mxu0 %v878
      %882 = vmatprep.subr.bf16.mxu0 0
      %883 = vmatpush1.bf16.msra.mxu0 0
      %884 = vmatprep.subr.bf16.mxu0 0
      %885 = vmatpush1.bf16.msra.mxu0 0
      %886 = vmatprep.subr.bf16.mxu0 0
      %887 = vmatpush1.bf16.msra.mxu0 0
      %888 = vmatprep.subr.bf16.mxu0 0
      %889 = vmatpush1.bf16.msra.mxu0 0
      %890 = vmatprep.subr.bf16.mxu0 0
      %891 = vmatpush1.bf16.msra.mxu0 0
      %892 = vmatprep.subr.bf16.mxu0 0
      %893 = vmatpush1.bf16.msra.mxu0 0
      %894 = vmatprep.subr.bf16.mxu0 0
      %895 = vmatpush1.bf16.msra.mxu0 0
      %896 = vmatprep.subr.bf16.mxu0 0
      %897 = vmatpush1.bf16.msra.mxu0 0
      %898 = vmatprep.subr.bf16.mxu0 0
      %899 = vmatpush1.bf16.msra.mxu0 0
      %900 = vmatprep.subr.bf16.mxu0 0
      %901 = vmatpush1.bf16.msra.mxu0 0
      %902 = vmatprep.subr.bf16.mxu0 0
      %903 = vmatpush1.bf16.msra.mxu0 0
      %904 = vmatprep.subr.bf16.mxu0 0
      %905 = vmatpush1.bf16.msra.mxu0 0
      %906 = vmatprep.subr.bf16.mxu0 0
      %907 = vmatpush1.bf16.msra.mxu0 0
      %908 = vmatprep.subr.bf16.mxu0 0
      %909 = vmatpush1.bf16.msra.mxu0 0
      %910 = vmatprep.subr.bf16.mxu0 0
      %911 = vmatpush1.bf16.msra.mxu0 0
      %912 = vmatprep.mubr.bf16.mxu0 0
      %913 = vmatmul.mubr.bf16.gmra.mrb[0].mxu0 %v875
      %v914 = vpop.f32.mrb[0].mxu0
      %v915 = vadd.f32 0.0, %v914
      %v916 = vpop.f32.mrb[0].mxu0
      %v917 = vpop.f32.mrb[0].mxu0
      %v918 = vpop.f32.mrb[0].mxu0
      %919 = vdwg.mxu0
      %v921 = vsel %vm733, %v825, 0
      %v924 = vsel %vm830, %v542, 0
      %926 = vmatprep.subr.bf16.mxu0 0
      %927 = vmatpush1.bf16.msra.mxu0 %v924
      %928 = vmatprep.subr.bf16.mxu0 0
      %929 = vmatpush1.bf16.msra.mxu0 0
      %930 = vmatprep.subr.bf16.mxu0 0
      %931 = vmatpush1.bf16.msra.mxu0 0
      %932 = vmatprep.subr.bf16.mxu0 0
      %933 = vmatpush1.bf16.msra.mxu0 0
      %934 = vmatprep.subr.bf16.mxu0 0
      %935 = vmatpush1.bf16.msra.mxu0 0
      %936 = vmatprep.subr.bf16.mxu0 0
      %937 = vmatpush1.bf16.msra.mxu0 0
      %938 = vmatprep.subr.bf16.mxu0 0
      %939 = vmatpush1.bf16.msra.mxu0 0
      %940 = vmatprep.subr.bf16.mxu0 0
      %941 = vmatpush1.bf16.msra.mxu0 0
      %942 = vmatprep.subr.bf16.mxu0 0
      %943 = vmatpush1.bf16.msra.mxu0 0
      %944 = vmatprep.subr.bf16.mxu0 0
      %945 = vmatpush1.bf16.msra.mxu0 0
      %946 = vmatprep.subr.bf16.mxu0 0
      %947 = vmatpush1.bf16.msra.mxu0 0
      %948 = vmatprep.subr.bf16.mxu0 0
      %949 = vmatpush1.bf16.msra.mxu0 0
      %950 = vmatprep.subr.bf16.mxu0 0
      %951 = vmatpush1.bf16.msra.mxu0 0
      %952 = vmatprep.subr.bf16.mxu0 0
      %953 = vmatpush1.bf16.msra.mxu0 0
      %954 = vmatprep.subr.bf16.mxu0 0
      %955 = vmatpush1.bf16.msra.mxu0 0
      %956 = vmatprep.subr.bf16.mxu0 0
      %957 = vmatpush1.bf16.msra.mxu0 0
      %958 = vmatprep.mubr.bf16.mxu0 0
      %959 = vmatmul.mubr.bf16.gmra.mrb[0].mxu0 %v921
      %v960 = vpop.f32.mrb[0].mxu0
      %v961 = vadd.f32 0.0, %v960
      %v962 = vpop.f32.mrb[0].mxu0
      %v963 = vpop.f32.mrb[0].mxu0
      %v964 = vpop.f32.mrb[0].mxu0
      %965 = vdwg.mxu0
      %v967 = vsel %vm733, %v826, 0
      %v970 = vsel %vm830, %v543, 0
      %972 = vmatprep.subr.bf16.mxu0 0
      %973 = vmatpush1.bf16.msra.mxu0 %v970
      %974 = vmatprep.subr.bf16.mxu0 0
      %975 = vmatpush1.bf16.msra.mxu0 0
      %976 = vmatprep.subr.bf16.mxu0 0
      %977 = vmatpush1.bf16.msra.mxu0 0
      %978 = vmatprep.subr.bf16.mxu0 0
      %979 = vmatpush1.bf16.msra.mxu0 0
      %980 = vmatprep.subr.bf16.mxu0 0
      %981 = vmatpush1.bf16.msra.mxu0 0
      %982 = vmatprep.subr.bf16.mxu0 0
      %983 = vmatpush1.bf16.msra.mxu0 0
      %984 = vmatprep.subr.bf16.mxu0 0
      %985 = vmatpush1.bf16.msra.mxu0 0
      %986 = vmatprep.subr.bf16.mxu0 0
      %987 = vmatpush1.bf16.msra.mxu0 0
      %988 = vmatprep.subr.bf16.mxu0 0
      %989 = vmatpush1.bf16.msra.mxu0 0
      %990 = vmatprep.subr.bf16.mxu0 0
      %991 = vmatpush1.bf16.msra.mxu0 0
      %992 = vmatprep.subr.bf16.mxu0 0
      %993 = vmatpush1.bf16.msra.mxu0 0
      %994 = vmatprep.subr.bf16.mxu0 0
      %995 = vmatpush1.bf16.msra.mxu0 0
      %996 = vmatprep.subr.bf16.mxu0 0
      %997 = vmatpush1.bf16.msra.mxu0 0
      %998 = vmatprep.subr.bf16.mxu0 0
      %999 = vmatpush1.bf16.msra.mxu0 0
      %1000 = vmatprep.subr.bf16.mxu0 0
      %1001 = vmatpush1.bf16.msra.mxu0 0
      %1002 = vmatprep.subr.bf16.mxu0 0
      %1003 = vmatpush1.bf16.msra.mxu0 0
      %1004 = vmatprep.mubr.bf16.mxu0 0
      %1005 = vmatmul.mubr.bf16.gmra.mrb[0].mxu0 %v967
      %v1006 = vpop.f32.mrb[0].mxu0
      %v1007 = vadd.f32 0.0, %v1006
      %v1008 = vpop.f32.mrb[0].mxu0
      %v1009 = vpop.f32.mrb[0].mxu0
      %v1010 = vpop.f32.mrb[0].mxu0
      %1011 = vdwg.mxu0
      %v1012 = vld [vmem:[#allocation4] sm:$0xff]
      %v1013 = vld [vmem:[#allocation4 + $0x8] sm:$0xff]
      %v1014 = vld [vmem:[#allocation4 + $0x10] sm:$0xff]
      %v1015 = vld [vmem:[#allocation4 + $0x18] sm:$0xff]
      %1017 = vset.pattern.permute.xlu0 0
      %1018 = vperm.xlu0 %1017, %v755
      %v1019 = vpop.permute.xlu0 %1018
      %1022 = vset.pattern.permute.xlu0 0
      %1023 = vperm.xlu0 %1022, %v757
      %v1024 = vpop.permute.xlu0 %1023
      %1027 = vset.pattern.permute.xlu0 0
      %1028 = vperm.xlu0 %1027, %v759
      %v1029 = vpop.permute.xlu0 %1028
      %1032 = vset.pattern.permute.xlu0 0
      %1033 = vperm.xlu0 %1032, %v761
      %v1034 = vpop.permute.xlu0 %1033
      %v1036 = vmul.f32 %v1019, %v1012
      %v1037 = vmul.f32 %v1024, %v1013
      %v1038 = vmul.f32 %v1029, %v1014
      %v1039 = vmul.f32 %v1034, %v1015
      %v1040 = vadd.f32 %v1036, %v869
      %v1041 = vadd.f32 %v1037, %v915
      %v1042 = vadd.f32 %v1038, %v961
      %v1043 = vadd.f32 %v1039, %v1007
      %1044 = vst.msk [vmem:[#allocation4] sm:$0xff] %vm544, %v1040
      %1045 = vst.msk [vmem:[#allocation4 + $0x8] sm:$0xff] %vm544, %v1041
      %1046 = vst.msk [vmem:[#allocation4 + $0x10] sm:$0xff] %vm544, %v1042
      %1047 = vst.msk [vmem:[#allocation4 + $0x18] sm:$0xff] %vm544, %v1043
      %1048 = vst.msk [vmem:[#allocation2] sm:$0xff] %vm818, %v746
      %1049 = vst.msk [vmem:[#allocation2 + $0x8] sm:$0xff] %vm818, %v747
      %1050 = vst.msk [vmem:[#allocation2 + $0x10] sm:$0xff] %vm818, %v748
      %1051 = vst.msk [vmem:[#allocation2 + $0x18] sm:$0xff] %vm818, %v749
      // Predicated region
      $region69: #{_forward_impl.3} parent=63 // pred_check
        %p1052 = pneg %p514
      $region70: #{_forward_impl.3} parent=63 // pred_check_branch
        %1054 = sbr.rel (%p1052) target = $region72
      $region71: #{_forward_impl.3} parent=63 // pred_region
        %v1055 = vld [vmem:[#allocation3] sm:$0xff]
        %v1056 = vld [vmem:[#allocation3 + $0x8] sm:$0xff]
        %v1057 = vld [vmem:[#allocation3 + $0x10] sm:$0xff]
        %v1058 = vld [vmem:[#allocation3 + $0x18] sm:$0xff]
        %v1059 = vrcp.pop %v1055
        %v1060 = vrcp.pop %v1056
        %v1061 = vrcp.pop %v1057
        %v1062 = vrcp.pop %v1058
        %v1063 = vld [vmem:[#allocation4] sm:$0xff]
        %v1064 = vld [vmem:[#allocation4 + $0x8] sm:$0xff]
        %v1065 = vld [vmem:[#allocation4 + $0x10] sm:$0xff]
        %v1066 = vld [vmem:[#allocation4 + $0x18] sm:$0xff]
        %1068 = vset.pattern.permute.xlu0 0
        %1069 = vperm.xlu0 %1068, %v1059
        %v1070 = vpop.permute.xlu0 %1069
        %1073 = vset.pattern.permute.xlu0 0
        %1074 = vperm.xlu0 %1073, %v1060
        %v1075 = vpop.permute.xlu0 %1074
        %1078 = vset.pattern.permute.xlu0 0
        %1079 = vperm.xlu0 %1078, %v1061
        %v1080 = vpop.permute.xlu0 %1079
        %1083 = vset.pattern.permute.xlu0 0
        %1084 = vperm.xlu0 %1083, %v1062
        %v1085 = vpop.permute.xlu0 %1084
        %v1087 = vmul.f32 %v1063, %v1070
        %v1088 = vmul.f32 %v1064, %v1075
        %v1089 = vmul.f32 %v1065, %v1080
        %v1090 = vmul.f32 %v1066, %v1085
        %v1091 = vpack.c.bf16 %v1087, %v1087
        %v1092 = vpack.c.bf16 %v1088, %v1088
        %v1093 = vpack.c.bf16 %v1089, %v1089
        %v1094 = vpack.c.bf16 %v1090, %v1090
        %1096 = vrot.lane.b32.xlu0 %v1092, 32
        %v1097 = vpop.permute.xlu0 %1096
        %1099 = vrot.lane.b32.xlu0 %v1093, 64
        %v1100 = vpop.permute.xlu0 %1099
        %1102 = vrot.lane.b32.xlu0 %v1094, 96
        %v1103 = vpop.permute.xlu0 %1102
        %v1106 = vsel %vm544, %v1091, %v1097
        %vm1107 = vcmask 523264
        %v1109 = vsel %vm1107, %v1106, %v1100
        %vm1110 = vcmask 785408
        %v1112 = vsel %vm1110, %v1109, %v1103
        %v1114 = vld [vmem:[%s4] sm:$0xf]
        %v1115 = vld [vmem:[%s4 + $0x4] sm:$0xf]
        %v1116 = vld [vmem:[%s4 + $0x8] sm:$0xf]
        %v1117 = vld [vmem:[%s4 + $0xc] sm:$0xf]
        %v1118 = vld [vmem:[%s4 + $0x10] sm:$0xf]
        %v1119 = vld [vmem:[%s4 + $0x14] sm:$0xf]
        %v1120 = vld [vmem:[%s4 + $0x18] sm:$0xf]
        %v1121 = vld [vmem:[%s4 + $0x1c] sm:$0xf]
        %v1122 = vld [vmem:[%s4 + $0x20] sm:$0xf]
        %v1123 = vld [vmem:[%s4 + $0x24] sm:$0xf]
        %v1124 = vld [vmem:[%s4 + $0x28] sm:$0xf]
        %v1125 = vld [vmem:[%s4 + $0x2c] sm:$0xf]
        %v1126 = vld [vmem:[%s4 + $0x30] sm:$0xf]
        %v1127 = vld [vmem:[%s4 + $0x34] sm:$0xf]
        %v1128 = vld [vmem:[%s4 + $0x38] sm:$0xf]
        %v1129 = vld [vmem:[%s4 + $0x3c] sm:$0xf]
        %v1130 = vld [vmem:[%s5] sm:$0x1]
        %v1132 = vlaneseq
        %v1133 = vshrl.u32 %v1132, 7
        %v1134 = vsub.s32 0, %v1133
        %v1135 = vrot.slane %v1130, %v1134
        %v1153 = vunpack.c.l.b16 %v1114
        %v1154 = vunpack.c.l.b16 %v1115
        %v1155 = vunpack.c.l.b16 %v1116
        %v1156 = vunpack.c.l.b16 %v1117
        %v1157 = vunpack.c.l.b16 %v1118
        %v1158 = vunpack.c.l.b16 %v1119
        %v1159 = vunpack.c.l.b16 %v1120
        %v1160 = vunpack.c.l.b16 %v1121
        %v1161 = vunpack.c.l.b16 %v1122
        %v1162 = vunpack.c.l.b16 %v1123
        %v1163 = vunpack.c.l.b16 %v1124
        %v1164 = vunpack.c.l.b16 %v1125
        %v1165 = vunpack.c.l.b16 %v1126
        %v1166 = vunpack.c.l.b16 %v1127
        %v1167 = vunpack.c.l.b16 %v1128
        %v1168 = vunpack.c.l.b16 %v1129
        %v1169 = vpack.c.b16 %v1154, %v1153
        %v1170 = vpack.c.b16 %v1156, %v1155
        %v1171 = vpack.c.b16 %v1158, %v1157
        %v1172 = vpack.c.b16 %v1160, %v1159
        %v1173 = vpack.c.b16 %v1162, %v1161
        %v1174 = vpack.c.b16 %v1164, %v1163
        %v1175 = vpack.c.b16 %v1166, %v1165
        %v1176 = vpack.c.b16 %v1168, %v1167
        %1185 = vmatprep.subr.bf16.mxu0 0
        %1186 = vmatpush1.bf16.msra.mxu0 %v1169
        %1187 = vmatprep.subr.bf16.mxu0 0
        %1188 = vmatpush1.bf16.msra.mxu0 %v1170
        %1189 = vmatprep.subr.bf16.mxu0 0
        %1190 = vmatpush1.bf16.msra.mxu0 %v1171
        %1191 = vmatprep.subr.bf16.mxu0 0
        %1192 = vmatpush1.bf16.msra.mxu0 %v1172
        %1193 = vmatprep.subr.bf16.mxu0 0
        %1194 = vmatpush1.bf16.msra.mxu0 %v1173
        %1195 = vmatprep.subr.bf16.mxu0 0
        %1196 = vmatpush1.bf16.msra.mxu0 %v1174
        %1197 = vmatprep.subr.bf16.mxu0 0
        %1198 = vmatpush1.bf16.msra.mxu0 %v1175
        %1199 = vmatprep.subr.bf16.mxu0 0
        %1200 = vmatpush1.bf16.msra.mxu0 %v1176
        %1201 = vmatprep.subr.bf16.mxu0 0
        %1202 = vmatpush1.bf16.msra.mxu0 0
        %1203 = vmatprep.subr.bf16.mxu0 0
        %1204 = vmatpush1.bf16.msra.mxu0 0
        %1205 = vmatprep.subr.bf16.mxu0 0
        %1206 = vmatpush1.bf16.msra.mxu0 0
        %1207 = vmatprep.subr.bf16.mxu0 0
        %1208 = vmatpush1.bf16.msra.mxu0 0
        %1209 = vmatprep.subr.bf16.mxu0 0
        %1210 = vmatpush1.bf16.msra.mxu0 0
        %1211 = vmatprep.subr.bf16.mxu0 0
        %1212 = vmatpush1.bf16.msra.mxu0 0
        %1213 = vmatprep.subr.bf16.mxu0 0
        %1214 = vmatpush1.bf16.msra.mxu0 0
        %1215 = vmatprep.subr.bf16.mxu0 0
        %1216 = vmatpush1.bf16.msra.mxu0 0
        %1217 = vmatprep.mubr.bf16.mxu0 0
        %1218 = vmatmul.mubr.bf16.gmra.mrb[0].mxu0 %v1112
        %v1219 = vpop.f32.mrb[0].mxu0
        %v1220 = vadd.f32 %v1135, %v1219
        %v1221 = vpop.f32.mrb[0].mxu0
        %v1222 = vpop.f32.mrb[0].mxu0
        %v1223 = vpop.f32.mrb[0].mxu0
        %1224 = vdwg.mxu0
        %v1225 = vld [vmem:[%s481] sm:$0xff]
        %v1226 = vadd.f32 %v1225, %v1220
        %v1227 = vld [vmem:[%s6] sm:$0x1]
        %1228 = vadd.xlane.f32.xlu0 %v1226
        %v1229 = vpop.xlane.xlu0 %1228
        %v1230 = vmul.f32 %v1229, 0.03125
        %v1231 = vmul.f32 %v1226, %v1226
        %1232 = vadd.xlane.f32.xlu0 %v1231
        %v1233 = vpop.xlane.xlu0 %1232
        %v1234 = vmul.f32 %v1233, 0.03125
        %v1235 = vmul.f32 %v1230, %v1230
        %v1236 = vsub.f32 %v1234, %v1235
        %v1237 = vsub.f32 %v1226, %v1230
        %v1238 = vadd.f32 %v1236, 1e-05
        %v1239 = vrsqrt.pop %v1238
        %v1240 = vmul.f32 %v1237, %v1239
        %v1242 = vlaneseq
        %v1243 = vshrl.u32 %v1242, 7
        %v1244 = vsub.s32 0, %v1243
        %v1245 = vrot.slane %v1227, %v1244
        %v1247 = vmul.f32 %v1240, %v1245
        %v1248 = vpack.c.bf16 %v1247, %v1247
        %v1249 = vld [vmem:[%s7] sm:$0xf]
        %v1250 = vld [vmem:[%s7 + $0x4] sm:$0xf]
        %v1251 = vld [vmem:[%s7 + $0x8] sm:$0xf]
        %v1252 = vld [vmem:[%s7 + $0xc] sm:$0xf]
        %v1253 = vld [vmem:[%s7 + $0x10] sm:$0xf]
        %v1254 = vld [vmem:[%s7 + $0x14] sm:$0xf]
        %v1255 = vld [vmem:[%s7 + $0x18] sm:$0xf]
        %v1256 = vld [vmem:[%s7 + $0x1c] sm:$0xf]
        %v1257 = vld [vmem:[%s7 + $0x20] sm:$0xf]
        %v1258 = vld [vmem:[%s7 + $0x24] sm:$0xf]
        %v1259 = vld [vmem:[%s7 + $0x28] sm:$0xf]
        %v1260 = vld [vmem:[%s7 + $0x2c] sm:$0xf]
        %v1261 = vld [vmem:[%s7 + $0x30] sm:$0xf]
        %v1262 = vld [vmem:[%s7 + $0x34] sm:$0xf]
        %v1263 = vld [vmem:[%s7 + $0x38] sm:$0xf]
        %v1264 = vld [vmem:[%s7 + $0x3c] sm:$0xf]
        %v1265 = vld [vmem:[%s8] sm:$0x1]
        %v1267 = vlaneseq
        %v1268 = vshrl.u32 %v1267, 7
        %v1269 = vsub.s32 0, %v1268
        %v1270 = vrot.slane %v1265, %v1269
        %v1288 = vunpack.c.l.b16 %v1249
        %v1289 = vunpack.c.l.b16 %v1250
        %v1290 = vunpack.c.l.b16 %v1251
        %v1291 = vunpack.c.l.b16 %v1252
        %v1292 = vunpack.c.l.b16 %v1253
        %v1293 = vunpack.c.l.b16 %v1254
        %v1294 = vunpack.c.l.b16 %v1255
        %v1295 = vunpack.c.l.b16 %v1256
        %v1296 = vunpack.c.l.b16 %v1257
        %v1297 = vunpack.c.l.b16 %v1258
        %v1298 = vunpack.c.l.b16 %v1259
        %v1299 = vunpack.c.l.b16 %v1260
        %v1300 = vunpack.c.l.b16 %v1261
        %v1301 = vunpack.c.l.b16 %v1262
        %v1302 = vunpack.c.l.b16 %v1263
        %v1303 = vunpack.c.l.b16 %v1264
        %v1304 = vpack.c.b16 %v1289, %v1288
        %v1305 = vpack.c.b16 %v1291, %v1290
        %v1306 = vpack.c.b16 %v1293, %v1292
        %v1307 = vpack.c.b16 %v1295, %v1294
        %v1308 = vpack.c.b16 %v1297, %v1296
        %v1309 = vpack.c.b16 %v1299, %v1298
        %v1310 = vpack.c.b16 %v1301, %v1300
        %v1311 = vpack.c.b16 %v1303, %v1302
        %1320 = vmatprep.subr.bf16.mxu0 0
        %1321 = vmatpush1.bf16.msra.mxu0 %v1304
        %1322 = vmatprep.subr.bf16.mxu0 0
        %1323 = vmatpush1.bf16.msra.mxu0 %v1305
        %1324 = vmatprep.subr.bf16.mxu0 0
        %1325 = vmatpush1.bf16.msra.mxu0 %v1306
        %1326 = vmatprep.subr.bf16.mxu0 0
        %1327 = vmatpush1.bf16.msra.mxu0 %v1307
        %1328 = vmatprep.subr.bf16.mxu0 0
        %1329 = vmatpush1.bf16.msra.mxu0 %v1308
        %1330 = vmatprep.subr.bf16.mxu0 0
        %1331 = vmatpush1.bf16.msra.mxu0 %v1309
        %1332 = vmatprep.subr.bf16.mxu0 0
        %1333 = vmatpush1.bf16.msra.mxu0 %v1310
        %1334 = vmatprep.subr.bf16.mxu0 0
        %1335 = vmatpush1.bf16.msra.mxu0 %v1311
        %1336 = vmatprep.subr.bf16.mxu0 0
        %1337 = vmatpush1.bf16.msra.mxu0 0
        %1338 = vmatprep.subr.bf16.mxu0 0
        %1339 = vmatpush1.bf16.msra.mxu0 0
        %1340 = vmatprep.subr.bf16.mxu0 0
        %1341 = vmatpush1.bf16.msra.mxu0 0
        %1342 = vmatprep.subr.bf16.mxu0 0
        %1343 = vmatpush1.bf16.msra.mxu0 0
        %1344 = vmatprep.subr.bf16.mxu0 0
        %1345 = vmatpush1.bf16.msra.mxu0 0
        %1346 = vmatprep.subr.bf16.mxu0 0
        %1347 = vmatpush1.bf16.msra.mxu0 0
        %1348 = vmatprep.subr.bf16.mxu0 0
        %1349 = vmatpush1.bf16.msra.mxu0 0
        %1350 = vmatprep.subr.bf16.mxu0 0
        %1351 = vmatpush1.bf16.msra.mxu0 0
        %1352 = vmatprep.mubr.bf16.mxu0 0
        %1353 = vmatmul.mubr.bf16.gmra.mrb[0].mxu0 %v1248
        %v1354 = vpop.f32.mrb[0].mxu0
        %v1355 = vadd.f32 %v1270, %v1354
        %v1356 = vpop.f32.mrb[0].mxu0
        %v1357 = vpop.f32.mrb[0].mxu0
        %v1358 = vpop.f32.mrb[0].mxu0
        %1359 = vdwg.mxu0
        %v1360 = vmul.f32 %v1355, 0.5
        %v1361 = vmul.f32 %v1355, 0.70710677
        %v1362 = verf.f32.pop %v1361
        %v1363 = vadd.f32 %v1362, 1.0
        %v1364 = vmul.f32 %v1360, %v1363
        %v1365 = vpack.c.bf16 %v1364, %v1364
        %v1366 = vld [vmem:[%s9] sm:$0xf]
        %v1367 = vld [vmem:[%s9 + $0x4] sm:$0xf]
        %v1368 = vld [vmem:[%s9 + $0x8] sm:$0xf]
        %v1369 = vld [vmem:[%s9 + $0xc] sm:$0xf]
        %v1370 = vld [vmem:[%s9 + $0x10] sm:$0xf]
        %v1371 = vld [vmem:[%s9 + $0x14] sm:$0xf]
        %v1372 = vld [vmem:[%s9 + $0x18] sm:$0xf]
        %v1373 = vld [vmem:[%s9 + $0x1c] sm:$0xf]
        %v1374 = vld [vmem:[%s9 + $0x20] sm:$0xf]
        %v1375 = vld [vmem:[%s9 + $0x24] sm:$0xf]
        %v1376 = vld [vmem:[%s9 + $0x28] sm:$0xf]
        %v1377 = vld [vmem:[%s9 + $0x2c] sm:$0xf]
        %v1378 = vld [vmem:[%s9 + $0x30] sm:$0xf]
        %v1379 = vld [vmem:[%s9 + $0x34] sm:$0xf]
        %v1380 = vld [vmem:[%s9 + $0x38] sm:$0xf]
        %v1381 = vld [vmem:[%s9 + $0x3c] sm:$0xf]
        %v1382 = vld [vmem:[%s10] sm:$0x1]
        %v1384 = vlaneseq
        %v1385 = vshrl.u32 %v1384, 7
        %v1386 = vsub.s32 0, %v1385
        %v1387 = vrot.slane %v1382, %v1386
        %v1405 = vunpack.c.l.b16 %v1366
        %v1406 = vunpack.c.l.b16 %v1367
        %v1407 = vunpack.c.l.b16 %v1368
        %v1408 = vunpack.c.l.b16 %v1369
        %v1409 = vunpack.c.l.b16 %v1370
        %v1410 = vunpack.c.l.b16 %v1371
        %v1411 = vunpack.c.l.b16 %v1372
        %v1412 = vunpack.c.l.b16 %v1373
        %v1413 = vunpack.c.l.b16 %v1374
        %v1414 = vunpack.c.l.b16 %v1375
        %v1415 = vunpack.c.l.b16 %v1376
        %v1416 = vunpack.c.l.b16 %v1377
        %v1417 = vunpack.c.l.b16 %v1378
        %v1418 = vunpack.c.l.b16 %v1379
        %v1419 = vunpack.c.l.b16 %v1380
        %v1420 = vunpack.c.l.b16 %v1381
        %v1421 = vpack.c.b16 %v1406, %v1405
        %v1422 = vpack.c.b16 %v1408, %v1407
        %v1423 = vpack.c.b16 %v1410, %v1409
        %v1424 = vpack.c.b16 %v1412, %v1411
        %v1425 = vpack.c.b16 %v1414, %v1413
        %v1426 = vpack.c.b16 %v1416, %v1415
        %v1427 = vpack.c.b16 %v1418, %v1417
        %v1428 = vpack.c.b16 %v1420, %v1419
        %1437 = vmatprep.subr.bf16.mxu0 0
        %1438 = vmatpush1.bf16.msra.mxu0 %v1421
        %1439 = vmatprep.subr.bf16.mxu0 0
        %1440 = vmatpush1.bf16.msra.mxu0 %v1422
        %1441 = vmatprep.subr.bf16.mxu0 0
        %1442 = vmatpush1.bf16.msra.mxu0 %v1423
        %1443 = vmatprep.subr.bf16.mxu0 0
        %1444 = vmatpush1.bf16.msra.mxu0 %v1424
        %1445 = vmatprep.subr.bf16.mxu0 0
        %1446 = vmatpush1.bf16.msra.mxu0 %v1425
        %1447 = vmatprep.subr.bf16.mxu0 0
        %1448 = vmatpush1.bf16.msra.mxu0 %v1426
        %1449 = vmatprep.subr.bf16.mxu0 0
        %1450 = vmatpush1.bf16.msra.mxu0 %v1427
        %1451 = vmatprep.subr.bf16.mxu0 0
        %1452 = vmatpush1.bf16.msra.mxu0 %v1428
        %1453 = vmatprep.subr.bf16.mxu0 0
        %1454 = vmatpush1.bf16.msra.mxu0 0
        %1455 = vmatprep.subr.bf16.mxu0 0
        %1456 = vmatpush1.bf16.msra.mxu0 0
        %1457 = vmatprep.subr.bf16.mxu0 0
        %1458 = vmatpush1.bf16.msra.mxu0 0
        %1459 = vmatprep.subr.bf16.mxu0 0
        %1460 = vmatpush1.bf16.msra.mxu0 0
        %1461 = vmatprep.subr.bf16.mxu0 0
        %1462 = vmatpush1.bf16.msra.mxu0 0
        %1463 = vmatprep.subr.bf16.mxu0 0
        %1464 = vmatpush1.bf16.msra.mxu0 0
        %1465 = vmatprep.subr.bf16.mxu0 0
        %1466 = vmatpush1.bf16.msra.mxu0 0
        %1467 = vmatprep.subr.bf16.mxu0 0
        %1468 = vmatpush1.bf16.msra.mxu0 0
        %1469 = vmatprep.mubr.bf16.mxu0 0
        %1470 = vmatmul.mubr.bf16.gmra.mrb[0].mxu0 %v1365
        %v1471 = vpop.f32.mrb[0].mxu0
        %v1472 = vadd.f32 %v1387, %v1471
        %v1473 = vpop.f32.mrb[0].mxu0
        %v1474 = vpop.f32.mrb[0].mxu0
        %v1475 = vpop.f32.mrb[0].mxu0
        %1476 = vdwg.mxu0
        %v1477 = vadd.f32 %v1226, %v1472
        %1478 = vst [vmem:[%s512] sm:$0xff] %v1477
      $region72: #{_forward_impl.3} parent=63 // pred_fallthru
        _
      %p1479 = scmp.lt.s32.totalorder %s27, 1
      %s1480 = scalar_select %p1479, %s27, 1
      %p1481 = scmp.lt.s32.totalorder %s28, 0
      %s1482 = scalar_select %p1481, %s28, 0
      %s1483 = sadd.s32 %s1482, %s1480
      %s1484 = smul.addr %s1483, 8
      %s1485 = scalar_lea.vmem %s11, %s1484
      // Predicated region
      $region73: #{_forward_impl.3} parent=63 // pred_check
        %p1486 = pneg %p320
      $region74: #{_forward_impl.3} parent=63 // pred_check_branch
        %1488 = sbr.rel (%p1486) target = $region76
      $region75: #{_forward_impl.3} parent=63 // pred_region
        _
      $region76: #{_forward_impl.3} parent=63 // pred_fallthru
        _
    $region64: #{_forward_impl.3} parent=5 // pred_fallthru
      _
    %p1489 = scmp.le.s32.totalorder 2, %s17
    // Predicated region
    $region77: #{_forward_impl.3} parent=5 // pred_check
      %p1490 = pneg %p1489
    $region78: #{_forward_impl.3} parent=5 // pred_check_branch
      %1492 = sbr.rel (%p1490) target = $region80
    $region79: #{_forward_impl.3} parent=5 // pred_region
      %s1493 = ssub.s32 %s17, 2
      // Predicated region
      $region81: #{_forward_impl.3} parent=79 // pred_check
        %p1494 = pneg %p326
      $region82: #{_forward_impl.3} parent=79 // pred_check_branch
        %1496 = sbr.rel (%p1494) target = $region84
      $region83: #{_forward_impl.3} parent=79 // pred_region
        %p1497 = scmp.lt.s32.totalorder %s30, 1
        %s1498 = scalar_select %p1497, %s30, 1
        %p1499 = scmp.lt.s32.totalorder %s31, 0
        %s1500 = scalar_select %p1499, %s31, 0
        %s1501 = sadd.s32 %s1500, %s1498
        %s1502 = smul.addr %s1501, 8
        %s1503 = scalar_lea.vmem %s11, %s1502
      $region84: #{_forward_impl.3} parent=79 // pred_fallthru
        _
    $region80: #{_forward_impl.3} parent=5 // pred_fallthru
      _
  $region6: #{_forward_impl.3} parent=0 // loop_footer
    %s21 = sadd.s32 1, %s17
  $region7: #{_forward_impl.3} parent=0 // loop_footer_branch
    %16 = sbr.rel target = $region3
  $region8: #{_forward_impl.3} parent=0 // loop_exit
    _

// kernel: _forward_impl.2
$region0: #{_forward_impl.2}
  #allocation0 [shape = 'u32[]', space=smem, size = 0x4, offset = 0x4, fixed_abs, tag = 'smem constant byte address 0x4 - core index']
  #allocation1 [shape = 'u32[144,128]{1,0:T(1,128)}', space=vmem, size = 0x12000, scoped, tag = 'internal scratch']
  %s0 = inlined_call_operand.vmem [shape: f32[2,8,128], index: 0, kind: input, shape index: {}]
  %s1 = inlined_call_operand.vmem [shape: f32[1,128], index: 1, kind: input, shape index: {}]
  %s2 = inlined_call_operand.hbm [shape: bf16[128,384], index: 2, kind: input, shape index: {}]
  %s3 = inlined_call_operand.vmem [shape: bf16[2,4,8,32], index: 3, kind: output, shape index: {0}]
  %s4 = inlined_call_operand.vmem [shape: bf16[2,4,8,32], index: 4, kind: output, shape index: {1}]
  %s5 = inlined_call_operand.vmem [shape: bf16[2,4,8,32], index: 5, kind: output, shape index: {2}]
  %6 = xla_tuple %s3, %s4, %s5
  %s7 = sld [smem:[#allocation0]]
  $region65: #{_forward_impl.2} parent=0
    _
  %s9 = ssub.s32 1, %s7
  %s10 = scalar_select 0, %s9, %s7
  $region1: #{_forward_impl.2} parent=0
    #allocation2 [shape = 'u8[98304]{0}', space=vmem, size = 0x18000, scoped, tag = 'input window, operand 2, single buffered']
    #allocation3 [shape = 's32[2]{0}', space=sflag, size = 0x8, scoped, tag = 'scoped memory for _forward_impl.2']
    %11 = vsyncpa [#allocation3], 0
    loop: start=0, step=1, limit=4
    $region2: #{_forward_impl.2} parent=1 // loop_pre_header
      _
    $region3: #{_forward_impl.2} parent=1 // loop_header
      %s13 = sphi 0, %s17
      %p14 = scmp.ge.s32.totalorder %s13, 4
      %s20 = sphi 0, %s32
      %s21 = sphi 0, %s28
      %s22 = sphi 0, %s20
      %s23 = sphi 0, %s21
      %s24 = sphi 0, %s22
      %s25 = sphi 0, %s23
      %s37 = sphi 0, %s39
      %s40 = sphi 0, %s37
      %s41 = sphi 0, %s40
      %s57 = sphi 0, %s41
      %s61 = sphi 0, %s61
      %s63 = sphi 0, %s61
      %s64 = sphi 0, %s63
      %s78 = sphi 0, %s64
      %s82 = sphi 0, %s82
      %s84 = sphi 0, %s82
      %s85 = sphi 0, %s84
      %s99 = sphi 0, %s85
      %s107 = sphi 0, %s109
      %s110 = sphi 0, %s107
      %s111 = sphi 0, %s110
      %s127 = sphi 0, %s111
      %s135 = sphi 0, %s137
      %s138 = sphi 0, %s135
      %s139 = sphi 0, %s138
      %s155 = sphi 0, %s139
      %s163 = sphi 0, %s165
      %s166 = sphi 0, %s163
      %s167 = sphi 0, %s166
      %s183 = sphi 0, %s167
    $region4: #{_forward_impl.2} parent=1 // loop_header_branch
      %16 = sbr.rel (%p14) target = $region8
    $region5: #{_forward_impl.2} parent=1 // loop_body
      %s18 = ssub.s32 %s13, 1
      %s19 = ssub.s32 %s13, 2
      %s26 = sadd.s32 1, %s21
      %p27 = scmp.ge.s32.totalorder %s26, 1
      %s28 = scalar_select %p27, 0, %s26
      %s29 = sadd.s32 1, %s20
      %s30 = scalar_select %p27, %s29, %s20
      %p31 = scmp.ge.s32.totalorder %s30, 2
      %s32 = scalar_select %p31, 0, %s30
      %s33 = ssub.s32 %s20, %s32
      %s34 = ssub.s32 %s21, %s28
      %s35 = sor.u32 %s33, %s34
      %p36 = scmp.eq.s32.totalorder %s35, 0
      %s38 = sadd.s32 %s37, 1
      %s39 = scalar_select %p36, %s37, %s38
      %p42 = pneg %p36
      %p43 = scmp.eq.s32.totalorder %s13, 1
      %p44 = por %p42, %p43
      %p45 = scmp.ne.s32.totalorder %s37, %s40
      %p46 = scmp.eq.s32.totalorder %s13, 0
      %p47 = por %p45, %p46
      %p48 = scmp.ne.s32.totalorder %s37, %s40
      %p49 = scmp.eq.s32.totalorder %s18, 1
      %p50 = por %p48, %p49
      %p51 = scmp.ne.s32.totalorder %s40, %s41
      %p52 = scmp.eq.s32.totalorder %s18, 0
      %p53 = por %p51, %p52
      %p54 = scmp.ne.s32.totalorder %s40, %s41
      %p55 = scmp.eq.s32.totalorder %s19, 1
      %p56 = por %p54, %p55
      %p58 = scmp.ne.s32.totalorder %s41, %s57
      %p59 = scmp.eq.s32.totalorder %s19, 0
      %p60 = por %p58, %p59
      %s62 = sadd.s32 %s61, 1
      %p65 = scmp.eq.s32.totalorder %s13, 1
      %p66 = scmp.ne.s32.totalorder %s61, %s63
      %p67 = scmp.eq.s32.totalorder %s13, 0
      %p68 = por %p66, %p67
      %p69 = scmp.ne.s32.totalorder %s61, %s63
      %p70 = scmp.eq.s32.totalorder %s18, 1
      %p71 = por %p69, %p70
      %p72 = scmp.ne.s32.totalorder %s63, %s64
      %p73 = scmp.eq.s32.totalorder %s18, 0
      %p74 = por %p72, %p73
      %p75 = scmp.ne.s32.totalorder %s63, %s64
      %p76 = scmp.eq.s32.totalorder %s19, 1
      %p77 = por %p75, %p76
      %p79 = scmp.ne.s32.totalorder %s64, %s78
      %p80 = scmp.eq.s32.totalorder %s19, 0
      %p81 = por %p79, %p80
      %s83 = sadd.s32 %s82, 1
      %p86 = scmp.eq.s32.totalorder %s13, 1
      %p87 = scmp.ne.s32.totalorder %s82, %s84
      %p88 = scmp.eq.s32.totalorder %s13, 0
      %p89 = por %p87, %p88
      %p90 = scmp.ne.s32.totalorder %s82, %s84
      %p91 = scmp.eq.s32.totalorder %s18, 1
      %p92 = por %p90, %p91
      %p93 = scmp.ne.s32.totalorder %s84, %s85
      %p94 = scmp.eq.s32.totalorder %s18, 0
      %p95 = por %p93, %p94
      %p96 = scmp.ne.s32.totalorder %s84, %s85
      %p97 = scmp.eq.s32.totalorder %s19, 1
      %p98 = por %p96, %p97
      %p100 = scmp.ne.s32.totalorder %s85, %s99
      %p101 = scmp.eq.s32.totalorder %s19, 0
      %p102 = por %p100, %p101
      %s103 = ssub.s32 %s20, %s32
      %s104 = ssub.s32 %s21, %s28
      %s105 = sor.u32 %s103, %s104
      %p106 = scmp.eq.s32.totalorder %s105, 0
      %s108 = sadd.s32 %s107, 1
      %s109 = scalar_select %p106, %s107, %s108
      %p112 = pneg %p106
      %p113 = scmp.eq.s32.totalorder %s13, 1
      %p114 = por %p112, %p113
      %p115 = scmp.ne.s32.totalorder %s107, %s110
      %p116 = scmp.eq.s32.totalorder %s13, 0
      %p117 = por %p115, %p116
      %p118 = scmp.ne.s32.totalorder %s107, %s110
      %p119 = scmp.eq.s32.totalorder %s18, 1
      %p120 = por %p118, %p119
      %p121 = scmp.ne.s32.totalorder %s110, %s111
      %p122 = scmp.eq.s32.totalorder %s18, 0
      %p123 = por %p121, %p122
      %p124 = scmp.ne.s32.totalorder %s110, %s111
      %p125 = scmp.eq.s32.totalorder %s19, 1
      %p126 = por %p124, %p125
      %p128 = scmp.ne.s32.totalorder %s111, %s127
      %p129 = scmp.eq.s32.totalorder %s19, 0
      %p130 = por %p128, %p129
      %s131 = ssub.s32 %s20, %s32
      %s132 = ssub.s32 %s21, %s28
      %s133 = sor.u32 %s131, %s132
      %p134 = scmp.eq.s32.totalorder %s133, 0
      %s136 = sadd.s32 %s135, 1
      %s137 = scalar_select %p134, %s135, %s136
      %p140 = pneg %p134
      %p141 = scmp.eq.s32.totalorder %s13, 1
      %p142 = por %p140, %p141
      %p143 = scmp.ne.s32.totalorder %s135, %s138
      %p144 = scmp.eq.s32.totalorder %s13, 0
      %p145 = por %p143, %p144
      %p146 = scmp.ne.s32.totalorder %s135, %s138
      %p147 = scmp.eq.s32.totalorder %s18, 1
      %p148 = por %p146, %p147
      %p149 = scmp.ne.s32.totalorder %s138, %s139
      %p150 = scmp.eq.s32.totalorder %s18, 0
      %p151 = por %p149, %p150
      %p152 = scmp.ne.s32.totalorder %s138, %s139
      %p153 = scmp.eq.s32.totalorder %s19, 1
      %p154 = por %p152, %p153
      %p156 = scmp.ne.s32.totalorder %s139, %s155
      %p157 = scmp.eq.s32.totalorder %s19, 0
      %p158 = por %p156, %p157
      %s159 = ssub.s32 %s20, %s32
      %s160 = ssub.s32 %s21, %s28
      %s161 = sor.u32 %s159, %s160
      %p162 = scmp.eq.s32.totalorder %s161, 0
      %s164 = sadd.s32 %s163, 1
      %s165 = scalar_select %p162, %s163, %s164
      %p168 = pneg %p162
      %p169 = scmp.eq.s32.totalorder %s13, 1
      %p170 = por %p168, %p169
      %p171 = scmp.ne.s32.totalorder %s163, %s166
      %p172 = scmp.eq.s32.totalorder %s13, 0
      %p173 = por %p171, %p172
      %p174 = scmp.ne.s32.totalorder %s163, %s166
      %p175 = scmp.eq.s32.totalorder %s18, 1
      %p176 = por %p174, %p175
      %p177 = scmp.ne.s32.totalorder %s166, %s167
      %p178 = scmp.eq.s32.totalorder %s18, 0
      %p179 = por %p177, %p178
      %p180 = scmp.ne.s32.totalorder %s166, %s167
      %p181 = scmp.eq.s32.totalorder %s19, 1
      %p182 = por %p180, %p181
      %p184 = scmp.ne.s32.totalorder %s167, %s183
      %p185 = scmp.eq.s32.totalorder %s19, 0
      %p186 = por %p184, %p185
      %p187 = scmp.le.s32.totalorder 1, %s13
      %p188 = scmp.lt.s32.totalorder %s13, 3
      %p189 = pnand %p187, %p188
      %p190 = pneg %p189
      // Predicated region
      $region9: #{_forward_impl.2} parent=5 // pred_check
        _
      $region10: #{_forward_impl.2} parent=5 // pred_check_branch
        %192 = sbr.rel (%p189) target = $region12
      $region11: #{_forward_impl.2} parent=5 // pred_region
        %s193 = ssub.s32 %s13, 1
        // Predicated region
        $region13: #{_forward_impl.2} parent=11 // pred_check
          %p194 = pneg %p74
        $region14: #{_forward_impl.2} parent=11 // pred_check_branch
          %196 = sbr.rel (%p194) target = $region16
        $region15: #{_forward_impl.2} parent=11 // pred_region
          _
        $region16: #{_forward_impl.2} parent=11 // pred_fallthru
          _
        // Predicated region
        $region17: #{_forward_impl.2} parent=11 // pred_check
          %p197 = pneg %p95
        $region18: #{_forward_impl.2} parent=11 // pred_check_branch
          %199 = sbr.rel (%p197) target = $region20
        $region19: #{_forward_impl.2} parent=11 // pred_region
          %s201 = ssub.s32 3072, 3072
          %202 = vsyncadd [#allocation3], %s201
          %s203 = sshll.u32 [#allocation2], 4
          %s204 = int_to_ptr.vmem [resolvable:$true] %s203
          %209 = dma.hbm_to_vmem [thread:$0]  %s2, 3072, %s204, [#allocation3], 192, 192, 12
        $region20: #{_forward_impl.2} parent=11 // pred_fallthru
          _
      $region12: #{_forward_impl.2} parent=5 // pred_fallthru
        _
      %p210 = scmp.lt.s32.totalorder %s13, 2
      // Predicated region
      $region21: #{_forward_impl.2} parent=5 // pred_check
        %p211 = pneg %p210
      $region22: #{_forward_impl.2} parent=5 // pred_check_branch
        %213 = sbr.rel (%p211) target = $region24
      $region23: #{_forward_impl.2} parent=5 // pred_region
        // Predicated region
        $region25: #{_forward_impl.2} parent=23 // pred_check
          %p214 = pneg %p47
        $region26: #{_forward_impl.2} parent=23 // pred_check_branch
          %216 = sbr.rel (%p214) target = $region28
        $region27: #{_forward_impl.2} parent=23 // pred_region
          %p217 = scmp.lt.s32.totalorder %s20, 1
          %s218 = scalar_select %p217, %s20, 1
          %p219 = scmp.lt.s32.totalorder %s21, 0
          %s220 = scalar_select %p219, %s21, 0
          %s221 = sadd.s32 %s220, %s218
          %s222 = smul.addr %s221, 8
          %s223 = scalar_lea.vmem %s0, %s222
        $region28: #{_forward_impl.2} parent=23 // pred_fallthru
          _
      $region24: #{_forward_impl.2} parent=5 // pred_fallthru
        _
      %p224 = scmp.le.s32.totalorder 1, %s13
      %p225 = scmp.lt.s32.totalorder %s13, 3
      %p226 = pnand %p224, %p225
      %p227 = pneg %p226
      // Predicated region
      $region29: #{_forward_impl.2} parent=5 // pred_check
        _
      $region30: #{_forward_impl.2} parent=5 // pred_check_branch
        %229 = sbr.rel (%p226) target = $region32
      $region31: #{_forward_impl.2} parent=5 // pred_region
        %s230 = ssub.s32 %s13, 1
        // Predicated region
        $region33: #{_forward_impl.2} parent=31 // pred_check
          %p231 = pneg %p95
        $region34: #{_forward_impl.2} parent=31 // pred_check_branch
          %233 = sbr.rel (%p231) target = $region36
        $region35: #{_forward_impl.2} parent=31 // pred_region
          %234 = dma.done [#allocation3], 3072
        $region36: #{_forward_impl.2} parent=31 // pred_fallthru
          _
        %p235 = scmp.lt.s32.totalorder %s22, 1
        %s236 = scalar_select %p235, %s22, 1
        %p237 = scmp.lt.s32.totalorder %s23, 0
        %s238 = scalar_select %p237, %s23, 0
        %s239 = sadd.s32 %s238, %s236
        %s240 = smul.addr %s239, 8
        %s241 = scalar_lea.vmem %s0, %s240
        %p242 = pneg %p53
        %p243 = pneg %p50
        %p244 = pneg %p74
        %p245 = pneg %p71
        %p246 = pneg %p95
        %p247 = pneg %p92
        %p248 = pneg %p123
        %p249 = pneg %p120
        %p250 = scmp.lt.s32.totalorder %s22, 1
        %s251 = scalar_select %p250, %s22, 1
        %p252 = scmp.lt.s32.totalorder %s23, 0
        %s253 = scalar_select %p252, %s23, 0
        %s254 = smul.addr %s251, 4
        %s255 = sadd.s32 %s253, %s254
        %s256 = smul.addr %s255, 4
        %s257 = scalar_lea.vmem %s3, %s256
        %p258 = pneg %p151
        %p259 = pneg %p148
        %p260 = scmp.lt.s32.totalorder %s22, 1
        %s261 = scalar_select %p260, %s22, 1
        %p262 = scmp.lt.s32.totalorder %s23, 0
        %s263 = scalar_select %p262, %s23, 0
        %s264 = smul.addr %s261, 4
        %s265 = sadd.s32 %s263, %s264
        %s266 = smul.addr %s265, 4
        %s267 = scalar_lea.vmem %s4, %s266
        %p268 = pneg %p179
        %p269 = pneg %p176
        %p270 = scmp.lt.s32.totalorder %s22, 1
        %s271 = scalar_select %p270, %s22, 1
        %p272 = scmp.lt.s32.totalorder %s23, 0
        %s273 = scalar_select %p272, %s23, 0
        %s274 = smul.addr %s271, 4
        %s275 = sadd.s32 %s273, %s274
        %s276 = smul.addr %s275, 4
        %s277 = scalar_lea.vmem %s5, %s276
        %p278 = scmp.lt.s32.totalorder %s22, 1
        %s279 = scalar_select %p278, %s22, 1
        %p280 = scmp.lt.s32.totalorder %s23, 0
        %s281 = scalar_select %p280, %s23, 0
        %s282 = sadd.s32 %s281, %s279
        %s283 = smul.addr %s282, 8
        %s284 = scalar_lea.vmem %s0, %s283
        %p285 = scmp.lt.s32.totalorder %s22, 1
        %s286 = scalar_select %p285, %s22, 1
        %p287 = scmp.lt.s32.totalorder %s23, 0
        %s288 = scalar_select %p287, %s23, 0
        %s289 = smul.addr %s286, 4
        %s290 = sadd.s32 %s288, %s289
        %s291 = smul.addr %s290, 4
        %s292 = scalar_lea.vmem %s3, %s291
        %p293 = scmp.lt.s32.totalorder %s22, 1
        %s294 = scalar_select %p293, %s22, 1
        %p295 = scmp.lt.s32.totalorder %s23, 0
        %s296 = scalar_select %p295, %s23, 0
        %s297 = smul.addr %s294, 4
        %s298 = sadd.s32 %s296, %s297
        %s299 = smul.addr %s298, 4
        %s300 = scalar_lea.vmem %s4, %s299
        %p301 = scmp.lt.s32.totalorder %s22, 1
        %s302 = scalar_select %p301, %s22, 1
        %p303 = scmp.lt.s32.totalorder %s23, 0
        %s304 = scalar_select %p303, %s23, 0
        %s305 = smul.addr %s302, 4
        %s306 = sadd.s32 %s304, %s305
        %s307 = smul.addr %s306, 4
        %s308 = scalar_lea.vmem %s5, %s307
        %v310 = vld [vmem:[%s284] sm:$0xff]
        %v311 = vld [vmem:[%s1] sm:$0x1]
        %312 = vadd.xlane.f32.xlu0 %v310
        %v313 = vpop.xlane.xlu0 %312
        %v314 = vmul.f32 %v313, 0.03125
        %v315 = vmul.f32 %v310, %v310
        %316 = vadd.xlane.f32.xlu0 %v315
        %v317 = vpop.xlane.xlu0 %316
        %v318 = vmul.f32 %v317, 0.03125
        %v319 = vmul.f32 %v314, %v314
        %v320 = vsub.f32 %v318, %v319
        %v321 = vsub.f32 %v310, %v314
        %v322 = vadd.f32 %v320, 1e-05
        %v323 = vrsqrt.pop %v322
        %v324 = vmul.f32 %v321, %v323
        %v326 = vlaneseq
        %v327 = vshrl.u32 %v326, 7
        %v328 = vsub.s32 0, %v327
        %v329 = vrot.slane %v311, %v328
        %v331 = vmul.f32 %v324, %v329
        %v332 = vpack.c.bf16 %v331, %v331
        %v333 = vld [vmem:[#allocation2] sm:$0xff]
        %v334 = vld [vmem:[#allocation2 + $0x8] sm:$0xf]
        %v335 = vld [vmem:[#allocation2 + $0xc] sm:$0xff]
        %v336 = vld [vmem:[#allocation2 + $0x14] sm:$0xf]
        %v337 = vld [vmem:[#allocation2 + $0x18] sm:$0xff]
        %v338 = vld [vmem:[#allocation2 + $0x20] sm:$0xf]
        %v339 = vld [vmem:[#allocation2 + $0x24] sm:$0xff]
        %v340 = vld [vmem:[#allocation2 + $0x2c] sm:$0xf]
        %v341 = vld [vmem:[#allocation2 + $0x30] sm:$0xff]
        %v342 = vld [vmem:[#allocation2 + $0x38] sm:$0xf]
        %v343 = vld [vmem:[#allocation2 + $0x3c] sm:$0xff]
        %v344 = vld [vmem:[#allocation2 + $0x44] sm:$0xf]
        %v345 = vld [vmem:[#allocation2 + $0x48] sm:$0xff]
        %v346 = vld [vmem:[#allocation2 + $0x50] sm:$0xf]
        %v347 = vld [vmem:[#allocation2 + $0x54] sm:$0xff]
        %v348 = vld [vmem:[#allocation2 + $0x5c] sm:$0xf]
        %v349 = vld [vmem:[#allocation2 + $0x60] sm:$0xff]
        %v350 = vld [vmem:[#allocation2 + $0x68] sm:$0xf]
        %v351 = vld [vmem:[#allocation2 + $0x6c] sm:$0xff]
        %v352 = vld [vmem:[#allocation2 + $0x74] sm:$0xf]
        %v353 = vld [vmem:[#allocation2 + $0x78] sm:$0xff]
        %v354 = vld [vmem:[#allocation2 + $0x80] sm:$0xf]
        %v355 = vld [vmem:[#allocation2 + $0x84] sm:$0xff]
        %v356 = vld [vmem:[#allocation2 + $0x8c] sm:$0xf]
        %v357 = vld [vmem:[#allocation2 + $0x90] sm:$0xff]
        %v358 = vld [vmem:[#allocation2 + $0x98] sm:$0xf]
        %v359 = vld [vmem:[#allocation2 + $0x9c] sm:$0xff]
        %v360 = vld [vmem:[#allocation2 + $0xa4] sm:$0xf]
        %v361 = vld [vmem:[#allocation2 + $0xa8] sm:$0xff]
        %v362 = vld [vmem:[#allocation2 + $0xb0] sm:$0xf]
        %v363 = vld [vmem:[#allocation2 + $0xb4] sm:$0xff]
        %v364 = vld [vmem:[#allocation2 + $0xbc] sm:$0xf]
        %v397 = vunpack.c.l.b16 %v333
        %v398 = vunpack.c.h.b16 %v333
        %v399 = vunpack.c.l.b16 %v334
        %v400 = vunpack.c.l.b16 %v335
        %v401 = vunpack.c.h.b16 %v335
        %v402 = vunpack.c.l.b16 %v336
        %v403 = vunpack.c.l.b16 %v337
        %v404 = vunpack.c.h.b16 %v337
        %v405 = vunpack.c.l.b16 %v338
        %v406 = vunpack.c.l.b16 %v339
        %v407 = vunpack.c.h.b16 %v339
        %v408 = vunpack.c.l.b16 %v340
        %v409 = vunpack.c.l.b16 %v341
        %v410 = vunpack.c.h.b16 %v341
        %v411 = vunpack.c.l.b16 %v342
        %v412 = vunpack.c.l.b16 %v343
        %v413 = vunpack.c.h.b16 %v343
        %v414 = vunpack.c.l.b16 %v344
        %v415 = vunpack.c.l.b16 %v345
        %v416 = vunpack.c.h.b16 %v345
        %v417 = vunpack.c.l.b16 %v346
        %v418 = vunpack.c.l.b16 %v347
        %v419 = vunpack.c.h.b16 %v347
        %v420 = vunpack.c.l.b16 %v348
        %v421 = vunpack.c.l.b16 %v349
        %v422 = vunpack.c.h.b16 %v349
        %v423 = vunpack.c.l.b16 %v350
        %v424 = vunpack.c.l.b16 %v351
        %v425 = vunpack.c.h.b16 %v351
        %v426 = vunpack.c.l.b16 %v352
        %v427 = vunpack.c.l.b16 %v353
        %v428 = vunpack.c.h.b16 %v353
        %v429 = vunpack.c.l.b16 %v354
        %v430 = vunpack.c.l.b16 %v355
        %v431 = vunpack.c.h.b16 %v355
        %v432 = vunpack.c.l.b16 %v356
        %v433 = vunpack.c.l.b16 %v357
        %v434 = vunpack.c.h.b16 %v357
        %v435 = vunpack.c.l.b16 %v358
        %v436 = vunpack.c.l.b16 %v359
        %v437 = vunpack.c.h.b16 %v359
        %v438 = vunpack.c.l.b16 %v360
        %v439 = vunpack.c.l.b16 %v361
        %v440 = vunpack.c.h.b16 %v361
        %v441 = vunpack.c.l.b16 %v362
        %v442 = vunpack.c.l.b16 %v363
        %v443 = vunpack.c.h.b16 %v363
        %v444 = vunpack.c.l.b16 %v364
        %v445 = vpack.c.b16 %v400, %v397
        %v446 = vpack.c.b16 %v401, %v398
        %v447 = vpack.c.b16 %v402, %v399
        %v448 = vpack.c.b16 %v406, %v403
        %v449 = vpack.c.b16 %v407, %v404
        %v450 = vpack.c.b16 %v408, %v405
        %v451 = vpack.c.b16 %v412, %v409
        %v452 = vpack.c.b16 %v413, %v410
        %v453 = vpack.c.b16 %v414, %v411
        %v454 = vpack.c.b16 %v418, %v415
        %v455 = vpack.c.b16 %v419, %v416
        %v456 = vpack.c.b16 %v420, %v417
        %v457 = vpack.c.b16 %v424, %v421
        %v458 = vpack.c.b16 %v425, %v422
        %v459 = vpack.c.b16 %v426, %v423
        %v460 = vpack.c.b16 %v430, %v427
        %v461 = vpack.c.b16 %v431, %v428
        %v462 = vpack.c.b16 %v432, %v429
        %v463 = vpack.c.b16 %v436, %v433
        %v464 = vpack.c.b16 %v437, %v434
        %v465 = vpack.c.b16 %v438, %v435
        %v466 = vpack.c.b16 %v442, %v439
        %v467 = vpack.c.b16 %v443, %v440
        %v468 = vpack.c.b16 %v444, %v441
        %493 = vmatprep.subr.bf16.mxu0 %v446
        %494 = vmatpush1.bf16.msra.mxu0 %v445
        %495 = vmatprep.subr.bf16.mxu0 %v449
        %496 = vmatpush1.bf16.msra.mxu0 %v448
        %497 = vmatprep.subr.bf16.mxu0 %v452
        %498 = vmatpush1.bf16.msra.mxu0 %v451
        %499 = vmatprep.subr.bf16.mxu0 %v455
        %500 = vmatpush1.bf16.msra.mxu0 %v454
        %501 = vmatprep.subr.bf16.mxu0 %v458
        %502 = vmatpush1.bf16.msra.mxu0 %v457
        %503 = vmatprep.subr.bf16.mxu0 %v461
        %504 = vmatpush1.bf16.msra.mxu0 %v460
        %505 = vmatprep.subr.bf16.mxu0 %v464
        %506 = vmatpush1.bf16.msra.mxu0 %v463
        %507 = vmatprep.subr.bf16.mxu0 %v467
        %508 = vmatpush1.bf16.msra.mxu0 %v466
        %509 = vmatprep.subr.bf16.mxu0 0
        %510 = vmatpush1.bf16.msra.mxu0 0
        %511 = vmatprep.subr.bf16.mxu0 0
        %512 = vmatpush1.bf16.msra.mxu0 0
        %513 = vmatprep.subr.bf16.mxu0 0
        %514 = vmatpush1.bf16.msra.mxu0 0
        %515 = vmatprep.subr.bf16.mxu0 0
        %516 = vmatpush1.bf16.msra.mxu0 0
        %517 = vmatprep.subr.bf16.mxu0 0
        %518 = vmatpush1.bf16.msra.mxu0 0
        %519 = vmatprep.subr.bf16.mxu0 0
        %520 = vmatpush1.bf16.msra.mxu0 0
        %521 = vmatprep.subr.bf16.mxu0 0
        %522 = vmatpush1.bf16.msra.mxu0 0
        %523 = vmatprep.subr.bf16.mxu0 0
        %524 = vmatpush1.bf16.msra.mxu0 0
        %525 = vmatprep.mubr.bf16.mxu0 0
        %526 = vmatmul.mubr.bf16.gmra.mrb[0].mxu0 %v332
        %v527 = vpop.f32.mrb[0].mxu0
        %v528 = vadd.f32 0.0, %v527
        %v529 = vpop.f32.mrb[0].mxu0
        %v530 = vadd.f32 0.0, %v529
        %v531 = vpop.f32.mrb[0].mxu0
        %v532 = vpop.f32.mrb[0].mxu0
        %533 = vdwg.mxu0
        %534 = vmatprep.subr.bf16.mxu0 0
        %535 = vmatpush1.bf16.msra.mxu0 %v447
        %536 = vmatprep.subr.bf16.mxu0 0
        %537 = vmatpush1.bf16.msra.mxu0 %v450
        %538 = vmatprep.subr.bf16.mxu0 0
        %539 = vmatpush1.bf16.msra.mxu0 %v453
        %540 = vmatprep.subr.bf16.mxu0 0
        %541 = vmatpush1.bf16.msra.mxu0 %v456
        %542 = vmatprep.subr.bf16.mxu0 0
        %543 = vmatpush1.bf16.msra.mxu0 %v459
        %544 = vmatprep.subr.bf16.mxu0 0
        %545 = vmatpush1.bf16.msra.mxu0 %v462
        %546 = vmatprep.subr.bf16.mxu0 0
        %547 = vmatpush1.bf16.msra.mxu0 %v465
        %548 = vmatprep.subr.bf16.mxu0 0
        %549 = vmatpush1.bf16.msra.mxu0 %v468
        %550 = vmatprep.subr.bf16.mxu0 0
        %551 = vmatpush1.bf16.msra.mxu0 0
        %552 = vmatprep.subr.bf16.mxu0 0
        %553 = vmatpush1.bf16.msra.mxu0 0
        %554 = vmatprep.subr.bf16.mxu0 0
        %555 = vmatpush1.bf16.msra.mxu0 0
        %556 = vmatprep.subr.bf16.mxu0 0
        %557 = vmatpush1.bf16.msra.mxu0 0
        %558 = vmatprep.subr.bf16.mxu0 0
        %559 = vmatpush1.bf16.msra.mxu0 0
        %560 = vmatprep.subr.bf16.mxu0 0
        %561 = vmatpush1.bf16.msra.mxu0 0
        %562 = vmatprep.subr.bf16.mxu0 0
        %563 = vmatpush1.bf16.msra.mxu0 0
        %564 = vmatprep.subr.bf16.mxu0 0
        %565 = vmatpush1.bf16.msra.mxu0 0
        %566 = vmatprep.mubr.bf16.mxu0 0
        %567 = vmatmul.mubr.bf16.gmra.mrb[0].mxu0 %v332
        %v568 = vpop.f32.mrb[0].mxu0
        %v569 = vadd.f32 0.0, %v568
        %v570 = vpop.f32.mrb[0].mxu0
        %v571 = vpop.f32.mrb[0].mxu0
        %v572 = vpop.f32.mrb[0].mxu0
        %573 = vdwg.mxu0
        %v574 = vpack.c.bf16 %v528, %v528
        %v575 = vpack.c.bf16 %v530, %v530
        %v576 = vpack.c.bf16 %v569, %v569
        %vm577 = vcmask 257024
        %578 = vst.msk [vmem:[%s292] sm:$0xf] %vm577, %v574
        %v580 = vunpack.c.l.b16 %v574
        %v581 = vpack.c.b16 %v580, %v580
        %582 = vrot.lane.b32.xlu0 %v581, 96
        %v583 = vpop.permute.xlu0 %582
        %s585 = scalar_lea.vmem %s292, 4
        %586 = vst.msk [vmem:[%s585] sm:$0xf] %vm577, %v583
        %587 = vrot.lane.b32.xlu0 %v581, 64
        %v588 = vpop.permute.xlu0 %587
        %s590 = scalar_lea.vmem %s292, 8
        %591 = vst.msk [vmem:[%s590] sm:$0xf] %vm577, %v588
        %592 = vrot.lane.b32.xlu0 %v581, 32
        %v593 = vpop.permute.xlu0 %592
        %s595 = scalar_lea.vmem %s292, 12
        %596 = vst.msk [vmem:[%s595] sm:$0xf] %vm577, %v593
        %597 = vst.msk [vmem:[%s300] sm:$0xf] %vm577, %v575
        %v599 = vunpack.c.l.b16 %v575
        %v600 = vpack.c.b16 %v599, %v599
        %601 = vrot.lane.b32.xlu0 %v600, 96
        %v602 = vpop.permute.xlu0 %601
        %s604 = scalar_lea.vmem %s300, 4
        %605 = vst.msk [vmem:[%s604] sm:$0xf] %vm577, %v602
        %606 = vrot.lane.b32.xlu0 %v600, 64
        %v607 = vpop.permute.xlu0 %606
        %s609 = scalar_lea.vmem %s300, 8
        %610 = vst.msk [vmem:[%s609] sm:$0xf] %vm577, %v607
        %611 = vrot.lane.b32.xlu0 %v600, 32
        %v612 = vpop.permute.xlu0 %611
        %s614 = scalar_lea.vmem %s300, 12
        %615 = vst.msk [vmem:[%s614] sm:$0xf] %vm577, %v612
        %616 = vst.msk [vmem:[%s308] sm:$0xf] %vm577, %v576
        %v618 = vunpack.c.l.b16 %v576
        %v619 = vpack.c.b16 %v618, %v618
        %620 = vrot.lane.b32.xlu0 %v619, 96
        %v621 = vpop.permute.xlu0 %620
        %s623 = scalar_lea.vmem %s308, 4
        %624 = vst.msk [vmem:[%s623] sm:$0xf] %vm577, %v621
        %625 = vrot.lane.b32.xlu0 %v619, 64
        %v626 = vpop.permute.xlu0 %625
        %s628 = scalar_lea.vmem %s308, 8
        %629 = vst.msk [vmem:[%s628] sm:$0xf] %vm577, %v626
        %630 = vrot.lane.b32.xlu0 %v619, 32
        %v631 = vpop.permute.xlu0 %630
        %s633 = scalar_lea.vmem %s308, 12
        %634 = vst.msk [vmem:[%s633] sm:$0xf] %vm577, %v631
        %p635 = scmp.lt.s32.totalorder %s22, 1
        %s636 = scalar_select %p635, %s22, 1
        %p637 = scmp.lt.s32.totalorder %s23, 0
        %s638 = scalar_select %p637, %s23, 0
        %s639 = smul.addr %s636, 4
        %s640 = sadd.s32 %s638, %s639
        %s641 = smul.addr %s640, 4
        %s642 = scalar_lea.vmem %s3, %s641
        %p643 = scmp.lt.s32.totalorder %s22, 1
        %s644 = scalar_select %p643, %s22, 1
        %p645 = scmp.lt.s32.totalorder %s23, 0
        %s646 = scalar_select %p645, %s23, 0
        %s647 = smul.addr %s644, 4
        %s648 = sadd.s32 %s646, %s647
        %s649 = smul.addr %s648, 4
        %s650 = scalar_lea.vmem %s4, %s649
        %p651 = scmp.lt.s32.totalorder %s22, 1
        %s652 = scalar_select %p651, %s22, 1
        %p653 = scmp.lt.s32.totalorder %s23, 0
        %s654 = scalar_select %p653, %s23, 0
        %s655 = smul.addr %s652, 4
        %s656 = sadd.s32 %s654, %s655
        %s657 = smul.addr %s656, 4
        %s658 = scalar_lea.vmem %s5, %s657
        // Predicated region
        $region37: #{_forward_impl.2} parent=31 // pred_check
          %p659 = pneg %p120
        $region38: #{_forward_impl.2} parent=31 // pred_check_branch
          %661 = sbr.rel (%p659) target = $region40
        $region39: #{_forward_impl.2} parent=31 // pred_region
          _
        $region40: #{_forward_impl.2} parent=31 // pred_fallthru
          _
        // Predicated region
        $region41: #{_forward_impl.2} parent=31 // pred_check
          %p662 = pneg %p148
        $region42: #{_forward_impl.2} parent=31 // pred_check_branch
          %664 = sbr.rel (%p662) target = $region44
        $region43: #{_forward_impl.2} parent=31 // pred_region
          _
        $region44: #{_forward_impl.2} parent=31 // pred_fallthru
          _
        // Predicated region
        $region45: #{_forward_impl.2} parent=31 // pred_check
          %p665 = pneg %p176
        $region46: #{_forward_impl.2} parent=31 // pred_check_branch
          %667 = sbr.rel (%p665) target = $region48
        $region47: #{_forward_impl.2} parent=31 // pred_region
          _
        $region48: #{_forward_impl.2} parent=31 // pred_fallthru
          _
      $region32: #{_forward_impl.2} parent=5 // pred_fallthru
        _
      %p668 = scmp.le.s32.totalorder 2, %s13
      // Predicated region
      $region49: #{_forward_impl.2} parent=5 // pred_check
        %p669 = pneg %p668
      $region50: #{_forward_impl.2} parent=5 // pred_check_branch
        %671 = sbr.rel (%p669) target = $region52
      $region51: #{_forward_impl.2} parent=5 // pred_region
        %s672 = ssub.s32 %s13, 2
        // Predicated region
        $region53: #{_forward_impl.2} parent=51 // pred_check
          %p673 = pneg %p126
        $region54: #{_forward_impl.2} parent=51 // pred_check_branch
          %675 = sbr.rel (%p673) target = $region56
        $region55: #{_forward_impl.2} parent=51 // pred_region
          %p676 = scmp.lt.s32.totalorder %s24, 1
          %s677 = scalar_select %p676, %s24, 1
          %p678 = scmp.lt.s32.totalorder %s25, 0
          %s679 = scalar_select %p678, %s25, 0
          %s680 = smul.addr %s677, 4
          %s681 = sadd.s32 %s679, %s680
          %s682 = smul.addr %s681, 4
          %s683 = scalar_lea.vmem %s3, %s682
        $region56: #{_forward_impl.2} parent=51 // pred_fallthru
          _
        // Predicated region
        $region57: #{_forward_impl.2} parent=51 // pred_check
          %p684 = pneg %p154
        $region58: #{_forward_impl.2} parent=51 // pred_check_branch
          %686 = sbr.rel (%p684) target = $region60
        $region59: #{_forward_impl.2} parent=51 // pred_region
          %p687 = scmp.lt.s32.totalorder %s24, 1
          %s688 = scalar_select %p687, %s24, 1
          %p689 = scmp.lt.s32.totalorder %s25, 0
          %s690 = scalar_select %p689, %s25, 0
          %s691 = smul.addr %s688, 4
          %s692 = sadd.s32 %s690, %s691
          %s693 = smul.addr %s692, 4
          %s694 = scalar_lea.vmem %s4, %s693
        $region60: #{_forward_impl.2} parent=51 // pred_fallthru
          _
        // Predicated region
        $region61: #{_forward_impl.2} parent=51 // pred_check
          %p695 = pneg %p182
        $region62: #{_forward_impl.2} parent=51 // pred_check_branch
          %697 = sbr.rel (%p695) target = $region64
        $region63: #{_forward_impl.2} parent=51 // pred_region
          %p698 = scmp.lt.s32.totalorder %s24, 1
          %s699 = scalar_select %p698, %s24, 1
          %p700 = scmp.lt.s32.totalorder %s25, 0
          %s701 = scalar_select %p700, %s25, 0
          %s702 = smul.addr %s699, 4
          %s703 = sadd.s32 %s701, %s702
          %s704 = smul.addr %s703, 4
          %s705 = scalar_lea.vmem %s5, %s704
        $region64: #{_forward_impl.2} parent=51 // pred_fallthru
          _
      $region52: #{_forward_impl.2} parent=5 // pred_fallthru
        _
    $region6: #{_forward_impl.2} parent=1 // loop_footer
      %s17 = sadd.s32 1, %s13
    $region7: #{_forward_impl.2} parent=1 // loop_footer_branch
      %12 = sbr.rel target = $region3
    $region8: #{_forward_impl.2} parent=1 // loop_exit
      _
    %706 = vsyncpa [#allocation3], 1
    %s707 = scalar_lea.sflag [#allocation3], 1
    %708 = vsyncpa %s707, 1

</llo_original>
